<compile_context>
chip_gen: v6e
topology: v6e:2x2x1
jax: 0.10.0
libtpu: 0.0.40
codegen_flags: <defaults>
</compile_context>

<pallas_src>
import functools

import jax
import jax.numpy as jnp
from jax import lax
from jax.experimental import pallas as pl
from jax.experimental.pallas import tpu as pltpu

CDC_THETA = 0.8
LRELU_SLOPE = 0.1


# ----------------------------------------------------------------------------
# Fused InvBlock kernel: one grid step == Bt batch elements, NCHW layout.
# ----------------------------------------------------------------------------
def _invblock_kernel(x_ref, wF_ref, wG_ref, wH1_ref, bH1_ref, wH2_ref, bH2_ref,
                     out_ref, *, c1, clamp):
    Bt, C, H, W = out_ref.shape
    c2 = C - c1
    f32 = jnp.float32

    # Edge-validity masks for the zero-padded 3x3 halo (built once, shared by every conv pass).
    row_ids = lax.broadcasted_iota(jnp.int32, (1, H, W), 1)
    col_ids = lax.broadcasted_iota(jnp.int32, (1, H, W), 2)
    row_ok = {1: row_ids < (H - 1), -1: row_ids >= 1}
    col_ok = {1: col_ids < (W - 1), -1: col_ids >= 1}

    def shift(v, d, axis, ok):
        # out[..., i, ...] = v[..., i + d, ...], zero outside the image.
        # pltpu.roll follows jnp.roll semantics -> shift by (-d) mod size, then mask the wrap.
        rolled = pltpu.roll(v, (-d) % v.shape[axis], axis=axis)
        return jnp.where(ok[d], rolled, 0.0)

    def conv3x3_multi(planes, specs):
        """planes: list of cin (Bt,H,W) f32 planes.
        specs: list of (w_ref_flat_OIHW, cout, bias_ref_or_None).

        Streams one shifted tap window at a time (pltpu.roll on the XLU + iota edge mask on the
        VPU) and accumulates it into every spec's accumulators, so convs that consume the same
        input reuse each window and live state stays small (accumulators + one window)."""
        cin = len(planes)
        accs = [[jnp.zeros((Bt, H, W), f32) for _ in range(cout)] for (_, cout, _) in specs]
        for ci in range(cin):
            p = planes[ci]
            for dy in (-1, 0, 1):
                r = p if dy == 0 else shift(p, dy, 1, row_ok)
                for dx in (-1, 0, 1):
                    win = r if dx == 0 else shift(r, dx, 2, col_ok)
                    ky, kx = dy + 1, dx + 1
                    for si, (w_ref, cout, _) in enumerate(specs):
                        for co in range(cout):
                            w = w_ref[((co * cin + ci) * 3 + ky) * 3 + kx]
                            accs[si][co] = accs[si][co] + w * win
        outs = []
        for (_, cout, b_ref), acc in zip(specs, accs):
            if b_ref is not None:
                acc = [a + b_ref[co] for co, a in enumerate(acc)]
            outs.append(acc)
        return outs

    def lrelu(v):
        return jnp.maximum(v, LRELU_SLOPE * v)

    # Channel split (channels live in a leading, non-lane dim).
    x1 = [x_ref[:, i].astype(f32) for i in range(c1)]
    x2 = [x_ref[:, c1 + i].astype(f32) for i in range(c2)]

    # y1 = x1 + F(x2)            (F = cdcconv, folded into a plain 3x3)
    (f_out,) = conv3x3_multi(x2, [(wF_ref, c1, None)])
    y1 = [a + b for a, b in zip(x1, f_out)]

    # First conv of H(y1) and G(y1) share y1's shifted windows (single streaming pass).
    h1, g = conv3x3_multi(y1, [(wH1_ref, c1, bH1_ref), (wG_ref, c2, None)])
    h1 = [lrelu(v) for v in h1]
    (h2,) = conv3x3_multi(h1, [(wH2_ref, c1, bH2_ref)])
    h = [lrelu(v) + y for v, y in zip(h2, y1)]          # ProcessBlock residual

    # y2 = x2 * exp(clamp * (2*sigmoid(h) - 1)) + G(y1);  2*sigmoid(h)-1 == tanh(h/2).
    # Emit directly into the concatenated output slab (no jnp.concatenate pass).
    for i in range(c1):
        out_ref[:, i] = y1[i].astype(out_ref.dtype)
    for i in range(c2):
        s = clamp * jnp.tanh(0.5 * h[i])
        out_ref[:, c1 + i] = (x2[i] * jnp.exp(s) + g[i]).astype(out_ref.dtype)


# ----------------------------------------------------------------------------
# Parameter helpers + wrapper
# ----------------------------------------------------------------------------
def fold_cdc_weight(w_oihw, theta=CDC_THETA):
    """cdcconv == conv3x3 with the center tap reduced by theta * sum(W) (exact fold)."""
    return w_oihw.at[:, :, 1, 1].add(-theta * w_oihw.sum(axis=(2, 3)))


def make_params(channel_num, channel_split_num, key):
    c1 = channel_split_num
    c2 = channel_num - channel_split_num
    ks = jax.random.split(key, 6)
    scale = 0.1
    return {
        "wF": scale * jax.random.normal(ks[0], (c1, c2, 3, 3), jnp.float32),   # cdcconv, no bias
        "wG": scale * jax.random.normal(ks[1], (c2, c1, 3, 3), jnp.float32),   # cdcconv, no bias
        "wH1": scale * jax.random.normal(ks[2], (c1, c1, 3, 3), jnp.float32),
        "bH1": scale * jax.random.normal(ks[3], (c1,), jnp.float32),
        "wH2": scale * jax.random.normal(ks[4], (c1, c1, 3, 3), jnp.float32),
        "bH2": scale * jax.random.normal(ks[5], (c1,), jnp.float32),
    }


def invblock_forward_pallas(x_nchw, params, channel_split_num, clamp=0.8):
    """InvBlock.forward(x, rev=False).  x_nchw: (B, C, H, W) -> (B, C, H, W). NCHW kept end-to-end."""
    B, C, H, W = x_nchw.shape
    c1 = channel_split_num
    c2 = C - c1
    assert c1 == c2, "rev=False InvBlock requires split_len1 == split_len2 (x2 * exp(s))"

    # Fold cdc into plain 3x3 weights; flatten OIHW for scalar SMEM indexing.
    wF = fold_cdc_weight(params["wF"]).astype(jnp.float32).reshape(-1)
    wG = fold_cdc_weight(params["wG"]).astype(jnp.float32).reshape(-1)
    wH1 = params["wH1"].astype(jnp.float32).reshape(-1)
    wH2 = params["wH2"].astype(jnp.float32).reshape(-1)
    bH1 = params["bH1"].astype(jnp.float32)
    bH2 = params["bH2"].astype(jnp.float32)

    # Batch-block size Bt: amortize per-grid-step overhead on small images while keeping
    # double-buffered in/out blocks + live intermediates under a conservative VMEM budget
    # (safe vs. v5e's 16 MiB default scoped VMEM; v6e/v7x have more headroom).
    plane_bytes = H * W * 4

    def vmem_estimate(bt):
        io = 2 * 2 * bt * C * plane_bytes       # double-buffered input + output blocks
        live = 18 * bt * plane_bytes            # accumulators + window + x/y/h/g planes + masks
        return io + live

    budget = 12 * 1024 * 1024
    Bt = 1
    for cand in range(B, 0, -1):
        if B % cand == 0 and vmem_estimate(cand) <= budget:
            Bt = cand
            break
    # TODO(synk): for large images (whole-image block over budget) switch to halo-aware H tiling
    #             (grid over (B, H-tiles), both axes "parallel") instead of shrinking Bt to 1.

    kernel = functools.partial(_invblock_kernel, c1=c1, clamp=float(clamp))
    smem = pl.BlockSpec(memory_space=pltpu.MemorySpace.SMEM)
    img_spec = pl.BlockSpec((Bt, C, H, W), lambda b: (b, 0, 0, 0))

    conv_macs = 9 * H * W * (c1 * c2 + c1 * c1 + c1 * c1 + c2 * c1)
    weight_bytes = 4 * (wF.size + wG.size + wH1.size + wH2.size + bH1.size + bH2.size)
    cost = pl.CostEstimate(
        flops=int(B * (2 * conv_macs + 10 * C * H * W)),    # convs + masks/affine/concat epilogue
        transcendentals=int(2 * B * c2 * H * W),            # tanh + exp
        bytes_accessed=int(2 * B * C * H * W * 4 + weight_bytes),
    )

    return pl.pallas_call(
        kernel,
        out_shape=jax.ShapeDtypeStruct((B, C, H, W), x_nchw.dtype),
        grid=(B // Bt,),
        in_specs=[img_spec, smem, smem, smem, smem, smem, smem],
        out_specs=pl.BlockSpec((Bt, C, H, W), lambda b: (b, 0, 0, 0)),
        compiler_params=pltpu.CompilerParams(dimension_semantics=("parallel",)),
        cost_estimate=cost,
    )(x_nchw, wF, wG, wH1, bH1, wH2, bH2)


# ----------------------------------------------------------------------------
# Pure-JAX reference (for in-script correctness check)
# ----------------------------------------------------------------------------
def _conv3x3_ref(x_nchw, w_oihw, b=None):
    dn = lax.conv_dimension_numbers(x_nchw.shape, w_oihw.shape, ("NCHW", "OIHW", "NCHW"))
    y = lax.conv_general_dilated(x_nchw, w_oihw, (1, 1), ((1, 1), (1, 1)), dimension_numbers=dn)
    if b is not None:
        y = y + b[None, :, None, None]
    return y


def _cdc_ref(x, w_oihw, theta=CDC_THETA):
    out_normal = _conv3x3_ref(x, w_oihw)
    kdiff = w_oihw.sum(axis=(2, 3))[:, :, None, None]
    dn = lax.conv_dimension_numbers(x.shape, kdiff.shape, ("NCHW", "OIHW", "NCHW"))
    out_diff = lax.conv_general_dilated(x, kdiff, (1, 1), ((0, 0), (0, 0)), dimension_numbers=dn)
    return out_normal - theta * out_diff


def invblock_forward_ref(x, params, channel_split_num, clamp=0.8):
    c1 = channel_split_num
    x1, x2 = x[:, :c1], x[:, c1:]
    y1 = x1 + _cdc_ref(x2, params["wF"])

    def lrelu(v):
        return jnp.where(v >= 0, v, LRELU_SLOPE * v)

    h = lrelu(_conv3x3_ref(y1, params["wH1"], params["bH1"]))
    h = lrelu(_conv3x3_ref(h, params["wH2"], params["bH2"])) + y1
    s = clamp * (jax.nn.sigmoid(h) * 2.0 - 1.0)
    y2 = x2 * jnp.exp(s) + _cdc_ref(y1, params["wG"])
    return jnp.concatenate([y1, y2], axis=1)


# ----------------------------------------------------------------------------
if __name__ == "__main__":
    # W = 128 keeps the last dim lane-dense (per the perf review); shapes stay small.
    B, C, H, W = 2, 4, 16, 128
    channel_split_num = 2  # split_len1 == split_len2 == 2

    key = jax.random.PRNGKey(0)
    k_x, k_p = jax.random.split(key)
    x = jax.random.normal(k_x, (B, C, H, W), jnp.float32)
    params = make_params(C, channel_split_num, k_p)

    out = invblock_forward_pallas(x, params, channel_split_num, clamp=0.8)
    out = jax.block_until_ready(out)

    ref = invblock_forward_ref(x, params, channel_split_num, clamp=0.8)
    assert out.shape == (B, C, H, W)
    err = float(jnp.max(jnp.abs(out - ref)))
    assert err < 1e-4, f"mismatch vs pure-JAX reference: {err}"

    print("KERNEL_OK")
</pallas_src>

<mosaic_0001>
module attributes {stable_mosaic.version = 11 : i64} {
  func.func @_invblock_kernel(%arg0: i32, %arg1: memref<2x4x16x128xf32, #tpu.memory_space<vmem>>, %arg2: memref<36xf32, #tpu.memory_space<smem>>, %arg3: memref<36xf32, #tpu.memory_space<smem>>, %arg4: memref<36xf32, #tpu.memory_space<smem>>, %arg5: memref<2xf32, #tpu.memory_space<smem>>, %arg6: memref<36xf32, #tpu.memory_space<smem>>, %arg7: memref<2xf32, #tpu.memory_space<smem>>, %arg8: memref<2x4x16x128xf32, #tpu.memory_space<vmem>>) attributes {dimension_semantics = [#tpu.dimension_semantics<parallel>], iteration_bounds = array<i64: 1>, scalar_prefetch = 0 : i64, scratch_operands = 0 : i64, tpu.core_type = #tpu.core_type<tc>, window_params = [{transform_indices = @transform_0, window_bounds = array<i64: 2, 4, 16, 128>}, {transform_indices = @transform_1, window_bounds = array<i64: 36>}, {transform_indices = @transform_2, window_bounds = array<i64: 36>}, {transform_indices = @transform_3, window_bounds = array<i64: 36>}, {transform_indices = @transform_4, window_bounds = array<i64: 2>}, {transform_indices = @transform_5, window_bounds = array<i64: 36>}, {transform_indices = @transform_6, window_bounds = array<i64: 2>}, {transform_indices = @transform_7, window_bounds = array<i64: 2, 4, 16, 128>}]} {
    %0 = tpu.iota {dimensions = array<i32: 1>} : vector<1x16x128xi32>
    %1 = tpu.iota {dimensions = array<i32: 2>} : vector<1x16x128xi32>
    %c15_i32 = arith.constant 15 : i32
    %2 = vector.broadcast %c15_i32 : i32 to vector<1x16x128xi32>
    %3 = arith.cmpi slt, %0, %2 : vector<1x16x128xi32>
    %c1_i32 = arith.constant 1 : i32
    %4 = vector.broadcast %c1_i32 : i32 to vector<1x16x128xi32>
    %5 = arith.cmpi sge, %0, %4 : vector<1x16x128xi32>
    %c127_i32 = arith.constant 127 : i32
    %6 = vector.broadcast %c127_i32 : i32 to vector<1x16x128xi32>
    %7 = arith.cmpi slt, %1, %6 : vector<1x16x128xi32>
    %c1_i32_0 = arith.constant 1 : i32
    %8 = vector.broadcast %c1_i32_0 : i32 to vector<1x16x128xi32>
    %9 = arith.cmpi sge, %1, %8 : vector<1x16x128xi32>
    %c0 = arith.constant 0 : index
    %c0_1 = arith.constant 0 : index
    %c0_2 = arith.constant 0 : index
    %c0_3 = arith.constant 0 : index
    %10 = vector.load %arg1[%c0, %c0_1, %c0_2, %c0_3] : memref<2x4x16x128xf32, #tpu.memory_space<vmem>>, vector<2x1x16x128xf32>
    %11 = vector.shape_cast %10 : vector<2x1x16x128xf32> to vector<2x16x128xf32>
    %c0_4 = arith.constant 0 : index
    %c1 = arith.constant 1 : index
    %c0_5 = arith.constant 0 : index
    %c0_6 = arith.constant 0 : index
    %12 = vector.load %arg1[%c0_4, %c1, %c0_5, %c0_6] : memref<2x4x16x128xf32, #tpu.memory_space<vmem>>, vector<2x1x16x128xf32>
    %13 = vector.shape_cast %12 : vector<2x1x16x128xf32> to vector<2x16x128xf32>
    %c0_7 = arith.constant 0 : index
    %c2 = arith.constant 2 : index
    %c0_8 = arith.constant 0 : index
    %c0_9 = arith.constant 0 : index
    %14 = vector.load %arg1[%c0_7, %c2, %c0_8, %c0_9] : memref<2x4x16x128xf32, #tpu.memory_space<vmem>>, vector<2x1x16x128xf32>
    %15 = vector.shape_cast %14 : vector<2x1x16x128xf32> to vector<2x16x128xf32>
    %c0_10 = arith.constant 0 : index
    %c3 = arith.constant 3 : index
    %c0_11 = arith.constant 0 : index
    %c0_12 = arith.constant 0 : index
    %16 = vector.load %arg1[%c0_10, %c3, %c0_11, %c0_12] : memref<2x4x16x128xf32, #tpu.memory_space<vmem>>, vector<2x1x16x128xf32>
    %17 = vector.shape_cast %16 : vector<2x1x16x128xf32> to vector<2x16x128xf32>
    %cst = arith.constant 0.000000e+00 : f32
    %18 = vector.broadcast %cst : f32 to vector<2x16x128xf32>
    %cst_13 = arith.constant 0.000000e+00 : f32
    %19 = vector.broadcast %cst_13 : f32 to vector<2x16x128xf32>
    %c1_i32_14 = arith.constant 1 : i32
    %20 = tpu.dynamic_rotate %15 by %c1_i32_14 dim 1 : vector<2x16x128xf32>, i32 -> vector<2x16x128xf32>
    %cst_15 = arith.constant 0.000000e+00 : f32
    %21 = vector.shape_cast %5 : vector<1x16x128xi1> to vector<1x16x128xi1>
    %22 = vector.broadcast %21 : vector<1x16x128xi1> to vector<2x16x128xi1>
    %23 = vector.broadcast %cst_15 : f32 to vector<2x16x128xf32>
    %24 = arith.select %22, %20, %23 : vector<2x16x128xi1>, vector<2x16x128xf32>
    %c1_i32_16 = arith.constant 1 : i32
    %25 = tpu.dynamic_rotate %24 by %c1_i32_16 dim 2 : vector<2x16x128xf32>, i32 -> vector<2x16x128xf32>
    %cst_17 = arith.constant 0.000000e+00 : f32
    %26 = vector.shape_cast %9 : vector<1x16x128xi1> to vector<1x16x128xi1>
    %27 = vector.broadcast %26 : vector<1x16x128xi1> to vector<2x16x128xi1>
    %28 = vector.broadcast %cst_17 : f32 to vector<2x16x128xf32>
    %29 = arith.select %27, %25, %28 : vector<2x16x128xi1>, vector<2x16x128xf32>
    %c0_18 = arith.constant 0 : index
    %30 = memref.load %arg2[%c0_18] : memref<36xf32, #tpu.memory_space<smem>>
    %31 = vector.broadcast %30 : f32 to vector<2x16x128xf32>
    %32 = arith.mulf %31, %29 : vector<2x16x128xf32>
    %33 = arith.addf %18, %32 : vector<2x16x128xf32>
    %c18 = arith.constant 18 : index
    %34 = memref.load %arg2[%c18] : memref<36xf32, #tpu.memory_space<smem>>
    %35 = vector.broadcast %34 : f32 to vector<2x16x128xf32>
    %36 = arith.mulf %35, %29 : vector<2x16x128xf32>
    %37 = arith.addf %19, %36 : vector<2x16x128xf32>
    %c1_19 = arith.constant 1 : index
    %38 = memref.load %arg2[%c1_19] : memref<36xf32, #tpu.memory_space<smem>>
    %39 = vector.broadcast %38 : f32 to vector<2x16x128xf32>
    %40 = arith.mulf %39, %24 : vector<2x16x128xf32>
    %41 = arith.addf %33, %40 : vector<2x16x128xf32>
    %c19 = arith.constant 19 : index
    %42 = memref.load %arg2[%c19] : memref<36xf32, #tpu.memory_space<smem>>
    %43 = vector.broadcast %42 : f32 to vector<2x16x128xf32>
    %44 = arith.mulf %43, %24 : vector<2x16x128xf32>
    %45 = arith.addf %37, %44 : vector<2x16x128xf32>
    %c127_i32_20 = arith.constant 127 : i32
    %46 = tpu.dynamic_rotate %24 by %c127_i32_20 dim 2 : vector<2x16x128xf32>, i32 -> vector<2x16x128xf32>
    %cst_21 = arith.constant 0.000000e+00 : f32
    %47 = vector.shape_cast %7 : vector<1x16x128xi1> to vector<1x16x128xi1>
    %48 = vector.broadcast %47 : vector<1x16x128xi1> to vector<2x16x128xi1>
    %49 = vector.broadcast %cst_21 : f32 to vector<2x16x128xf32>
    %50 = arith.select %48, %46, %49 : vector<2x16x128xi1>, vector<2x16x128xf32>
    %c2_22 = arith.constant 2 : index
    %51 = memref.load %arg2[%c2_22] : memref<36xf32, #tpu.memory_space<smem>>
    %52 = vector.broadcast %51 : f32 to vector<2x16x128xf32>
    %53 = arith.mulf %52, %50 : vector<2x16x128xf32>
    %54 = arith.addf %41, %53 : vector<2x16x128xf32>
    %c20 = arith.constant 20 : index
    %55 = memref.load %arg2[%c20] : memref<36xf32, #tpu.memory_space<smem>>
    %56 = vector.broadcast %55 : f32 to vector<2x16x128xf32>
    %57 = arith.mulf %56, %50 : vector<2x16x128xf32>
    %58 = arith.addf %45, %57 : vector<2x16x128xf32>
    %c1_i32_23 = arith.constant 1 : i32
    %59 = tpu.dynamic_rotate %15 by %c1_i32_23 dim 2 : vector<2x16x128xf32>, i32 -> vector<2x16x128xf32>
    %cst_24 = arith.constant 0.000000e+00 : f32
    %60 = vector.shape_cast %9 : vector<1x16x128xi1> to vector<1x16x128xi1>
    %61 = vector.broadcast %60 : vector<1x16x128xi1> to vector<2x16x128xi1>
    %62 = vector.broadcast %cst_24 : f32 to vector<2x16x128xf32>
    %63 = arith.select %61, %59, %62 : vector<2x16x128xi1>, vector<2x16x128xf32>
    %c3_25 = arith.constant 3 : index
    %64 = memref.load %arg2[%c3_25] : memref<36xf32, #tpu.memory_space<smem>>
    %65 = vector.broadcast %64 : f32 to vector<2x16x128xf32>
    %66 = arith.mulf %65, %63 : vector<2x16x128xf32>
    %67 = arith.addf %54, %66 : vector<2x16x128xf32>
    %c21 = arith.constant 21 : index
    %68 = memref.load %arg2[%c21] : memref<36xf32, #tpu.memory_space<smem>>
    %69 = vector.broadcast %68 : f32 to vector<2x16x128xf32>
    %70 = arith.mulf %69, %63 : vector<2x16x128xf32>
    %71 = arith.addf %58, %70 : vector<2x16x128xf32>
    %c4 = arith.constant 4 : index
    %72 = memref.load %arg2[%c4] : memref<36xf32, #tpu.memory_space<smem>>
    %73 = vector.broadcast %72 : f32 to vector<2x16x128xf32>
    %74 = arith.mulf %73, %15 : vector<2x16x128xf32>
    %75 = arith.addf %67, %74 : vector<2x16x128xf32>
    %c22 = arith.constant 22 : index
    %76 = memref.load %arg2[%c22] : memref<36xf32, #tpu.memory_space<smem>>
    %77 = vector.broadcast %76 : f32 to vector<2x16x128xf32>
    %78 = arith.mulf %77, %15 : vector<2x16x128xf32>
    %79 = arith.addf %71, %78 : vector<2x16x128xf32>
    %c127_i32_26 = arith.constant 127 : i32
    %80 = tpu.dynamic_rotate %15 by %c127_i32_26 dim 2 : vector<2x16x128xf32>, i32 -> vector<2x16x128xf32>
    %cst_27 = arith.constant 0.000000e+00 : f32
    %81 = vector.shape_cast %7 : vector<1x16x128xi1> to vector<1x16x128xi1>
    %82 = vector.broadcast %81 : vector<1x16x128xi1> to vector<2x16x128xi1>
    %83 = vector.broadcast %cst_27 : f32 to vector<2x16x128xf32>
    %84 = arith.select %82, %80, %83 : vector<2x16x128xi1>, vector<2x16x128xf32>
    %c5 = arith.constant 5 : index
    %85 = memref.load %arg2[%c5] : memref<36xf32, #tpu.memory_space<smem>>
    %86 = vector.broadcast %85 : f32 to vector<2x16x128xf32>
    %87 = arith.mulf %86, %84 : vector<2x16x128xf32>
    %88 = arith.addf %75, %87 : vector<2x16x128xf32>
    %c23 = arith.constant 23 : index
    %89 = memref.load %arg2[%c23] : memref<36xf32, #tpu.memory_space<smem>>
    %90 = vector.broadcast %89 : f32 to vector<2x16x128xf32>
    %91 = arith.mulf %90, %84 : vector<2x16x128xf32>
    %92 = arith.addf %79, %91 : vector<2x16x128xf32>
    %c15_i32_28 = arith.constant 15 : i32
    %93 = tpu.dynamic_rotate %15 by %c15_i32_28 dim 1 : vector<2x16x128xf32>, i32 -> vector<2x16x128xf32>
    %cst_29 = arith.constant 0.000000e+00 : f32
    %94 = vector.shape_cast %3 : vector<1x16x128xi1> to vector<1x16x128xi1>
    %95 = vector.broadcast %94 : vector<1x16x128xi1> to vector<2x16x128xi1>
    %96 = vector.broadcast %cst_29 : f32 to vector<2x16x128xf32>
    %97 = arith.select %95, %93, %96 : vector<2x16x128xi1>, vector<2x16x128xf32>
    %c1_i32_30 = arith.constant 1 : i32
    %98 = tpu.dynamic_rotate %97 by %c1_i32_30 dim 2 : vector<2x16x128xf32>, i32 -> vector<2x16x128xf32>
    %cst_31 = arith.constant 0.000000e+00 : f32
    %99 = vector.shape_cast %9 : vector<1x16x128xi1> to vector<1x16x128xi1>
    %100 = vector.broadcast %99 : vector<1x16x128xi1> to vector<2x16x128xi1>
    %101 = vector.broadcast %cst_31 : f32 to vector<2x16x128xf32>
    %102 = arith.select %100, %98, %101 : vector<2x16x128xi1>, vector<2x16x128xf32>
    %c6 = arith.constant 6 : index
    %103 = memref.load %arg2[%c6] : memref<36xf32, #tpu.memory_space<smem>>
    %104 = vector.broadcast %103 : f32 to vector<2x16x128xf32>
    %105 = arith.mulf %104, %102 : vector<2x16x128xf32>
    %106 = arith.addf %88, %105 : vector<2x16x128xf32>
    %c24 = arith.constant 24 : index
    %107 = memref.load %arg2[%c24] : memref<36xf32, #tpu.memory_space<smem>>
    %108 = vector.broadcast %107 : f32 to vector<2x16x128xf32>
    %109 = arith.mulf %108, %102 : vector<2x16x128xf32>
    %110 = arith.addf %92, %109 : vector<2x16x128xf32>
    %c7 = arith.constant 7 : index
    %111 = memref.load %arg2[%c7] : memref<36xf32, #tpu.memory_space<smem>>
    %112 = vector.broadcast %111 : f32 to vector<2x16x128xf32>
    %113 = arith.mulf %112, %97 : vector<2x16x128xf32>
    %114 = arith.addf %106, %113 : vector<2x16x128xf32>
    %c25 = arith.constant 25 : index
    %115 = memref.load %arg2[%c25] : memref<36xf32, #tpu.memory_space<smem>>
    %116 = vector.broadcast %115 : f32 to vector<2x16x128xf32>
    %117 = arith.mulf %116, %97 : vector<2x16x128xf32>
    %118 = arith.addf %110, %117 : vector<2x16x128xf32>
    %c127_i32_32 = arith.constant 127 : i32
    %119 = tpu.dynamic_rotate %97 by %c127_i32_32 dim 2 : vector<2x16x128xf32>, i32 -> vector<2x16x128xf32>
    %cst_33 = arith.constant 0.000000e+00 : f32
    %120 = vector.shape_cast %7 : vector<1x16x128xi1> to vector<1x16x128xi1>
    %121 = vector.broadcast %120 : vector<1x16x128xi1> to vector<2x16x128xi1>
    %122 = vector.broadcast %cst_33 : f32 to vector<2x16x128xf32>
    %123 = arith.select %121, %119, %122 : vector<2x16x128xi1>, vector<2x16x128xf32>
    %c8 = arith.constant 8 : index
    %124 = memref.load %arg2[%c8] : memref<36xf32, #tpu.memory_space<smem>>
    %125 = vector.broadcast %124 : f32 to vector<2x16x128xf32>
    %126 = arith.mulf %125, %123 : vector<2x16x128xf32>
    %127 = arith.addf %114, %126 : vector<2x16x128xf32>
    %c26 = arith.constant 26 : index
    %128 = memref.load %arg2[%c26] : memref<36xf32, #tpu.memory_space<smem>>
    %129 = vector.broadcast %128 : f32 to vector<2x16x128xf32>
    %130 = arith.mulf %129, %123 : vector<2x16x128xf32>
    %131 = arith.addf %118, %130 : vector<2x16x128xf32>
    %c1_i32_34 = arith.constant 1 : i32
    %132 = tpu.dynamic_rotate %17 by %c1_i32_34 dim 1 : vector<2x16x128xf32>, i32 -> vector<2x16x128xf32>
    %cst_35 = arith.constant 0.000000e+00 : f32
    %133 = vector.shape_cast %5 : vector<1x16x128xi1> to vector<1x16x128xi1>
    %134 = vector.broadcast %133 : vector<1x16x128xi1> to vector<2x16x128xi1>
    %135 = vector.broadcast %cst_35 : f32 to vector<2x16x128xf32>
    %136 = arith.select %134, %132, %135 : vector<2x16x128xi1>, vector<2x16x128xf32>
    %c1_i32_36 = arith.constant 1 : i32
    %137 = tpu.dynamic_rotate %136 by %c1_i32_36 dim 2 : vector<2x16x128xf32>, i32 -> vector<2x16x128xf32>
    %cst_37 = arith.constant 0.000000e+00 : f32
    %138 = vector.shape_cast %9 : vector<1x16x128xi1> to vector<1x16x128xi1>
    %139 = vector.broadcast %138 : vector<1x16x128xi1> to vector<2x16x128xi1>
    %140 = vector.broadcast %cst_37 : f32 to vector<2x16x128xf32>
    %141 = arith.select %139, %137, %140 : vector<2x16x128xi1>, vector<2x16x128xf32>
    %c9 = arith.constant 9 : index
    %142 = memref.load %arg2[%c9] : memref<36xf32, #tpu.memory_space<smem>>
    %143 = vector.broadcast %142 : f32 to vector<2x16x128xf32>
    %144 = arith.mulf %143, %141 : vector<2x16x128xf32>
    %145 = arith.addf %127, %144 : vector<2x16x128xf32>
    %c27 = arith.constant 27 : index
    %146 = memref.load %arg2[%c27] : memref<36xf32, #tpu.memory_space<smem>>
    %147 = vector.broadcast %146 : f32 to vector<2x16x128xf32>
    %148 = arith.mulf %147, %141 : vector<2x16x128xf32>
    %149 = arith.addf %131, %148 : vector<2x16x128xf32>
    %c10 = arith.constant 10 : index
    %150 = memref.load %arg2[%c10] : memref<36xf32, #tpu.memory_space<smem>>
    %151 = vector.broadcast %150 : f32 to vector<2x16x128xf32>
    %152 = arith.mulf %151, %136 : vector<2x16x128xf32>
    %153 = arith.addf %145, %152 : vector<2x16x128xf32>
    %c28 = arith.constant 28 : index
    %154 = memref.load %arg2[%c28] : memref<36xf32, #tpu.memory_space<smem>>
    %155 = vector.broadcast %154 : f32 to vector<2x16x128xf32>
    %156 = arith.mulf %155, %136 : vector<2x16x128xf32>
    %157 = arith.addf %149, %156 : vector<2x16x128xf32>
    %c127_i32_38 = arith.constant 127 : i32
    %158 = tpu.dynamic_rotate %136 by %c127_i32_38 dim 2 : vector<2x16x128xf32>, i32 -> vector<2x16x128xf32>
    %cst_39 = arith.constant 0.000000e+00 : f32
    %159 = vector.shape_cast %7 : vector<1x16x128xi1> to vector<1x16x128xi1>
    %160 = vector.broadcast %159 : vector<1x16x128xi1> to vector<2x16x128xi1>
    %161 = vector.broadcast %cst_39 : f32 to vector<2x16x128xf32>
    %162 = arith.select %160, %158, %161 : vector<2x16x128xi1>, vector<2x16x128xf32>
    %c11 = arith.constant 11 : index
    %163 = memref.load %arg2[%c11] : memref<36xf32, #tpu.memory_space<smem>>
    %164 = vector.broadcast %163 : f32 to vector<2x16x128xf32>
    %165 = arith.mulf %164, %162 : vector<2x16x128xf32>
    %166 = arith.addf %153, %165 : vector<2x16x128xf32>
    %c29 = arith.constant 29 : index
    %167 = memref.load %arg2[%c29] : memref<36xf32, #tpu.memory_space<smem>>
    %168 = vector.broadcast %167 : f32 to vector<2x16x128xf32>
    %169 = arith.mulf %168, %162 : vector<2x16x128xf32>
    %170 = arith.addf %157, %169 : vector<2x16x128xf32>
    %c1_i32_40 = arith.constant 1 : i32
    %171 = tpu.dynamic_rotate %17 by %c1_i32_40 dim 2 : vector<2x16x128xf32>, i32 -> vector<2x16x128xf32>
    %cst_41 = arith.constant 0.000000e+00 : f32
    %172 = vector.shape_cast %9 : vector<1x16x128xi1> to vector<1x16x128xi1>
    %173 = vector.broadcast %172 : vector<1x16x128xi1> to vector<2x16x128xi1>
    %174 = vector.broadcast %cst_41 : f32 to vector<2x16x128xf32>
    %175 = arith.select %173, %171, %174 : vector<2x16x128xi1>, vector<2x16x128xf32>
    %c12 = arith.constant 12 : index
    %176 = memref.load %arg2[%c12] : memref<36xf32, #tpu.memory_space<smem>>
    %177 = vector.broadcast %176 : f32 to vector<2x16x128xf32>
    %178 = arith.mulf %177, %175 : vector<2x16x128xf32>
    %179 = arith.addf %166, %178 : vector<2x16x128xf32>
    %c30 = arith.constant 30 : index
    %180 = memref.load %arg2[%c30] : memref<36xf32, #tpu.memory_space<smem>>
    %181 = vector.broadcast %180 : f32 to vector<2x16x128xf32>
    %182 = arith.mulf %181, %175 : vector<2x16x128xf32>
    %183 = arith.addf %170, %182 : vector<2x16x128xf32>
    %c13 = arith.constant 13 : index
    %184 = memref.load %arg2[%c13] : memref<36xf32, #tpu.memory_space<smem>>
    %185 = vector.broadcast %184 : f32 to vector<2x16x128xf32>
    %186 = arith.mulf %185, %17 : vector<2x16x128xf32>
    %187 = arith.addf %179, %186 : vector<2x16x128xf32>
    %c31 = arith.constant 31 : index
    %188 = memref.load %arg2[%c31] : memref<36xf32, #tpu.memory_space<smem>>
    %189 = vector.broadcast %188 : f32 to vector<2x16x128xf32>
    %190 = arith.mulf %189, %17 : vector<2x16x128xf32>
    %191 = arith.addf %183, %190 : vector<2x16x128xf32>
    %c127_i32_42 = arith.constant 127 : i32
    %192 = tpu.dynamic_rotate %17 by %c127_i32_42 dim 2 : vector<2x16x128xf32>, i32 -> vector<2x16x128xf32>
    %cst_43 = arith.constant 0.000000e+00 : f32
    %193 = vector.shape_cast %7 : vector<1x16x128xi1> to vector<1x16x128xi1>
    %194 = vector.broadcast %193 : vector<1x16x128xi1> to vector<2x16x128xi1>
    %195 = vector.broadcast %cst_43 : f32 to vector<2x16x128xf32>
    %196 = arith.select %194, %192, %195 : vector<2x16x128xi1>, vector<2x16x128xf32>
    %c14 = arith.constant 14 : index
    %197 = memref.load %arg2[%c14] : memref<36xf32, #tpu.memory_space<smem>>
    %198 = vector.broadcast %197 : f32 to vector<2x16x128xf32>
    %199 = arith.mulf %198, %196 : vector<2x16x128xf32>
    %200 = arith.addf %187, %199 : vector<2x16x128xf32>
    %c32 = arith.constant 32 : index
    %201 = memref.load %arg2[%c32] : memref<36xf32, #tpu.memory_space<smem>>
    %202 = vector.broadcast %201 : f32 to vector<2x16x128xf32>
    %203 = arith.mulf %202, %196 : vector<2x16x128xf32>
    %204 = arith.addf %191, %203 : vector<2x16x128xf32>
    %c15_i32_44 = arith.constant 15 : i32
    %205 = tpu.dynamic_rotate %17 by %c15_i32_44 dim 1 : vector<2x16x128xf32>, i32 -> vector<2x16x128xf32>
    %cst_45 = arith.constant 0.000000e+00 : f32
    %206 = vector.shape_cast %3 : vector<1x16x128xi1> to vector<1x16x128xi1>
    %207 = vector.broadcast %206 : vector<1x16x128xi1> to vector<2x16x128xi1>
    %208 = vector.broadcast %cst_45 : f32 to vector<2x16x128xf32>
    %209 = arith.select %207, %205, %208 : vector<2x16x128xi1>, vector<2x16x128xf32>
    %c1_i32_46 = arith.constant 1 : i32
    %210 = tpu.dynamic_rotate %209 by %c1_i32_46 dim 2 : vector<2x16x128xf32>, i32 -> vector<2x16x128xf32>
    %cst_47 = arith.constant 0.000000e+00 : f32
    %211 = vector.shape_cast %9 : vector<1x16x128xi1> to vector<1x16x128xi1>
    %212 = vector.broadcast %211 : vector<1x16x128xi1> to vector<2x16x128xi1>
    %213 = vector.broadcast %cst_47 : f32 to vector<2x16x128xf32>
    %214 = arith.select %212, %210, %213 : vector<2x16x128xi1>, vector<2x16x128xf32>
    %c15 = arith.constant 15 : index
    %215 = memref.load %arg2[%c15] : memref<36xf32, #tpu.memory_space<smem>>
    %216 = vector.broadcast %215 : f32 to vector<2x16x128xf32>
    %217 = arith.mulf %216, %214 : vector<2x16x128xf32>
    %218 = arith.addf %200, %217 : vector<2x16x128xf32>
    %c33 = arith.constant 33 : index
    %219 = memref.load %arg2[%c33] : memref<36xf32, #tpu.memory_space<smem>>
    %220 = vector.broadcast %219 : f32 to vector<2x16x128xf32>
    %221 = arith.mulf %220, %214 : vector<2x16x128xf32>
    %222 = arith.addf %204, %221 : vector<2x16x128xf32>
    %c16 = arith.constant 16 : index
    %223 = memref.load %arg2[%c16] : memref<36xf32, #tpu.memory_space<smem>>
    %224 = vector.broadcast %223 : f32 to vector<2x16x128xf32>
    %225 = arith.mulf %224, %209 : vector<2x16x128xf32>
    %226 = arith.addf %218, %225 : vector<2x16x128xf32>
    %c34 = arith.constant 34 : index
    %227 = memref.load %arg2[%c34] : memref<36xf32, #tpu.memory_space<smem>>
    %228 = vector.broadcast %227 : f32 to vector<2x16x128xf32>
    %229 = arith.mulf %228, %209 : vector<2x16x128xf32>
    %230 = arith.addf %222, %229 : vector<2x16x128xf32>
    %c127_i32_48 = arith.constant 127 : i32
    %231 = tpu.dynamic_rotate %209 by %c127_i32_48 dim 2 : vector<2x16x128xf32>, i32 -> vector<2x16x128xf32>
    %cst_49 = arith.constant 0.000000e+00 : f32
    %232 = vector.shape_cast %7 : vector<1x16x128xi1> to vector<1x16x128xi1>
    %233 = vector.broadcast %232 : vector<1x16x128xi1> to vector<2x16x128xi1>
    %234 = vector.broadcast %cst_49 : f32 to vector<2x16x128xf32>
    %235 = arith.select %233, %231, %234 : vector<2x16x128xi1>, vector<2x16x128xf32>
    %c17 = arith.constant 17 : index
    %236 = memref.load %arg2[%c17] : memref<36xf32, #tpu.memory_space<smem>>
    %237 = vector.broadcast %236 : f32 to vector<2x16x128xf32>
    %238 = arith.mulf %237, %235 : vector<2x16x128xf32>
    %239 = arith.addf %226, %238 : vector<2x16x128xf32>
    %c35 = arith.constant 35 : index
    %240 = memref.load %arg2[%c35] : memref<36xf32, #tpu.memory_space<smem>>
    %241 = vector.broadcast %240 : f32 to vector<2x16x128xf32>
    %242 = arith.mulf %241, %235 : vector<2x16x128xf32>
    %243 = arith.addf %230, %242 : vector<2x16x128xf32>
    %244 = arith.addf %11, %239 : vector<2x16x128xf32>
    %245 = arith.addf %13, %243 : vector<2x16x128xf32>
    %cst_50 = arith.constant 0.000000e+00 : f32
    %246 = vector.broadcast %cst_50 : f32 to vector<2x16x128xf32>
    %cst_51 = arith.constant 0.000000e+00 : f32
    %247 = vector.broadcast %cst_51 : f32 to vector<2x16x128xf32>
    %cst_52 = arith.constant 0.000000e+00 : f32
    %248 = vector.broadcast %cst_52 : f32 to vector<2x16x128xf32>
    %cst_53 = arith.constant 0.000000e+00 : f32
    %249 = vector.broadcast %cst_53 : f32 to vector<2x16x128xf32>
    %c1_i32_54 = arith.constant 1 : i32
    %250 = tpu.dynamic_rotate %244 by %c1_i32_54 dim 1 : vector<2x16x128xf32>, i32 -> vector<2x16x128xf32>
    %cst_55 = arith.constant 0.000000e+00 : f32
    %251 = vector.shape_cast %5 : vector<1x16x128xi1> to vector<1x16x128xi1>
    %252 = vector.broadcast %251 : vector<1x16x128xi1> to vector<2x16x128xi1>
    %253 = vector.broadcast %cst_55 : f32 to vector<2x16x128xf32>
    %254 = arith.select %252, %250, %253 : vector<2x16x128xi1>, vector<2x16x128xf32>
    %c1_i32_56 = arith.constant 1 : i32
    %255 = tpu.dynamic_rotate %254 by %c1_i32_56 dim 2 : vector<2x16x128xf32>, i32 -> vector<2x16x128xf32>
    %cst_57 = arith.constant 0.000000e+00 : f32
    %256 = vector.shape_cast %9 : vector<1x16x128xi1> to vector<1x16x128xi1>
    %257 = vector.broadcast %256 : vector<1x16x128xi1> to vector<2x16x128xi1>
    %258 = vector.broadcast %cst_57 : f32 to vector<2x16x128xf32>
    %259 = arith.select %257, %255, %258 : vector<2x16x128xi1>, vector<2x16x128xf32>
    %c0_58 = arith.constant 0 : index
    %260 = memref.load %arg4[%c0_58] : memref<36xf32, #tpu.memory_space<smem>>
    %261 = vector.broadcast %260 : f32 to vector<2x16x128xf32>
    %262 = arith.mulf %261, %259 : vector<2x16x128xf32>
    %263 = arith.addf %246, %262 : vector<2x16x128xf32>
    %c18_59 = arith.constant 18 : index
    %264 = memref.load %arg4[%c18_59] : memref<36xf32, #tpu.memory_space<smem>>
    %265 = vector.broadcast %264 : f32 to vector<2x16x128xf32>
    %266 = arith.mulf %265, %259 : vector<2x16x128xf32>
    %267 = arith.addf %247, %266 : vector<2x16x128xf32>
    %c0_60 = arith.constant 0 : index
    %268 = memref.load %arg3[%c0_60] : memref<36xf32, #tpu.memory_space<smem>>
    %269 = vector.broadcast %268 : f32 to vector<2x16x128xf32>
    %270 = arith.mulf %269, %259 : vector<2x16x128xf32>
    %271 = arith.addf %248, %270 : vector<2x16x128xf32>
    %c18_61 = arith.constant 18 : index
    %272 = memref.load %arg3[%c18_61] : memref<36xf32, #tpu.memory_space<smem>>
    %273 = vector.broadcast %272 : f32 to vector<2x16x128xf32>
    %274 = arith.mulf %273, %259 : vector<2x16x128xf32>
    %275 = arith.addf %249, %274 : vector<2x16x128xf32>
    %c1_62 = arith.constant 1 : index
    %276 = memref.load %arg4[%c1_62] : memref<36xf32, #tpu.memory_space<smem>>
    %277 = vector.broadcast %276 : f32 to vector<2x16x128xf32>
    %278 = arith.mulf %277, %254 : vector<2x16x128xf32>
    %279 = arith.addf %263, %278 : vector<2x16x128xf32>
    %c19_63 = arith.constant 19 : index
    %280 = memref.load %arg4[%c19_63] : memref<36xf32, #tpu.memory_space<smem>>
    %281 = vector.broadcast %280 : f32 to vector<2x16x128xf32>
    %282 = arith.mulf %281, %254 : vector<2x16x128xf32>
    %283 = arith.addf %267, %282 : vector<2x16x128xf32>
    %c1_64 = arith.constant 1 : index
    %284 = memref.load %arg3[%c1_64] : memref<36xf32, #tpu.memory_space<smem>>
    %285 = vector.broadcast %284 : f32 to vector<2x16x128xf32>
    %286 = arith.mulf %285, %254 : vector<2x16x128xf32>
    %287 = arith.addf %271, %286 : vector<2x16x128xf32>
    %c19_65 = arith.constant 19 : index
    %288 = memref.load %arg3[%c19_65] : memref<36xf32, #tpu.memory_space<smem>>
    %289 = vector.broadcast %288 : f32 to vector<2x16x128xf32>
    %290 = arith.mulf %289, %254 : vector<2x16x128xf32>
    %291 = arith.addf %275, %290 : vector<2x16x128xf32>
    %c127_i32_66 = arith.constant 127 : i32
    %292 = tpu.dynamic_rotate %254 by %c127_i32_66 dim 2 : vector<2x16x128xf32>, i32 -> vector<2x16x128xf32>
    %cst_67 = arith.constant 0.000000e+00 : f32
    %293 = vector.shape_cast %7 : vector<1x16x128xi1> to vector<1x16x128xi1>
    %294 = vector.broadcast %293 : vector<1x16x128xi1> to vector<2x16x128xi1>
    %295 = vector.broadcast %cst_67 : f32 to vector<2x16x128xf32>
    %296 = arith.select %294, %292, %295 : vector<2x16x128xi1>, vector<2x16x128xf32>
    %c2_68 = arith.constant 2 : index
    %297 = memref.load %arg4[%c2_68] : memref<36xf32, #tpu.memory_space<smem>>
    %298 = vector.broadcast %297 : f32 to vector<2x16x128xf32>
    %299 = arith.mulf %298, %296 : vector<2x16x128xf32>
    %300 = arith.addf %279, %299 : vector<2x16x128xf32>
    %c20_69 = arith.constant 20 : index
    %301 = memref.load %arg4[%c20_69] : memref<36xf32, #tpu.memory_space<smem>>
    %302 = vector.broadcast %301 : f32 to vector<2x16x128xf32>
    %303 = arith.mulf %302, %296 : vector<2x16x128xf32>
    %304 = arith.addf %283, %303 : vector<2x16x128xf32>
    %c2_70 = arith.constant 2 : index
    %305 = memref.load %arg3[%c2_70] : memref<36xf32, #tpu.memory_space<smem>>
    %306 = vector.broadcast %305 : f32 to vector<2x16x128xf32>
    %307 = arith.mulf %306, %296 : vector<2x16x128xf32>
    %308 = arith.addf %287, %307 : vector<2x16x128xf32>
    %c20_71 = arith.constant 20 : index
    %309 = memref.load %arg3[%c20_71] : memref<36xf32, #tpu.memory_space<smem>>
    %310 = vector.broadcast %309 : f32 to vector<2x16x128xf32>
    %311 = arith.mulf %310, %296 : vector<2x16x128xf32>
    %312 = arith.addf %291, %311 : vector<2x16x128xf32>
    %c1_i32_72 = arith.constant 1 : i32
    %313 = tpu.dynamic_rotate %244 by %c1_i32_72 dim 2 : vector<2x16x128xf32>, i32 -> vector<2x16x128xf32>
    %cst_73 = arith.constant 0.000000e+00 : f32
    %314 = vector.shape_cast %9 : vector<1x16x128xi1> to vector<1x16x128xi1>
    %315 = vector.broadcast %314 : vector<1x16x128xi1> to vector<2x16x128xi1>
    %316 = vector.broadcast %cst_73 : f32 to vector<2x16x128xf32>
    %317 = arith.select %315, %313, %316 : vector<2x16x128xi1>, vector<2x16x128xf32>
    %c3_74 = arith.constant 3 : index
    %318 = memref.load %arg4[%c3_74] : memref<36xf32, #tpu.memory_space<smem>>
    %319 = vector.broadcast %318 : f32 to vector<2x16x128xf32>
    %320 = arith.mulf %319, %317 : vector<2x16x128xf32>
    %321 = arith.addf %300, %320 : vector<2x16x128xf32>
    %c21_75 = arith.constant 21 : index
    %322 = memref.load %arg4[%c21_75] : memref<36xf32, #tpu.memory_space<smem>>
    %323 = vector.broadcast %322 : f32 to vector<2x16x128xf32>
    %324 = arith.mulf %323, %317 : vector<2x16x128xf32>
    %325 = arith.addf %304, %324 : vector<2x16x128xf32>
    %c3_76 = arith.constant 3 : index
    %326 = memref.load %arg3[%c3_76] : memref<36xf32, #tpu.memory_space<smem>>
    %327 = vector.broadcast %326 : f32 to vector<2x16x128xf32>
    %328 = arith.mulf %327, %317 : vector<2x16x128xf32>
    %329 = arith.addf %308, %328 : vector<2x16x128xf32>
    %c21_77 = arith.constant 21 : index
    %330 = memref.load %arg3[%c21_77] : memref<36xf32, #tpu.memory_space<smem>>
    %331 = vector.broadcast %330 : f32 to vector<2x16x128xf32>
    %332 = arith.mulf %331, %317 : vector<2x16x128xf32>
    %333 = arith.addf %312, %332 : vector<2x16x128xf32>
    %c4_78 = arith.constant 4 : index
    %334 = memref.load %arg4[%c4_78] : memref<36xf32, #tpu.memory_space<smem>>
    %335 = vector.broadcast %334 : f32 to vector<2x16x128xf32>
    %336 = arith.mulf %335, %244 : vector<2x16x128xf32>
    %337 = arith.addf %321, %336 : vector<2x16x128xf32>
    %c22_79 = arith.constant 22 : index
    %338 = memref.load %arg4[%c22_79] : memref<36xf32, #tpu.memory_space<smem>>
    %339 = vector.broadcast %338 : f32 to vector<2x16x128xf32>
    %340 = arith.mulf %339, %244 : vector<2x16x128xf32>
    %341 = arith.addf %325, %340 : vector<2x16x128xf32>
    %c4_80 = arith.constant 4 : index
    %342 = memref.load %arg3[%c4_80] : memref<36xf32, #tpu.memory_space<smem>>
    %343 = vector.broadcast %342 : f32 to vector<2x16x128xf32>
    %344 = arith.mulf %343, %244 : vector<2x16x128xf32>
    %345 = arith.addf %329, %344 : vector<2x16x128xf32>
    %c22_81 = arith.constant 22 : index
    %346 = memref.load %arg3[%c22_81] : memref<36xf32, #tpu.memory_space<smem>>
    %347 = vector.broadcast %346 : f32 to vector<2x16x128xf32>
    %348 = arith.mulf %347, %244 : vector<2x16x128xf32>
    %349 = arith.addf %333, %348 : vector<2x16x128xf32>
    %c127_i32_82 = arith.constant 127 : i32
    %350 = tpu.dynamic_rotate %244 by %c127_i32_82 dim 2 : vector<2x16x128xf32>, i32 -> vector<2x16x128xf32>
    %cst_83 = arith.constant 0.000000e+00 : f32
    %351 = vector.shape_cast %7 : vector<1x16x128xi1> to vector<1x16x128xi1>
    %352 = vector.broadcast %351 : vector<1x16x128xi1> to vector<2x16x128xi1>
    %353 = vector.broadcast %cst_83 : f32 to vector<2x16x128xf32>
    %354 = arith.select %352, %350, %353 : vector<2x16x128xi1>, vector<2x16x128xf32>
    %c5_84 = arith.constant 5 : index
    %355 = memref.load %arg4[%c5_84] : memref<36xf32, #tpu.memory_space<smem>>
    %356 = vector.broadcast %355 : f32 to vector<2x16x128xf32>
    %357 = arith.mulf %356, %354 : vector<2x16x128xf32>
    %358 = arith.addf %337, %357 : vector<2x16x128xf32>
    %c23_85 = arith.constant 23 : index
    %359 = memref.load %arg4[%c23_85] : memref<36xf32, #tpu.memory_space<smem>>
    %360 = vector.broadcast %359 : f32 to vector<2x16x128xf32>
    %361 = arith.mulf %360, %354 : vector<2x16x128xf32>
    %362 = arith.addf %341, %361 : vector<2x16x128xf32>
    %c5_86 = arith.constant 5 : index
    %363 = memref.load %arg3[%c5_86] : memref<36xf32, #tpu.memory_space<smem>>
    %364 = vector.broadcast %363 : f32 to vector<2x16x128xf32>
    %365 = arith.mulf %364, %354 : vector<2x16x128xf32>
    %366 = arith.addf %345, %365 : vector<2x16x128xf32>
    %c23_87 = arith.constant 23 : index
    %367 = memref.load %arg3[%c23_87] : memref<36xf32, #tpu.memory_space<smem>>
    %368 = vector.broadcast %367 : f32 to vector<2x16x128xf32>
    %369 = arith.mulf %368, %354 : vector<2x16x128xf32>
    %370 = arith.addf %349, %369 : vector<2x16x128xf32>
    %c15_i32_88 = arith.constant 15 : i32
    %371 = tpu.dynamic_rotate %244 by %c15_i32_88 dim 1 : vector<2x16x128xf32>, i32 -> vector<2x16x128xf32>
    %cst_89 = arith.constant 0.000000e+00 : f32
    %372 = vector.shape_cast %3 : vector<1x16x128xi1> to vector<1x16x128xi1>
    %373 = vector.broadcast %372 : vector<1x16x128xi1> to vector<2x16x128xi1>
    %374 = vector.broadcast %cst_89 : f32 to vector<2x16x128xf32>
    %375 = arith.select %373, %371, %374 : vector<2x16x128xi1>, vector<2x16x128xf32>
    %c1_i32_90 = arith.constant 1 : i32
    %376 = tpu.dynamic_rotate %375 by %c1_i32_90 dim 2 : vector<2x16x128xf32>, i32 -> vector<2x16x128xf32>
    %cst_91 = arith.constant 0.000000e+00 : f32
    %377 = vector.shape_cast %9 : vector<1x16x128xi1> to vector<1x16x128xi1>
    %378 = vector.broadcast %377 : vector<1x16x128xi1> to vector<2x16x128xi1>
    %379 = vector.broadcast %cst_91 : f32 to vector<2x16x128xf32>
    %380 = arith.select %378, %376, %379 : vector<2x16x128xi1>, vector<2x16x128xf32>
    %c6_92 = arith.constant 6 : index
    %381 = memref.load %arg4[%c6_92] : memref<36xf32, #tpu.memory_space<smem>>
    %382 = vector.broadcast %381 : f32 to vector<2x16x128xf32>
    %383 = arith.mulf %382, %380 : vector<2x16x128xf32>
    %384 = arith.addf %358, %383 : vector<2x16x128xf32>
    %c24_93 = arith.constant 24 : index
    %385 = memref.load %arg4[%c24_93] : memref<36xf32, #tpu.memory_space<smem>>
    %386 = vector.broadcast %385 : f32 to vector<2x16x128xf32>
    %387 = arith.mulf %386, %380 : vector<2x16x128xf32>
    %388 = arith.addf %362, %387 : vector<2x16x128xf32>
    %c6_94 = arith.constant 6 : index
    %389 = memref.load %arg3[%c6_94] : memref<36xf32, #tpu.memory_space<smem>>
    %390 = vector.broadcast %389 : f32 to vector<2x16x128xf32>
    %391 = arith.mulf %390, %380 : vector<2x16x128xf32>
    %392 = arith.addf %366, %391 : vector<2x16x128xf32>
    %c24_95 = arith.constant 24 : index
    %393 = memref.load %arg3[%c24_95] : memref<36xf32, #tpu.memory_space<smem>>
    %394 = vector.broadcast %393 : f32 to vector<2x16x128xf32>
    %395 = arith.mulf %394, %380 : vector<2x16x128xf32>
    %396 = arith.addf %370, %395 : vector<2x16x128xf32>
    %c7_96 = arith.constant 7 : index
    %397 = memref.load %arg4[%c7_96] : memref<36xf32, #tpu.memory_space<smem>>
    %398 = vector.broadcast %397 : f32 to vector<2x16x128xf32>
    %399 = arith.mulf %398, %375 : vector<2x16x128xf32>
    %400 = arith.addf %384, %399 : vector<2x16x128xf32>
    %c25_97 = arith.constant 25 : index
    %401 = memref.load %arg4[%c25_97] : memref<36xf32, #tpu.memory_space<smem>>
    %402 = vector.broadcast %401 : f32 to vector<2x16x128xf32>
    %403 = arith.mulf %402, %375 : vector<2x16x128xf32>
    %404 = arith.addf %388, %403 : vector<2x16x128xf32>
    %c7_98 = arith.constant 7 : index
    %405 = memref.load %arg3[%c7_98] : memref<36xf32, #tpu.memory_space<smem>>
    %406 = vector.broadcast %405 : f32 to vector<2x16x128xf32>
    %407 = arith.mulf %406, %375 : vector<2x16x128xf32>
    %408 = arith.addf %392, %407 : vector<2x16x128xf32>
    %c25_99 = arith.constant 25 : index
    %409 = memref.load %arg3[%c25_99] : memref<36xf32, #tpu.memory_space<smem>>
    %410 = vector.broadcast %409 : f32 to vector<2x16x128xf32>
    %411 = arith.mulf %410, %375 : vector<2x16x128xf32>
    %412 = arith.addf %396, %411 : vector<2x16x128xf32>
    %c127_i32_100 = arith.constant 127 : i32
    %413 = tpu.dynamic_rotate %375 by %c127_i32_100 dim 2 : vector<2x16x128xf32>, i32 -> vector<2x16x128xf32>
    %cst_101 = arith.constant 0.000000e+00 : f32
    %414 = vector.shape_cast %7 : vector<1x16x128xi1> to vector<1x16x128xi1>
    %415 = vector.broadcast %414 : vector<1x16x128xi1> to vector<2x16x128xi1>
    %416 = vector.broadcast %cst_101 : f32 to vector<2x16x128xf32>
    %417 = arith.select %415, %413, %416 : vector<2x16x128xi1>, vector<2x16x128xf32>
    %c8_102 = arith.constant 8 : index
    %418 = memref.load %arg4[%c8_102] : memref<36xf32, #tpu.memory_space<smem>>
    %419 = vector.broadcast %418 : f32 to vector<2x16x128xf32>
    %420 = arith.mulf %419, %417 : vector<2x16x128xf32>
    %421 = arith.addf %400, %420 : vector<2x16x128xf32>
    %c26_103 = arith.constant 26 : index
    %422 = memref.load %arg4[%c26_103] : memref<36xf32, #tpu.memory_space<smem>>
    %423 = vector.broadcast %422 : f32 to vector<2x16x128xf32>
    %424 = arith.mulf %423, %417 : vector<2x16x128xf32>
    %425 = arith.addf %404, %424 : vector<2x16x128xf32>
    %c8_104 = arith.constant 8 : index
    %426 = memref.load %arg3[%c8_104] : memref<36xf32, #tpu.memory_space<smem>>
    %427 = vector.broadcast %426 : f32 to vector<2x16x128xf32>
    %428 = arith.mulf %427, %417 : vector<2x16x128xf32>
    %429 = arith.addf %408, %428 : vector<2x16x128xf32>
    %c26_105 = arith.constant 26 : index
    %430 = memref.load %arg3[%c26_105] : memref<36xf32, #tpu.memory_space<smem>>
    %431 = vector.broadcast %430 : f32 to vector<2x16x128xf32>
    %432 = arith.mulf %431, %417 : vector<2x16x128xf32>
    %433 = arith.addf %412, %432 : vector<2x16x128xf32>
    %c1_i32_106 = arith.constant 1 : i32
    %434 = tpu.dynamic_rotate %245 by %c1_i32_106 dim 1 : vector<2x16x128xf32>, i32 -> vector<2x16x128xf32>
    %cst_107 = arith.constant 0.000000e+00 : f32
    %435 = vector.shape_cast %5 : vector<1x16x128xi1> to vector<1x16x128xi1>
    %436 = vector.broadcast %435 : vector<1x16x128xi1> to vector<2x16x128xi1>
    %437 = vector.broadcast %cst_107 : f32 to vector<2x16x128xf32>
    %438 = arith.select %436, %434, %437 : vector<2x16x128xi1>, vector<2x16x128xf32>
    %c1_i32_108 = arith.constant 1 : i32
    %439 = tpu.dynamic_rotate %438 by %c1_i32_108 dim 2 : vector<2x16x128xf32>, i32 -> vector<2x16x128xf32>
    %cst_109 = arith.constant 0.000000e+00 : f32
    %440 = vector.shape_cast %9 : vector<1x16x128xi1> to vector<1x16x128xi1>
    %441 = vector.broadcast %440 : vector<1x16x128xi1> to vector<2x16x128xi1>
    %442 = vector.broadcast %cst_109 : f32 to vector<2x16x128xf32>
    %443 = arith.select %441, %439, %442 : vector<2x16x128xi1>, vector<2x16x128xf32>
    %c9_110 = arith.constant 9 : index
    %444 = memref.load %arg4[%c9_110] : memref<36xf32, #tpu.memory_space<smem>>
    %445 = vector.broadcast %444 : f32 to vector<2x16x128xf32>
    %446 = arith.mulf %445, %443 : vector<2x16x128xf32>
    %447 = arith.addf %421, %446 : vector<2x16x128xf32>
    %c27_111 = arith.constant 27 : index
    %448 = memref.load %arg4[%c27_111] : memref<36xf32, #tpu.memory_space<smem>>
    %449 = vector.broadcast %448 : f32 to vector<2x16x128xf32>
    %450 = arith.mulf %449, %443 : vector<2x16x128xf32>
    %451 = arith.addf %425, %450 : vector<2x16x128xf32>
    %c9_112 = arith.constant 9 : index
    %452 = memref.load %arg3[%c9_112] : memref<36xf32, #tpu.memory_space<smem>>
    %453 = vector.broadcast %452 : f32 to vector<2x16x128xf32>
    %454 = arith.mulf %453, %443 : vector<2x16x128xf32>
    %455 = arith.addf %429, %454 : vector<2x16x128xf32>
    %c27_113 = arith.constant 27 : index
    %456 = memref.load %arg3[%c27_113] : memref<36xf32, #tpu.memory_space<smem>>
    %457 = vector.broadcast %456 : f32 to vector<2x16x128xf32>
    %458 = arith.mulf %457, %443 : vector<2x16x128xf32>
    %459 = arith.addf %433, %458 : vector<2x16x128xf32>
    %c10_114 = arith.constant 10 : index
    %460 = memref.load %arg4[%c10_114] : memref<36xf32, #tpu.memory_space<smem>>
    %461 = vector.broadcast %460 : f32 to vector<2x16x128xf32>
    %462 = arith.mulf %461, %438 : vector<2x16x128xf32>
    %463 = arith.addf %447, %462 : vector<2x16x128xf32>
    %c28_115 = arith.constant 28 : index
    %464 = memref.load %arg4[%c28_115] : memref<36xf32, #tpu.memory_space<smem>>
    %465 = vector.broadcast %464 : f32 to vector<2x16x128xf32>
    %466 = arith.mulf %465, %438 : vector<2x16x128xf32>
    %467 = arith.addf %451, %466 : vector<2x16x128xf32>
    %c10_116 = arith.constant 10 : index
    %468 = memref.load %arg3[%c10_116] : memref<36xf32, #tpu.memory_space<smem>>
    %469 = vector.broadcast %468 : f32 to vector<2x16x128xf32>
    %470 = arith.mulf %469, %438 : vector<2x16x128xf32>
    %471 = arith.addf %455, %470 : vector<2x16x128xf32>
    %c28_117 = arith.constant 28 : index
    %472 = memref.load %arg3[%c28_117] : memref<36xf32, #tpu.memory_space<smem>>
    %473 = vector.broadcast %472 : f32 to vector<2x16x128xf32>
    %474 = arith.mulf %473, %438 : vector<2x16x128xf32>
    %475 = arith.addf %459, %474 : vector<2x16x128xf32>
    %c127_i32_118 = arith.constant 127 : i32
    %476 = tpu.dynamic_rotate %438 by %c127_i32_118 dim 2 : vector<2x16x128xf32>, i32 -> vector<2x16x128xf32>
    %cst_119 = arith.constant 0.000000e+00 : f32
    %477 = vector.shape_cast %7 : vector<1x16x128xi1> to vector<1x16x128xi1>
    %478 = vector.broadcast %477 : vector<1x16x128xi1> to vector<2x16x128xi1>
    %479 = vector.broadcast %cst_119 : f32 to vector<2x16x128xf32>
    %480 = arith.select %478, %476, %479 : vector<2x16x128xi1>, vector<2x16x128xf32>
    %c11_120 = arith.constant 11 : index
    %481 = memref.load %arg4[%c11_120] : memref<36xf32, #tpu.memory_space<smem>>
    %482 = vector.broadcast %481 : f32 to vector<2x16x128xf32>
    %483 = arith.mulf %482, %480 : vector<2x16x128xf32>
    %484 = arith.addf %463, %483 : vector<2x16x128xf32>
    %c29_121 = arith.constant 29 : index
    %485 = memref.load %arg4[%c29_121] : memref<36xf32, #tpu.memory_space<smem>>
    %486 = vector.broadcast %485 : f32 to vector<2x16x128xf32>
    %487 = arith.mulf %486, %480 : vector<2x16x128xf32>
    %488 = arith.addf %467, %487 : vector<2x16x128xf32>
    %c11_122 = arith.constant 11 : index
    %489 = memref.load %arg3[%c11_122] : memref<36xf32, #tpu.memory_space<smem>>
    %490 = vector.broadcast %489 : f32 to vector<2x16x128xf32>
    %491 = arith.mulf %490, %480 : vector<2x16x128xf32>
    %492 = arith.addf %471, %491 : vector<2x16x128xf32>
    %c29_123 = arith.constant 29 : index
    %493 = memref.load %arg3[%c29_123] : memref<36xf32, #tpu.memory_space<smem>>
    %494 = vector.broadcast %493 : f32 to vector<2x16x128xf32>
    %495 = arith.mulf %494, %480 : vector<2x16x128xf32>
    %496 = arith.addf %475, %495 : vector<2x16x128xf32>
    %c1_i32_124 = arith.constant 1 : i32
    %497 = tpu.dynamic_rotate %245 by %c1_i32_124 dim 2 : vector<2x16x128xf32>, i32 -> vector<2x16x128xf32>
    %cst_125 = arith.constant 0.000000e+00 : f32
    %498 = vector.shape_cast %9 : vector<1x16x128xi1> to vector<1x16x128xi1>
    %499 = vector.broadcast %498 : vector<1x16x128xi1> to vector<2x16x128xi1>
    %500 = vector.broadcast %cst_125 : f32 to vector<2x16x128xf32>
    %501 = arith.select %499, %497, %500 : vector<2x16x128xi1>, vector<2x16x128xf32>
    %c12_126 = arith.constant 12 : index
    %502 = memref.load %arg4[%c12_126] : memref<36xf32, #tpu.memory_space<smem>>
    %503 = vector.broadcast %502 : f32 to vector<2x16x128xf32>
    %504 = arith.mulf %503, %501 : vector<2x16x128xf32>
    %505 = arith.addf %484, %504 : vector<2x16x128xf32>
    %c30_127 = arith.constant 30 : index
    %506 = memref.load %arg4[%c30_127] : memref<36xf32, #tpu.memory_space<smem>>
    %507 = vector.broadcast %506 : f32 to vector<2x16x128xf32>
    %508 = arith.mulf %507, %501 : vector<2x16x128xf32>
    %509 = arith.addf %488, %508 : vector<2x16x128xf32>
    %c12_128 = arith.constant 12 : index
    %510 = memref.load %arg3[%c12_128] : memref<36xf32, #tpu.memory_space<smem>>
    %511 = vector.broadcast %510 : f32 to vector<2x16x128xf32>
    %512 = arith.mulf %511, %501 : vector<2x16x128xf32>
    %513 = arith.addf %492, %512 : vector<2x16x128xf32>
    %c30_129 = arith.constant 30 : index
    %514 = memref.load %arg3[%c30_129] : memref<36xf32, #tpu.memory_space<smem>>
    %515 = vector.broadcast %514 : f32 to vector<2x16x128xf32>
    %516 = arith.mulf %515, %501 : vector<2x16x128xf32>
    %517 = arith.addf %496, %516 : vector<2x16x128xf32>
    %c13_130 = arith.constant 13 : index
    %518 = memref.load %arg4[%c13_130] : memref<36xf32, #tpu.memory_space<smem>>
    %519 = vector.broadcast %518 : f32 to vector<2x16x128xf32>
    %520 = arith.mulf %519, %245 : vector<2x16x128xf32>
    %521 = arith.addf %505, %520 : vector<2x16x128xf32>
    %c31_131 = arith.constant 31 : index
    %522 = memref.load %arg4[%c31_131] : memref<36xf32, #tpu.memory_space<smem>>
    %523 = vector.broadcast %522 : f32 to vector<2x16x128xf32>
    %524 = arith.mulf %523, %245 : vector<2x16x128xf32>
    %525 = arith.addf %509, %524 : vector<2x16x128xf32>
    %c13_132 = arith.constant 13 : index
    %526 = memref.load %arg3[%c13_132] : memref<36xf32, #tpu.memory_space<smem>>
    %527 = vector.broadcast %526 : f32 to vector<2x16x128xf32>
    %528 = arith.mulf %527, %245 : vector<2x16x128xf32>
    %529 = arith.addf %513, %528 : vector<2x16x128xf32>
    %c31_133 = arith.constant 31 : index
    %530 = memref.load %arg3[%c31_133] : memref<36xf32, #tpu.memory_space<smem>>
    %531 = vector.broadcast %530 : f32 to vector<2x16x128xf32>
    %532 = arith.mulf %531, %245 : vector<2x16x128xf32>
    %533 = arith.addf %517, %532 : vector<2x16x128xf32>
    %c127_i32_134 = arith.constant 127 : i32
    %534 = tpu.dynamic_rotate %245 by %c127_i32_134 dim 2 : vector<2x16x128xf32>, i32 -> vector<2x16x128xf32>
    %cst_135 = arith.constant 0.000000e+00 : f32
    %535 = vector.shape_cast %7 : vector<1x16x128xi1> to vector<1x16x128xi1>
    %536 = vector.broadcast %535 : vector<1x16x128xi1> to vector<2x16x128xi1>
    %537 = vector.broadcast %cst_135 : f32 to vector<2x16x128xf32>
    %538 = arith.select %536, %534, %537 : vector<2x16x128xi1>, vector<2x16x128xf32>
    %c14_136 = arith.constant 14 : index
    %539 = memref.load %arg4[%c14_136] : memref<36xf32, #tpu.memory_space<smem>>
    %540 = vector.broadcast %539 : f32 to vector<2x16x128xf32>
    %541 = arith.mulf %540, %538 : vector<2x16x128xf32>
    %542 = arith.addf %521, %541 : vector<2x16x128xf32>
    %c32_137 = arith.constant 32 : index
    %543 = memref.load %arg4[%c32_137] : memref<36xf32, #tpu.memory_space<smem>>
    %544 = vector.broadcast %543 : f32 to vector<2x16x128xf32>
    %545 = arith.mulf %544, %538 : vector<2x16x128xf32>
    %546 = arith.addf %525, %545 : vector<2x16x128xf32>
    %c14_138 = arith.constant 14 : index
    %547 = memref.load %arg3[%c14_138] : memref<36xf32, #tpu.memory_space<smem>>
    %548 = vector.broadcast %547 : f32 to vector<2x16x128xf32>
    %549 = arith.mulf %548, %538 : vector<2x16x128xf32>
    %550 = arith.addf %529, %549 : vector<2x16x128xf32>
    %c32_139 = arith.constant 32 : index
    %551 = memref.load %arg3[%c32_139] : memref<36xf32, #tpu.memory_space<smem>>
    %552 = vector.broadcast %551 : f32 to vector<2x16x128xf32>
    %553 = arith.mulf %552, %538 : vector<2x16x128xf32>
    %554 = arith.addf %533, %553 : vector<2x16x128xf32>
    %c15_i32_140 = arith.constant 15 : i32
    %555 = tpu.dynamic_rotate %245 by %c15_i32_140 dim 1 : vector<2x16x128xf32>, i32 -> vector<2x16x128xf32>
    %cst_141 = arith.constant 0.000000e+00 : f32
    %556 = vector.shape_cast %3 : vector<1x16x128xi1> to vector<1x16x128xi1>
    %557 = vector.broadcast %556 : vector<1x16x128xi1> to vector<2x16x128xi1>
    %558 = vector.broadcast %cst_141 : f32 to vector<2x16x128xf32>
    %559 = arith.select %557, %555, %558 : vector<2x16x128xi1>, vector<2x16x128xf32>
    %c1_i32_142 = arith.constant 1 : i32
    %560 = tpu.dynamic_rotate %559 by %c1_i32_142 dim 2 : vector<2x16x128xf32>, i32 -> vector<2x16x128xf32>
    %cst_143 = arith.constant 0.000000e+00 : f32
    %561 = vector.shape_cast %9 : vector<1x16x128xi1> to vector<1x16x128xi1>
    %562 = vector.broadcast %561 : vector<1x16x128xi1> to vector<2x16x128xi1>
    %563 = vector.broadcast %cst_143 : f32 to vector<2x16x128xf32>
    %564 = arith.select %562, %560, %563 : vector<2x16x128xi1>, vector<2x16x128xf32>
    %c15_144 = arith.constant 15 : index
    %565 = memref.load %arg4[%c15_144] : memref<36xf32, #tpu.memory_space<smem>>
    %566 = vector.broadcast %565 : f32 to vector<2x16x128xf32>
    %567 = arith.mulf %566, %564 : vector<2x16x128xf32>
    %568 = arith.addf %542, %567 : vector<2x16x128xf32>
    %c33_145 = arith.constant 33 : index
    %569 = memref.load %arg4[%c33_145] : memref<36xf32, #tpu.memory_space<smem>>
    %570 = vector.broadcast %569 : f32 to vector<2x16x128xf32>
    %571 = arith.mulf %570, %564 : vector<2x16x128xf32>
    %572 = arith.addf %546, %571 : vector<2x16x128xf32>
    %c15_146 = arith.constant 15 : index
    %573 = memref.load %arg3[%c15_146] : memref<36xf32, #tpu.memory_space<smem>>
    %574 = vector.broadcast %573 : f32 to vector<2x16x128xf32>
    %575 = arith.mulf %574, %564 : vector<2x16x128xf32>
    %576 = arith.addf %550, %575 : vector<2x16x128xf32>
    %c33_147 = arith.constant 33 : index
    %577 = memref.load %arg3[%c33_147] : memref<36xf32, #tpu.memory_space<smem>>
    %578 = vector.broadcast %577 : f32 to vector<2x16x128xf32>
    %579 = arith.mulf %578, %564 : vector<2x16x128xf32>
    %580 = arith.addf %554, %579 : vector<2x16x128xf32>
    %c16_148 = arith.constant 16 : index
    %581 = memref.load %arg4[%c16_148] : memref<36xf32, #tpu.memory_space<smem>>
    %582 = vector.broadcast %581 : f32 to vector<2x16x128xf32>
    %583 = arith.mulf %582, %559 : vector<2x16x128xf32>
    %584 = arith.addf %568, %583 : vector<2x16x128xf32>
    %c34_149 = arith.constant 34 : index
    %585 = memref.load %arg4[%c34_149] : memref<36xf32, #tpu.memory_space<smem>>
    %586 = vector.broadcast %585 : f32 to vector<2x16x128xf32>
    %587 = arith.mulf %586, %559 : vector<2x16x128xf32>
    %588 = arith.addf %572, %587 : vector<2x16x128xf32>
    %c16_150 = arith.constant 16 : index
    %589 = memref.load %arg3[%c16_150] : memref<36xf32, #tpu.memory_space<smem>>
    %590 = vector.broadcast %589 : f32 to vector<2x16x128xf32>
    %591 = arith.mulf %590, %559 : vector<2x16x128xf32>
    %592 = arith.addf %576, %591 : vector<2x16x128xf32>
    %c34_151 = arith.constant 34 : index
    %593 = memref.load %arg3[%c34_151] : memref<36xf32, #tpu.memory_space<smem>>
    %594 = vector.broadcast %593 : f32 to vector<2x16x128xf32>
    %595 = arith.mulf %594, %559 : vector<2x16x128xf32>
    %596 = arith.addf %580, %595 : vector<2x16x128xf32>
    %c127_i32_152 = arith.constant 127 : i32
    %597 = tpu.dynamic_rotate %559 by %c127_i32_152 dim 2 : vector<2x16x128xf32>, i32 -> vector<2x16x128xf32>
    %cst_153 = arith.constant 0.000000e+00 : f32
    %598 = vector.shape_cast %7 : vector<1x16x128xi1> to vector<1x16x128xi1>
    %599 = vector.broadcast %598 : vector<1x16x128xi1> to vector<2x16x128xi1>
    %600 = vector.broadcast %cst_153 : f32 to vector<2x16x128xf32>
    %601 = arith.select %599, %597, %600 : vector<2x16x128xi1>, vector<2x16x128xf32>
    %c17_154 = arith.constant 17 : index
    %602 = memref.load %arg4[%c17_154] : memref<36xf32, #tpu.memory_space<smem>>
    %603 = vector.broadcast %602 : f32 to vector<2x16x128xf32>
    %604 = arith.mulf %603, %601 : vector<2x16x128xf32>
    %605 = arith.addf %584, %604 : vector<2x16x128xf32>
    %c35_155 = arith.constant 35 : index
    %606 = memref.load %arg4[%c35_155] : memref<36xf32, #tpu.memory_space<smem>>
    %607 = vector.broadcast %606 : f32 to vector<2x16x128xf32>
    %608 = arith.mulf %607, %601 : vector<2x16x128xf32>
    %609 = arith.addf %588, %608 : vector<2x16x128xf32>
    %c17_156 = arith.constant 17 : index
    %610 = memref.load %arg3[%c17_156] : memref<36xf32, #tpu.memory_space<smem>>
    %611 = vector.broadcast %610 : f32 to vector<2x16x128xf32>
    %612 = arith.mulf %611, %601 : vector<2x16x128xf32>
    %613 = arith.addf %592, %612 : vector<2x16x128xf32>
    %c35_157 = arith.constant 35 : index
    %614 = memref.load %arg3[%c35_157] : memref<36xf32, #tpu.memory_space<smem>>
    %615 = vector.broadcast %614 : f32 to vector<2x16x128xf32>
    %616 = arith.mulf %615, %601 : vector<2x16x128xf32>
    %617 = arith.addf %596, %616 : vector<2x16x128xf32>
    %c0_158 = arith.constant 0 : index
    %618 = memref.load %arg5[%c0_158] : memref<2xf32, #tpu.memory_space<smem>>
    %619 = vector.broadcast %618 : f32 to vector<2x16x128xf32>
    %620 = arith.addf %605, %619 : vector<2x16x128xf32>
    %c1_159 = arith.constant 1 : index
    %621 = memref.load %arg5[%c1_159] : memref<2xf32, #tpu.memory_space<smem>>
    %622 = vector.broadcast %621 : f32 to vector<2x16x128xf32>
    %623 = arith.addf %609, %622 : vector<2x16x128xf32>
    %cst_160 = arith.constant 1.000000e-01 : f32
    %624 = vector.broadcast %cst_160 : f32 to vector<2x16x128xf32>
    %625 = arith.mulf %624, %620 : vector<2x16x128xf32>
    %626 = arith.maximumf %620, %625 : vector<2x16x128xf32>
    %cst_161 = arith.constant 1.000000e-01 : f32
    %627 = vector.broadcast %cst_161 : f32 to vector<2x16x128xf32>
    %628 = arith.mulf %627, %623 : vector<2x16x128xf32>
    %629 = arith.maximumf %623, %628 : vector<2x16x128xf32>
    %cst_162 = arith.constant 0.000000e+00 : f32
    %630 = vector.broadcast %cst_162 : f32 to vector<2x16x128xf32>
    %cst_163 = arith.constant 0.000000e+00 : f32
    %631 = vector.broadcast %cst_163 : f32 to vector<2x16x128xf32>
    %c1_i32_164 = arith.constant 1 : i32
    %632 = tpu.dynamic_rotate %626 by %c1_i32_164 dim 1 : vector<2x16x128xf32>, i32 -> vector<2x16x128xf32>
    %cst_165 = arith.constant 0.000000e+00 : f32
    %633 = vector.shape_cast %5 : vector<1x16x128xi1> to vector<1x16x128xi1>
    %634 = vector.broadcast %633 : vector<1x16x128xi1> to vector<2x16x128xi1>
    %635 = vector.broadcast %cst_165 : f32 to vector<2x16x128xf32>
    %636 = arith.select %634, %632, %635 : vector<2x16x128xi1>, vector<2x16x128xf32>
    %c1_i32_166 = arith.constant 1 : i32
    %637 = tpu.dynamic_rotate %636 by %c1_i32_166 dim 2 : vector<2x16x128xf32>, i32 -> vector<2x16x128xf32>
    %cst_167 = arith.constant 0.000000e+00 : f32
    %638 = vector.shape_cast %9 : vector<1x16x128xi1> to vector<1x16x128xi1>
    %639 = vector.broadcast %638 : vector<1x16x128xi1> to vector<2x16x128xi1>
    %640 = vector.broadcast %cst_167 : f32 to vector<2x16x128xf32>
    %641 = arith.select %639, %637, %640 : vector<2x16x128xi1>, vector<2x16x128xf32>
    %c0_168 = arith.constant 0 : index
    %642 = memref.load %arg6[%c0_168] : memref<36xf32, #tpu.memory_space<smem>>
    %643 = vector.broadcast %642 : f32 to vector<2x16x128xf32>
    %644 = arith.mulf %643, %641 : vector<2x16x128xf32>
    %645 = arith.addf %630, %644 : vector<2x16x128xf32>
    %c18_169 = arith.constant 18 : index
    %646 = memref.load %arg6[%c18_169] : memref<36xf32, #tpu.memory_space<smem>>
    %647 = vector.broadcast %646 : f32 to vector<2x16x128xf32>
    %648 = arith.mulf %647, %641 : vector<2x16x128xf32>
    %649 = arith.addf %631, %648 : vector<2x16x128xf32>
    %c1_170 = arith.constant 1 : index
    %650 = memref.load %arg6[%c1_170] : memref<36xf32, #tpu.memory_space<smem>>
    %651 = vector.broadcast %650 : f32 to vector<2x16x128xf32>
    %652 = arith.mulf %651, %636 : vector<2x16x128xf32>
    %653 = arith.addf %645, %652 : vector<2x16x128xf32>
    %c19_171 = arith.constant 19 : index
    %654 = memref.load %arg6[%c19_171] : memref<36xf32, #tpu.memory_space<smem>>
    %655 = vector.broadcast %654 : f32 to vector<2x16x128xf32>
    %656 = arith.mulf %655, %636 : vector<2x16x128xf32>
    %657 = arith.addf %649, %656 : vector<2x16x128xf32>
    %c127_i32_172 = arith.constant 127 : i32
    %658 = tpu.dynamic_rotate %636 by %c127_i32_172 dim 2 : vector<2x16x128xf32>, i32 -> vector<2x16x128xf32>
    %cst_173 = arith.constant 0.000000e+00 : f32
    %659 = vector.shape_cast %7 : vector<1x16x128xi1> to vector<1x16x128xi1>
    %660 = vector.broadcast %659 : vector<1x16x128xi1> to vector<2x16x128xi1>
    %661 = vector.broadcast %cst_173 : f32 to vector<2x16x128xf32>
    %662 = arith.select %660, %658, %661 : vector<2x16x128xi1>, vector<2x16x128xf32>
    %c2_174 = arith.constant 2 : index
    %663 = memref.load %arg6[%c2_174] : memref<36xf32, #tpu.memory_space<smem>>
    %664 = vector.broadcast %663 : f32 to vector<2x16x128xf32>
    %665 = arith.mulf %664, %662 : vector<2x16x128xf32>
    %666 = arith.addf %653, %665 : vector<2x16x128xf32>
    %c20_175 = arith.constant 20 : index
    %667 = memref.load %arg6[%c20_175] : memref<36xf32, #tpu.memory_space<smem>>
    %668 = vector.broadcast %667 : f32 to vector<2x16x128xf32>
    %669 = arith.mulf %668, %662 : vector<2x16x128xf32>
    %670 = arith.addf %657, %669 : vector<2x16x128xf32>
    %c1_i32_176 = arith.constant 1 : i32
    %671 = tpu.dynamic_rotate %626 by %c1_i32_176 dim 2 : vector<2x16x128xf32>, i32 -> vector<2x16x128xf32>
    %cst_177 = arith.constant 0.000000e+00 : f32
    %672 = vector.shape_cast %9 : vector<1x16x128xi1> to vector<1x16x128xi1>
    %673 = vector.broadcast %672 : vector<1x16x128xi1> to vector<2x16x128xi1>
    %674 = vector.broadcast %cst_177 : f32 to vector<2x16x128xf32>
    %675 = arith.select %673, %671, %674 : vector<2x16x128xi1>, vector<2x16x128xf32>
    %c3_178 = arith.constant 3 : index
    %676 = memref.load %arg6[%c3_178] : memref<36xf32, #tpu.memory_space<smem>>
    %677 = vector.broadcast %676 : f32 to vector<2x16x128xf32>
    %678 = arith.mulf %677, %675 : vector<2x16x128xf32>
    %679 = arith.addf %666, %678 : vector<2x16x128xf32>
    %c21_179 = arith.constant 21 : index
    %680 = memref.load %arg6[%c21_179] : memref<36xf32, #tpu.memory_space<smem>>
    %681 = vector.broadcast %680 : f32 to vector<2x16x128xf32>
    %682 = arith.mulf %681, %675 : vector<2x16x128xf32>
    %683 = arith.addf %670, %682 : vector<2x16x128xf32>
    %c4_180 = arith.constant 4 : index
    %684 = memref.load %arg6[%c4_180] : memref<36xf32, #tpu.memory_space<smem>>
    %685 = vector.broadcast %684 : f32 to vector<2x16x128xf32>
    %686 = arith.mulf %685, %626 : vector<2x16x128xf32>
    %687 = arith.addf %679, %686 : vector<2x16x128xf32>
    %c22_181 = arith.constant 22 : index
    %688 = memref.load %arg6[%c22_181] : memref<36xf32, #tpu.memory_space<smem>>
    %689 = vector.broadcast %688 : f32 to vector<2x16x128xf32>
    %690 = arith.mulf %689, %626 : vector<2x16x128xf32>
    %691 = arith.addf %683, %690 : vector<2x16x128xf32>
    %c127_i32_182 = arith.constant 127 : i32
    %692 = tpu.dynamic_rotate %626 by %c127_i32_182 dim 2 : vector<2x16x128xf32>, i32 -> vector<2x16x128xf32>
    %cst_183 = arith.constant 0.000000e+00 : f32
    %693 = vector.shape_cast %7 : vector<1x16x128xi1> to vector<1x16x128xi1>
    %694 = vector.broadcast %693 : vector<1x16x128xi1> to vector<2x16x128xi1>
    %695 = vector.broadcast %cst_183 : f32 to vector<2x16x128xf32>
    %696 = arith.select %694, %692, %695 : vector<2x16x128xi1>, vector<2x16x128xf32>
    %c5_184 = arith.constant 5 : index
    %697 = memref.load %arg6[%c5_184] : memref<36xf32, #tpu.memory_space<smem>>
    %698 = vector.broadcast %697 : f32 to vector<2x16x128xf32>
    %699 = arith.mulf %698, %696 : vector<2x16x128xf32>
    %700 = arith.addf %687, %699 : vector<2x16x128xf32>
    %c23_185 = arith.constant 23 : index
    %701 = memref.load %arg6[%c23_185] : memref<36xf32, #tpu.memory_space<smem>>
    %702 = vector.broadcast %701 : f32 to vector<2x16x128xf32>
    %703 = arith.mulf %702, %696 : vector<2x16x128xf32>
    %704 = arith.addf %691, %703 : vector<2x16x128xf32>
    %c15_i32_186 = arith.constant 15 : i32
    %705 = tpu.dynamic_rotate %626 by %c15_i32_186 dim 1 : vector<2x16x128xf32>, i32 -> vector<2x16x128xf32>
    %cst_187 = arith.constant 0.000000e+00 : f32
    %706 = vector.shape_cast %3 : vector<1x16x128xi1> to vector<1x16x128xi1>
    %707 = vector.broadcast %706 : vector<1x16x128xi1> to vector<2x16x128xi1>
    %708 = vector.broadcast %cst_187 : f32 to vector<2x16x128xf32>
    %709 = arith.select %707, %705, %708 : vector<2x16x128xi1>, vector<2x16x128xf32>
    %c1_i32_188 = arith.constant 1 : i32
    %710 = tpu.dynamic_rotate %709 by %c1_i32_188 dim 2 : vector<2x16x128xf32>, i32 -> vector<2x16x128xf32>
    %cst_189 = arith.constant 0.000000e+00 : f32
    %711 = vector.shape_cast %9 : vector<1x16x128xi1> to vector<1x16x128xi1>
    %712 = vector.broadcast %711 : vector<1x16x128xi1> to vector<2x16x128xi1>
    %713 = vector.broadcast %cst_189 : f32 to vector<2x16x128xf32>
    %714 = arith.select %712, %710, %713 : vector<2x16x128xi1>, vector<2x16x128xf32>
    %c6_190 = arith.constant 6 : index
    %715 = memref.load %arg6[%c6_190] : memref<36xf32, #tpu.memory_space<smem>>
    %716 = vector.broadcast %715 : f32 to vector<2x16x128xf32>
    %717 = arith.mulf %716, %714 : vector<2x16x128xf32>
    %718 = arith.addf %700, %717 : vector<2x16x128xf32>
    %c24_191 = arith.constant 24 : index
    %719 = memref.load %arg6[%c24_191] : memref<36xf32, #tpu.memory_space<smem>>
    %720 = vector.broadcast %719 : f32 to vector<2x16x128xf32>
    %721 = arith.mulf %720, %714 : vector<2x16x128xf32>
    %722 = arith.addf %704, %721 : vector<2x16x128xf32>
    %c7_192 = arith.constant 7 : index
    %723 = memref.load %arg6[%c7_192] : memref<36xf32, #tpu.memory_space<smem>>
    %724 = vector.broadcast %723 : f32 to vector<2x16x128xf32>
    %725 = arith.mulf %724, %709 : vector<2x16x128xf32>
    %726 = arith.addf %718, %725 : vector<2x16x128xf32>
    %c25_193 = arith.constant 25 : index
    %727 = memref.load %arg6[%c25_193] : memref<36xf32, #tpu.memory_space<smem>>
    %728 = vector.broadcast %727 : f32 to vector<2x16x128xf32>
    %729 = arith.mulf %728, %709 : vector<2x16x128xf32>
    %730 = arith.addf %722, %729 : vector<2x16x128xf32>
    %c127_i32_194 = arith.constant 127 : i32
    %731 = tpu.dynamic_rotate %709 by %c127_i32_194 dim 2 : vector<2x16x128xf32>, i32 -> vector<2x16x128xf32>
    %cst_195 = arith.constant 0.000000e+00 : f32
    %732 = vector.shape_cast %7 : vector<1x16x128xi1> to vector<1x16x128xi1>
    %733 = vector.broadcast %732 : vector<1x16x128xi1> to vector<2x16x128xi1>
    %734 = vector.broadcast %cst_195 : f32 to vector<2x16x128xf32>
    %735 = arith.select %733, %731, %734 : vector<2x16x128xi1>, vector<2x16x128xf32>
    %c8_196 = arith.constant 8 : index
    %736 = memref.load %arg6[%c8_196] : memref<36xf32, #tpu.memory_space<smem>>
    %737 = vector.broadcast %736 : f32 to vector<2x16x128xf32>
    %738 = arith.mulf %737, %735 : vector<2x16x128xf32>
    %739 = arith.addf %726, %738 : vector<2x16x128xf32>
    %c26_197 = arith.constant 26 : index
    %740 = memref.load %arg6[%c26_197] : memref<36xf32, #tpu.memory_space<smem>>
    %741 = vector.broadcast %740 : f32 to vector<2x16x128xf32>
    %742 = arith.mulf %741, %735 : vector<2x16x128xf32>
    %743 = arith.addf %730, %742 : vector<2x16x128xf32>
    %c1_i32_198 = arith.constant 1 : i32
    %744 = tpu.dynamic_rotate %629 by %c1_i32_198 dim 1 : vector<2x16x128xf32>, i32 -> vector<2x16x128xf32>
    %cst_199 = arith.constant 0.000000e+00 : f32
    %745 = vector.shape_cast %5 : vector<1x16x128xi1> to vector<1x16x128xi1>
    %746 = vector.broadcast %745 : vector<1x16x128xi1> to vector<2x16x128xi1>
    %747 = vector.broadcast %cst_199 : f32 to vector<2x16x128xf32>
    %748 = arith.select %746, %744, %747 : vector<2x16x128xi1>, vector<2x16x128xf32>
    %c1_i32_200 = arith.constant 1 : i32
    %749 = tpu.dynamic_rotate %748 by %c1_i32_200 dim 2 : vector<2x16x128xf32>, i32 -> vector<2x16x128xf32>
    %cst_201 = arith.constant 0.000000e+00 : f32
    %750 = vector.shape_cast %9 : vector<1x16x128xi1> to vector<1x16x128xi1>
    %751 = vector.broadcast %750 : vector<1x16x128xi1> to vector<2x16x128xi1>
    %752 = vector.broadcast %cst_201 : f32 to vector<2x16x128xf32>
    %753 = arith.select %751, %749, %752 : vector<2x16x128xi1>, vector<2x16x128xf32>
    %c9_202 = arith.constant 9 : index
    %754 = memref.load %arg6[%c9_202] : memref<36xf32, #tpu.memory_space<smem>>
    %755 = vector.broadcast %754 : f32 to vector<2x16x128xf32>
    %756 = arith.mulf %755, %753 : vector<2x16x128xf32>
    %757 = arith.addf %739, %756 : vector<2x16x128xf32>
    %c27_203 = arith.constant 27 : index
    %758 = memref.load %arg6[%c27_203] : memref<36xf32, #tpu.memory_space<smem>>
    %759 = vector.broadcast %758 : f32 to vector<2x16x128xf32>
    %760 = arith.mulf %759, %753 : vector<2x16x128xf32>
    %761 = arith.addf %743, %760 : vector<2x16x128xf32>
    %c10_204 = arith.constant 10 : index
    %762 = memref.load %arg6[%c10_204] : memref<36xf32, #tpu.memory_space<smem>>
    %763 = vector.broadcast %762 : f32 to vector<2x16x128xf32>
    %764 = arith.mulf %763, %748 : vector<2x16x128xf32>
    %765 = arith.addf %757, %764 : vector<2x16x128xf32>
    %c28_205 = arith.constant 28 : index
    %766 = memref.load %arg6[%c28_205] : memref<36xf32, #tpu.memory_space<smem>>
    %767 = vector.broadcast %766 : f32 to vector<2x16x128xf32>
    %768 = arith.mulf %767, %748 : vector<2x16x128xf32>
    %769 = arith.addf %761, %768 : vector<2x16x128xf32>
    %c127_i32_206 = arith.constant 127 : i32
    %770 = tpu.dynamic_rotate %748 by %c127_i32_206 dim 2 : vector<2x16x128xf32>, i32 -> vector<2x16x128xf32>
    %cst_207 = arith.constant 0.000000e+00 : f32
    %771 = vector.shape_cast %7 : vector<1x16x128xi1> to vector<1x16x128xi1>
    %772 = vector.broadcast %771 : vector<1x16x128xi1> to vector<2x16x128xi1>
    %773 = vector.broadcast %cst_207 : f32 to vector<2x16x128xf32>
    %774 = arith.select %772, %770, %773 : vector<2x16x128xi1>, vector<2x16x128xf32>
    %c11_208 = arith.constant 11 : index
    %775 = memref.load %arg6[%c11_208] : memref<36xf32, #tpu.memory_space<smem>>
    %776 = vector.broadcast %775 : f32 to vector<2x16x128xf32>
    %777 = arith.mulf %776, %774 : vector<2x16x128xf32>
    %778 = arith.addf %765, %777 : vector<2x16x128xf32>
    %c29_209 = arith.constant 29 : index
    %779 = memref.load %arg6[%c29_209] : memref<36xf32, #tpu.memory_space<smem>>
    %780 = vector.broadcast %779 : f32 to vector<2x16x128xf32>
    %781 = arith.mulf %780, %774 : vector<2x16x128xf32>
    %782 = arith.addf %769, %781 : vector<2x16x128xf32>
    %c1_i32_210 = arith.constant 1 : i32
    %783 = tpu.dynamic_rotate %629 by %c1_i32_210 dim 2 : vector<2x16x128xf32>, i32 -> vector<2x16x128xf32>
    %cst_211 = arith.constant 0.000000e+00 : f32
    %784 = vector.shape_cast %9 : vector<1x16x128xi1> to vector<1x16x128xi1>
    %785 = vector.broadcast %784 : vector<1x16x128xi1> to vector<2x16x128xi1>
    %786 = vector.broadcast %cst_211 : f32 to vector<2x16x128xf32>
    %787 = arith.select %785, %783, %786 : vector<2x16x128xi1>, vector<2x16x128xf32>
    %c12_212 = arith.constant 12 : index
    %788 = memref.load %arg6[%c12_212] : memref<36xf32, #tpu.memory_space<smem>>
    %789 = vector.broadcast %788 : f32 to vector<2x16x128xf32>
    %790 = arith.mulf %789, %787 : vector<2x16x128xf32>
    %791 = arith.addf %778, %790 : vector<2x16x128xf32>
    %c30_213 = arith.constant 30 : index
    %792 = memref.load %arg6[%c30_213] : memref<36xf32, #tpu.memory_space<smem>>
    %793 = vector.broadcast %792 : f32 to vector<2x16x128xf32>
    %794 = arith.mulf %793, %787 : vector<2x16x128xf32>
    %795 = arith.addf %782, %794 : vector<2x16x128xf32>
    %c13_214 = arith.constant 13 : index
    %796 = memref.load %arg6[%c13_214] : memref<36xf32, #tpu.memory_space<smem>>
    %797 = vector.broadcast %796 : f32 to vector<2x16x128xf32>
    %798 = arith.mulf %797, %629 : vector<2x16x128xf32>
    %799 = arith.addf %791, %798 : vector<2x16x128xf32>
    %c31_215 = arith.constant 31 : index
    %800 = memref.load %arg6[%c31_215] : memref<36xf32, #tpu.memory_space<smem>>
    %801 = vector.broadcast %800 : f32 to vector<2x16x128xf32>
    %802 = arith.mulf %801, %629 : vector<2x16x128xf32>
    %803 = arith.addf %795, %802 : vector<2x16x128xf32>
    %c127_i32_216 = arith.constant 127 : i32
    %804 = tpu.dynamic_rotate %629 by %c127_i32_216 dim 2 : vector<2x16x128xf32>, i32 -> vector<2x16x128xf32>
    %cst_217 = arith.constant 0.000000e+00 : f32
    %805 = vector.shape_cast %7 : vector<1x16x128xi1> to vector<1x16x128xi1>
    %806 = vector.broadcast %805 : vector<1x16x128xi1> to vector<2x16x128xi1>
    %807 = vector.broadcast %cst_217 : f32 to vector<2x16x128xf32>
    %808 = arith.select %806, %804, %807 : vector<2x16x128xi1>, vector<2x16x128xf32>
    %c14_218 = arith.constant 14 : index
    %809 = memref.load %arg6[%c14_218] : memref<36xf32, #tpu.memory_space<smem>>
    %810 = vector.broadcast %809 : f32 to vector<2x16x128xf32>
    %811 = arith.mulf %810, %808 : vector<2x16x128xf32>
    %812 = arith.addf %799, %811 : vector<2x16x128xf32>
    %c32_219 = arith.constant 32 : index
    %813 = memref.load %arg6[%c32_219] : memref<36xf32, #tpu.memory_space<smem>>
    %814 = vector.broadcast %813 : f32 to vector<2x16x128xf32>
    %815 = arith.mulf %814, %808 : vector<2x16x128xf32>
    %816 = arith.addf %803, %815 : vector<2x16x128xf32>
    %c15_i32_220 = arith.constant 15 : i32
    %817 = tpu.dynamic_rotate %629 by %c15_i32_220 dim 1 : vector<2x16x128xf32>, i32 -> vector<2x16x128xf32>
    %cst_221 = arith.constant 0.000000e+00 : f32
    %818 = vector.shape_cast %3 : vector<1x16x128xi1> to vector<1x16x128xi1>
    %819 = vector.broadcast %818 : vector<1x16x128xi1> to vector<2x16x128xi1>
    %820 = vector.broadcast %cst_221 : f32 to vector<2x16x128xf32>
    %821 = arith.select %819, %817, %820 : vector<2x16x128xi1>, vector<2x16x128xf32>
    %c1_i32_222 = arith.constant 1 : i32
    %822 = tpu.dynamic_rotate %821 by %c1_i32_222 dim 2 : vector<2x16x128xf32>, i32 -> vector<2x16x128xf32>
    %cst_223 = arith.constant 0.000000e+00 : f32
    %823 = vector.shape_cast %9 : vector<1x16x128xi1> to vector<1x16x128xi1>
    %824 = vector.broadcast %823 : vector<1x16x128xi1> to vector<2x16x128xi1>
    %825 = vector.broadcast %cst_223 : f32 to vector<2x16x128xf32>
    %826 = arith.select %824, %822, %825 : vector<2x16x128xi1>, vector<2x16x128xf32>
    %c15_224 = arith.constant 15 : index
    %827 = memref.load %arg6[%c15_224] : memref<36xf32, #tpu.memory_space<smem>>
    %828 = vector.broadcast %827 : f32 to vector<2x16x128xf32>
    %829 = arith.mulf %828, %826 : vector<2x16x128xf32>
    %830 = arith.addf %812, %829 : vector<2x16x128xf32>
    %c33_225 = arith.constant 33 : index
    %831 = memref.load %arg6[%c33_225] : memref<36xf32, #tpu.memory_space<smem>>
    %832 = vector.broadcast %831 : f32 to vector<2x16x128xf32>
    %833 = arith.mulf %832, %826 : vector<2x16x128xf32>
    %834 = arith.addf %816, %833 : vector<2x16x128xf32>
    %c16_226 = arith.constant 16 : index
    %835 = memref.load %arg6[%c16_226] : memref<36xf32, #tpu.memory_space<smem>>
    %836 = vector.broadcast %835 : f32 to vector<2x16x128xf32>
    %837 = arith.mulf %836, %821 : vector<2x16x128xf32>
    %838 = arith.addf %830, %837 : vector<2x16x128xf32>
    %c34_227 = arith.constant 34 : index
    %839 = memref.load %arg6[%c34_227] : memref<36xf32, #tpu.memory_space<smem>>
    %840 = vector.broadcast %839 : f32 to vector<2x16x128xf32>
    %841 = arith.mulf %840, %821 : vector<2x16x128xf32>
    %842 = arith.addf %834, %841 : vector<2x16x128xf32>
    %c127_i32_228 = arith.constant 127 : i32
    %843 = tpu.dynamic_rotate %821 by %c127_i32_228 dim 2 : vector<2x16x128xf32>, i32 -> vector<2x16x128xf32>
    %cst_229 = arith.constant 0.000000e+00 : f32
    %844 = vector.shape_cast %7 : vector<1x16x128xi1> to vector<1x16x128xi1>
    %845 = vector.broadcast %844 : vector<1x16x128xi1> to vector<2x16x128xi1>
    %846 = vector.broadcast %cst_229 : f32 to vector<2x16x128xf32>
    %847 = arith.select %845, %843, %846 : vector<2x16x128xi1>, vector<2x16x128xf32>
    %c17_230 = arith.constant 17 : index
    %848 = memref.load %arg6[%c17_230] : memref<36xf32, #tpu.memory_space<smem>>
    %849 = vector.broadcast %848 : f32 to vector<2x16x128xf32>
    %850 = arith.mulf %849, %847 : vector<2x16x128xf32>
    %851 = arith.addf %838, %850 : vector<2x16x128xf32>
    %c35_231 = arith.constant 35 : index
    %852 = memref.load %arg6[%c35_231] : memref<36xf32, #tpu.memory_space<smem>>
    %853 = vector.broadcast %852 : f32 to vector<2x16x128xf32>
    %854 = arith.mulf %853, %847 : vector<2x16x128xf32>
    %855 = arith.addf %842, %854 : vector<2x16x128xf32>
    %c0_232 = arith.constant 0 : index
    %856 = memref.load %arg7[%c0_232] : memref<2xf32, #tpu.memory_space<smem>>
    %857 = vector.broadcast %856 : f32 to vector<2x16x128xf32>
    %858 = arith.addf %851, %857 : vector<2x16x128xf32>
    %c1_233 = arith.constant 1 : index
    %859 = memref.load %arg7[%c1_233] : memref<2xf32, #tpu.memory_space<smem>>
    %860 = vector.broadcast %859 : f32 to vector<2x16x128xf32>
    %861 = arith.addf %855, %860 : vector<2x16x128xf32>
    %cst_234 = arith.constant 1.000000e-01 : f32
    %862 = vector.broadcast %cst_234 : f32 to vector<2x16x128xf32>
    %863 = arith.mulf %862, %858 : vector<2x16x128xf32>
    %864 = arith.maximumf %858, %863 : vector<2x16x128xf32>
    %865 = arith.addf %864, %244 : vector<2x16x128xf32>
    %cst_235 = arith.constant 1.000000e-01 : f32
    %866 = vector.broadcast %cst_235 : f32 to vector<2x16x128xf32>
    %867 = arith.mulf %866, %861 : vector<2x16x128xf32>
    %868 = arith.maximumf %861, %867 : vector<2x16x128xf32>
    %869 = arith.addf %868, %245 : vector<2x16x128xf32>
    %c0_236 = arith.constant 0 : index
    %c0_237 = arith.constant 0 : index
    %c0_238 = arith.constant 0 : index
    %c0_239 = arith.constant 0 : index
    %870 = vector.load %arg8[%c0_236, %c0_237, %c0_238, %c0_239] : memref<2x4x16x128xf32, #tpu.memory_space<vmem>>, vector<2x1x16x128xf32>
    %871 = vector.shape_cast %870 : vector<2x1x16x128xf32> to vector<2x16x128xf32>
    %872 = vector.shape_cast %244 : vector<2x16x128xf32> to vector<2x1x16x128xf32>
    tpu.vector_store %arg8[%c0_236, %c0_237, %c0_238, %c0_239], %872 {strides = array<i32>} : memref<2x4x16x128xf32, #tpu.memory_space<vmem>>, vector<2x1x16x128xf32>,
    %c0_240 = arith.constant 0 : index
    %c1_241 = arith.constant 1 : index
    %c0_242 = arith.constant 0 : index
    %c0_243 = arith.constant 0 : index
    %873 = vector.load %arg8[%c0_240, %c1_241, %c0_242, %c0_243] : memref<2x4x16x128xf32, #tpu.memory_space<vmem>>, vector<2x1x16x128xf32>
    %874 = vector.shape_cast %873 : vector<2x1x16x128xf32> to vector<2x16x128xf32>
    %875 = vector.shape_cast %245 : vector<2x16x128xf32> to vector<2x1x16x128xf32>
    tpu.vector_store %arg8[%c0_240, %c1_241, %c0_242, %c0_243], %875 {strides = array<i32>} : memref<2x4x16x128xf32, #tpu.memory_space<vmem>>, vector<2x1x16x128xf32>,
    %cst_244 = arith.constant 5.000000e-01 : f32
    %876 = vector.broadcast %cst_244 : f32 to vector<2x16x128xf32>
    %877 = arith.mulf %876, %865 : vector<2x16x128xf32>
    %878 = math.tanh %877 : vector<2x16x128xf32>
    %cst_245 = arith.constant 8.000000e-01 : f32
    %879 = vector.broadcast %cst_245 : f32 to vector<2x16x128xf32>
    %880 = arith.mulf %879, %878 : vector<2x16x128xf32>
    %881 = math.exp %880 : vector<2x16x128xf32>
    %882 = arith.mulf %15, %881 : vector<2x16x128xf32>
    %883 = arith.addf %882, %613 : vector<2x16x128xf32>
    %c0_246 = arith.constant 0 : index
    %c2_247 = arith.constant 2 : index
    %c0_248 = arith.constant 0 : index
    %c0_249 = arith.constant 0 : index
    %884 = vector.load %arg8[%c0_246, %c2_247, %c0_248, %c0_249] : memref<2x4x16x128xf32, #tpu.memory_space<vmem>>, vector<2x1x16x128xf32>
    %885 = vector.shape_cast %884 : vector<2x1x16x128xf32> to vector<2x16x128xf32>
    %886 = vector.shape_cast %883 : vector<2x16x128xf32> to vector<2x1x16x128xf32>
    tpu.vector_store %arg8[%c0_246, %c2_247, %c0_248, %c0_249], %886 {strides = array<i32>} : memref<2x4x16x128xf32, #tpu.memory_space<vmem>>, vector<2x1x16x128xf32>,
    %cst_250 = arith.constant 5.000000e-01 : f32
    %887 = vector.broadcast %cst_250 : f32 to vector<2x16x128xf32>
    %888 = arith.mulf %887, %869 : vector<2x16x128xf32>
    %889 = math.tanh %888 : vector<2x16x128xf32>
    %cst_251 = arith.constant 8.000000e-01 : f32
    %890 = vector.broadcast %cst_251 : f32 to vector<2x16x128xf32>
    %891 = arith.mulf %890, %889 : vector<2x16x128xf32>
    %892 = math.exp %891 : vector<2x16x128xf32>
    %893 = arith.mulf %17, %892 : vector<2x16x128xf32>
    %894 = arith.addf %893, %617 : vector<2x16x128xf32>
    %c0_252 = arith.constant 0 : index
    %c3_253 = arith.constant 3 : index
    %c0_254 = arith.constant 0 : index
    %c0_255 = arith.constant 0 : index
    %895 = vector.load %arg8[%c0_252, %c3_253, %c0_254, %c0_255] : memref<2x4x16x128xf32, #tpu.memory_space<vmem>>, vector<2x1x16x128xf32>
    %896 = vector.shape_cast %895 : vector<2x1x16x128xf32> to vector<2x16x128xf32>
    %897 = vector.shape_cast %894 : vector<2x16x128xf32> to vector<2x1x16x128xf32>
    tpu.vector_store %arg8[%c0_252, %c3_253, %c0_254, %c0_255], %897 {strides = array<i32>} : memref<2x4x16x128xf32, #tpu.memory_space<vmem>>, vector<2x1x16x128xf32>,
    return
  }
  func.func @transform_0(%arg0: i32) -> (i32, i32, i32, i32) {
    %c0_i32 = arith.constant 0 : i32
    %c0_i32_0 = arith.constant 0 : i32
    %c0_i32_1 = arith.constant 0 : i32
    %c0_i32_2 = arith.constant 0 : i32
    return %arg0, %c0_i32, %c0_i32_0, %c0_i32_1 : i32, i32, i32, i32
  }
  func.func @transform_1(%arg0: i32) -> i32 {
    %c0_i32 = arith.constant 0 : i32
    %c0_i32_0 = arith.constant 0 : i32
    return %c0_i32 : i32
  }
  func.func @transform_2(%arg0: i32) -> i32 {
    %c0_i32 = arith.constant 0 : i32
    %c0_i32_0 = arith.constant 0 : i32
    return %c0_i32 : i32
  }
  func.func @transform_3(%arg0: i32) -> i32 {
    %c0_i32 = arith.constant 0 : i32
    %c0_i32_0 = arith.constant 0 : i32
    return %c0_i32 : i32
  }
  func.func @transform_4(%arg0: i32) -> i32 {
    %c0_i32 = arith.constant 0 : i32
    %c0_i32_0 = arith.constant 0 : i32
    return %c0_i32 : i32
  }
  func.func @transform_5(%arg0: i32) -> i32 {
    %c0_i32 = arith.constant 0 : i32
    %c0_i32_0 = arith.constant 0 : i32
    return %c0_i32 : i32
  }
  func.func @transform_6(%arg0: i32) -> i32 {
    %c0_i32 = arith.constant 0 : i32
    %c0_i32_0 = arith.constant 0 : i32
    return %c0_i32 : i32
  }
  func.func @transform_7(%arg0: i32) -> (i32, i32, i32, i32) {
    %c0_i32 = arith.constant 0 : i32
    %c0_i32_0 = arith.constant 0 : i32
    %c0_i32_1 = arith.constant 0 : i32
    %c0_i32_2 = arith.constant 0 : i32
    return %arg0, %c0_i32, %c0_i32_0, %c0_i32_1 : i32, i32, i32, i32
  }
}

</mosaic_0001>

<llo_original>
// kernel: tpu_custom_call.1
$region0: #{tpu_custom_call.1}
  #allocation0 [shape = 'u32[]', space=smem, size = 0x4, offset = 0x4, fixed_abs, tag = 'smem constant byte address 0x4 - core index']
  #allocation1 [shape = 'u32[144,128]{1,0:T(1,128)}', space=vmem, size = 0x12000, scoped, tag = 'internal scratch']
  %s0 = inlined_call_operand.hbm [shape: f32[2,4,16,128], index: 0, kind: input, shape index: {}]
  %s1 = inlined_call_operand.vmem [shape: f32[36], index: 1, kind: input, shape index: {}]
  %s2 = inlined_call_operand.vmem [shape: f32[36], index: 2, kind: input, shape index: {}]
  %s3 = inlined_call_operand.vmem [shape: f32[36], index: 3, kind: input, shape index: {}]
  %s4 = inlined_call_operand.vmem [shape: f32[2], index: 4, kind: input, shape index: {}]
  %s5 = inlined_call_operand.vmem [shape: f32[36], index: 5, kind: input, shape index: {}]
  %s6 = inlined_call_operand.vmem [shape: f32[2], index: 6, kind: input, shape index: {}]
  %s7 = inlined_call_operand.hbm [shape: f32[2,4,16,128], index: 7, kind: output, shape index: {}]
  %s8 = sld [smem:[#allocation0]]
  $region66: #{tpu_custom_call.1} parent=0
    _
  %s10 = ssub.s32 1, %s8
  %s11 = scalar_select 0, %s10, %s8
  $region1: #{tpu_custom_call.1} parent=0
    #allocation2 [shape = 'u8[65536]{0}', space=vmem, size = 0x10000, scoped, tag = 'input window, operand 0, single buffered']
    #allocation3 [shape = 's32[1]{0}', space=sflag, size = 0x4, scoped, tag = 'scoped memory for tpu_custom_call.1']
    #allocation4 [shape = 's32[1]{0}', space=sflag, size = 0x4, scoped, tag = 'scoped memory for tpu_custom_call.1']
    #allocation5 [shape = 's32[1]{0}', space=sflag, size = 0x4, scoped, tag = 'scoped memory for tpu_custom_call.1']
    #allocation6 [shape = 'u8[512]{0}', space=smem, size = 0x200, scoped, tag = 'input window, operand 1, single buffered']
    #allocation7 [shape = 'u8[512]{0}', space=smem, size = 0x200, scoped, tag = 'input window, operand 2, single buffered']
    #allocation8 [shape = 's32[1]{0}', space=sflag, size = 0x4, scoped, tag = 'scoped memory for tpu_custom_call.1']
    #allocation9 [shape = 'u8[512]{0}', space=smem, size = 0x200, scoped, tag = 'input window, operand 3, single buffered']
    #allocation10 [shape = 'u8[512]{0}', space=smem, size = 0x200, scoped, tag = 'input window, operand 4, single buffered']
    #allocation11 [shape = 's32[1]{0}', space=sflag, size = 0x4, scoped, tag = 'scoped memory for tpu_custom_call.1']
    #allocation12 [shape = 'u8[512]{0}', space=smem, size = 0x200, scoped, tag = 'input window, operand 5, single buffered']
    #allocation13 [shape = 'u8[512]{0}', space=smem, size = 0x200, scoped, tag = 'input window, operand 6, single buffered']
    #allocation14 [shape = 's32[1]{0}', space=sflag, size = 0x4, scoped, tag = 'scoped memory for tpu_custom_call.1']
    #allocation15 [shape = 'u8[65536]{0}', space=vmem, size = 0x10000, scoped, tag = 'output window, operand 0, single buffered']
    %12 = vsyncpa [#allocation3], 0
    %13 = vsyncpa [#allocation5], 0
    %14 = vsyncpa [#allocation8], 0
    %15 = vsyncpa [#allocation11], 0
    %16 = vsyncpa [#allocation14], 0
    %17 = vsyncpa [#allocation4], 0
    // Predicated region
    $region2: #{tpu_custom_call.1} parent=1 // pred_check
      _
    $region3: #{tpu_custom_call.1} parent=1 // pred_check_branch
      %19 = sbr.rel (0) target = $region5
    $region4: #{tpu_custom_call.1} parent=1 // pred_region
      %s21 = ssub.s32 2048, 2048
      %22 = vsyncadd [#allocation3], %s21
      %s23 = sshll.u32 [#allocation2], 4
      %s24 = int_to_ptr.vmem [resolvable:$true] %s23
      %29 = dma.hbm_to_vmem [thread:$0]  %s0, 2048, %s24, [#allocation3], 128, 128, 8
    $region5: #{tpu_custom_call.1} parent=1 // pred_fallthru
      _
    // Predicated region
    $region6: #{tpu_custom_call.1} parent=1 // pred_check
      _
    $region7: #{tpu_custom_call.1} parent=1 // pred_check_branch
      %31 = sbr.rel (0) target = $region9
    $region8: #{tpu_custom_call.1} parent=1 // pred_region
      %s33 = ssub.s32 16, 16
      %34 = vsyncadd [#allocation5], %s33
      %s36 = sshll.u32 %s1, 4
      %s37 = int_to_ptr.vmem [resolvable:$true] %s36
      %39 = dma.vmem_to_smem %s37, 16, [#allocation6], [#allocation5]
    $region9: #{tpu_custom_call.1} parent=1 // pred_fallthru
      _
    // Predicated region
    $region10: #{tpu_custom_call.1} parent=1 // pred_check
      _
    $region11: #{tpu_custom_call.1} parent=1 // pred_check_branch
      %41 = sbr.rel (0) target = $region13
    $region12: #{tpu_custom_call.1} parent=1 // pred_region
      %s43 = ssub.s32 16, 16
      %44 = vsyncadd [#allocation8], %s43
      %s46 = sshll.u32 %s2, 4
      %s47 = int_to_ptr.vmem [resolvable:$true] %s46
      %49 = dma.vmem_to_smem %s47, 16, [#allocation7], [#allocation8]
    $region13: #{tpu_custom_call.1} parent=1 // pred_fallthru
      _
    // Predicated region
    $region14: #{tpu_custom_call.1} parent=1 // pred_check
      _
    $region15: #{tpu_custom_call.1} parent=1 // pred_check_branch
      %51 = sbr.rel (0) target = $region17
    $region16: #{tpu_custom_call.1} parent=1 // pred_region
      %s53 = ssub.s32 16, 16
      %54 = vsyncadd [#allocation8], %s53
      %s56 = sshll.u32 %s3, 4
      %s57 = int_to_ptr.vmem [resolvable:$true] %s56
      %59 = dma.vmem_to_smem %s57, 16, [#allocation9], [#allocation8]
    $region17: #{tpu_custom_call.1} parent=1 // pred_fallthru
      _
    // Predicated region
    $region18: #{tpu_custom_call.1} parent=1 // pred_check
      _
    $region19: #{tpu_custom_call.1} parent=1 // pred_check_branch
      %61 = sbr.rel (0) target = $region21
    $region20: #{tpu_custom_call.1} parent=1 // pred_region
      %s63 = ssub.s32 16, 16
      %64 = vsyncadd [#allocation11], %s63
      %s66 = sshll.u32 %s4, 4
      %s67 = int_to_ptr.vmem [resolvable:$true] %s66
      %69 = dma.vmem_to_smem %s67, 16, [#allocation10], [#allocation11]
    $region21: #{tpu_custom_call.1} parent=1 // pred_fallthru
      _
    // Predicated region
    $region22: #{tpu_custom_call.1} parent=1 // pred_check
      _
    $region23: #{tpu_custom_call.1} parent=1 // pred_check_branch
      %71 = sbr.rel (0) target = $region25
    $region24: #{tpu_custom_call.1} parent=1 // pred_region
      %s73 = ssub.s32 16, 16
      %74 = vsyncadd [#allocation11], %s73
      %s76 = sshll.u32 %s5, 4
      %s77 = int_to_ptr.vmem [resolvable:$true] %s76
      %79 = dma.vmem_to_smem %s77, 16, [#allocation12], [#allocation11]
    $region25: #{tpu_custom_call.1} parent=1 // pred_fallthru
      _
    // Predicated region
    $region26: #{tpu_custom_call.1} parent=1 // pred_check
      _
    $region27: #{tpu_custom_call.1} parent=1 // pred_check_branch
      %81 = sbr.rel (0) target = $region29
    $region28: #{tpu_custom_call.1} parent=1 // pred_region
      %s83 = ssub.s32 16, 16
      %84 = vsyncadd [#allocation14], %s83
      %s86 = sshll.u32 %s6, 4
      %s87 = int_to_ptr.vmem [resolvable:$true] %s86
      %89 = dma.vmem_to_smem %s87, 16, [#allocation13], [#allocation14]
    $region29: #{tpu_custom_call.1} parent=1 // pred_fallthru
      _
    // Predicated region
    $region30: #{tpu_custom_call.1} parent=1 // pred_check
      _
    $region31: #{tpu_custom_call.1} parent=1 // pred_check_branch
      %91 = sbr.rel (0) target = $region33
    $region32: #{tpu_custom_call.1} parent=1 // pred_region
      %92 = dma.done [#allocation3], 2048
    $region33: #{tpu_custom_call.1} parent=1 // pred_fallthru
      _
    // Predicated region
    $region34: #{tpu_custom_call.1} parent=1 // pred_check
      _
    $region35: #{tpu_custom_call.1} parent=1 // pred_check_branch
      %94 = sbr.rel (0) target = $region37
    $region36: #{tpu_custom_call.1} parent=1 // pred_region
      %95 = dma.done [#allocation5], 16
    $region37: #{tpu_custom_call.1} parent=1 // pred_fallthru
      _
    // Predicated region
    $region38: #{tpu_custom_call.1} parent=1 // pred_check
      _
    $region39: #{tpu_custom_call.1} parent=1 // pred_check_branch
      %97 = sbr.rel (0) target = $region41
    $region40: #{tpu_custom_call.1} parent=1 // pred_region
      %98 = dma.done [#allocation8], 16
    $region41: #{tpu_custom_call.1} parent=1 // pred_fallthru
      _
    // Predicated region
    $region42: #{tpu_custom_call.1} parent=1 // pred_check
      _
    $region43: #{tpu_custom_call.1} parent=1 // pred_check_branch
      %100 = sbr.rel (0) target = $region45
    $region44: #{tpu_custom_call.1} parent=1 // pred_region
      %101 = dma.done [#allocation8], 16
    $region45: #{tpu_custom_call.1} parent=1 // pred_fallthru
      _
    // Predicated region
    $region46: #{tpu_custom_call.1} parent=1 // pred_check
      _
    $region47: #{tpu_custom_call.1} parent=1 // pred_check_branch
      %103 = sbr.rel (0) target = $region49
    $region48: #{tpu_custom_call.1} parent=1 // pred_region
      %104 = dma.done [#allocation11], 16
    $region49: #{tpu_custom_call.1} parent=1 // pred_fallthru
      _
    // Predicated region
    $region50: #{tpu_custom_call.1} parent=1 // pred_check
      _
    $region51: #{tpu_custom_call.1} parent=1 // pred_check_branch
      %106 = sbr.rel (0) target = $region53
    $region52: #{tpu_custom_call.1} parent=1 // pred_region
      %107 = dma.done [#allocation11], 16
    $region53: #{tpu_custom_call.1} parent=1 // pred_fallthru
      _
    // Predicated region
    $region54: #{tpu_custom_call.1} parent=1 // pred_check
      _
    $region55: #{tpu_custom_call.1} parent=1 // pred_check_branch
      %109 = sbr.rel (0) target = $region57
    $region56: #{tpu_custom_call.1} parent=1 // pred_region
      %110 = dma.done [#allocation14], 16
    $region57: #{tpu_custom_call.1} parent=1 // pred_fallthru
      _
    %111 = sfence
    %v112 = vlaneseq
    %v113 = vshrl.u32 %v112, 7
    %v114 = vadd.s32 %v113, 8
    %v115 = vlaneseq
    %v116 = vand.u32 %v115, 127
    %vm117 = vcmp.lt.s32.totalorder %v113, 15
    %vm118 = vcmp.lt.s32.totalorder %v114, 15
    %vm119 = vcmp.ge.s32.totalorder %v113, 1
    %vm120 = vcmp.ge.s32.totalorder %v114, 1
    %vm121 = vcmp.lt.s32.totalorder %v116, 127
    %vm122 = vcmp.ge.s32.totalorder %v116, 1
    %v123 = vld [vmem:[#allocation2] sm:$0xff]
    %v124 = vld [vmem:[#allocation2 + $0x8] sm:$0xff]
    %v125 = vld [vmem:[#allocation2 + $0x40] sm:$0xff]
    %v126 = vld [vmem:[#allocation2 + $0x48] sm:$0xff]
    %s127 = scalar_lea.vmem [#allocation2], 16
    %v128 = vld [vmem:[%s127] sm:$0xff]
    %v129 = vld [vmem:[%s127 + $0x8] sm:$0xff]
    %v130 = vld [vmem:[%s127 + $0x40] sm:$0xff]
    %v131 = vld [vmem:[%s127 + $0x48] sm:$0xff]
    %s132 = scalar_lea.vmem [#allocation2], 32
    %v133 = vld [vmem:[%s132] sm:$0xff]
    %v134 = vld [vmem:[%s132 + $0x8] sm:$0xff]
    %v135 = vld [vmem:[%s132 + $0x40] sm:$0xff]
    %v136 = vld [vmem:[%s132 + $0x48] sm:$0xff]
    %s137 = scalar_lea.vmem [#allocation2], 48
    %v138 = vld [vmem:[%s137] sm:$0xff]
    %v139 = vld [vmem:[%s137 + $0x8] sm:$0xff]
    %v140 = vld [vmem:[%s137 + $0x40] sm:$0xff]
    %v141 = vld [vmem:[%s137 + $0x48] sm:$0xff]
    %v142 = vrot.slane %v133, 7
    %v143 = vrot.slane %v135, 7
    %v144 = vrot.slane %v134, 7
    %v145 = vrot.slane %v136, 7
    %vm146 = vcmp.lt.s32.totalorder %v113, 1
    %v147 = vsel %vm146, %v142, %v144
    %v148 = vsel %vm146, %v143, %v145
    %v149 = vsel %vm146, %v144, %v142
    %v150 = vsel %vm146, %v145, %v143
    %v151 = vsel %vm119, 1, 0
    %v152 = vsel %vm120, 1, 0
    %vm153 = vcmp.eq.s32.totalorder %v151, 1
    %vm154 = vcmp.eq.s32.totalorder %v152, 1
    %v155 = vsel %vm153, %v149, 0.0
    %v156 = vsel %vm154, %v147, 0.0
    %v157 = vsel %vm153, %v150, 0.0
    %v158 = vsel %vm154, %v148, 0.0
    %159 = vrot.lane.b32.xlu0 %v155, 1
    %v160 = vpop.permute.xlu0 %159
    %161 = vrot.lane.b32.xlu0 %v156, 1
    %v162 = vpop.permute.xlu0 %161
    %163 = vrot.lane.b32.xlu0 %v157, 1
    %v164 = vpop.permute.xlu0 %163
    %165 = vrot.lane.b32.xlu0 %v158, 1
    %v166 = vpop.permute.xlu0 %165
    %v167 = vsel %vm122, 1, 0
    %vm168 = vcmp.eq.s32.totalorder %v167, 1
    %v169 = vsel %vm168, %v160, 0.0
    %v170 = vsel %vm168, %v162, 0.0
    %v171 = vsel %vm168, %v164, 0.0
    %v172 = vsel %vm168, %v166, 0.0
    %s173 = sld [smem:[#allocation6]]
    %v174 = vstv %s173
    %v175 = vmul.f32 %v174, %v169
    %v176 = vmul.f32 %v174, %v170
    %v177 = vmul.f32 %v174, %v171
    %v178 = vmul.f32 %v174, %v172
    %v179 = vadd.f32 %v175, 0.0
    %v180 = vadd.f32 %v176, 0.0
    %v181 = vadd.f32 %v177, 0.0
    %v182 = vadd.f32 %v178, 0.0
    %s183 = sld [smem:[#allocation6 + $0x12]]
    %v184 = vstv %s183
    %v185 = vmul.f32 %v184, %v169
    %v186 = vmul.f32 %v184, %v170
    %v187 = vmul.f32 %v184, %v171
    %v188 = vmul.f32 %v184, %v172
    %v189 = vadd.f32 %v185, 0.0
    %v190 = vadd.f32 %v186, 0.0
    %v191 = vadd.f32 %v187, 0.0
    %v192 = vadd.f32 %v188, 0.0
    %s193 = sld [smem:[#allocation6 + $0x1]]
    %v194 = vstv %s193
    %v195 = vmul.f32 %v194, %v155
    %v196 = vmul.f32 %v194, %v156
    %v197 = vmul.f32 %v194, %v157
    %v198 = vmul.f32 %v194, %v158
    %v199 = vadd.f32 %v179, %v195
    %v200 = vadd.f32 %v180, %v196
    %v201 = vadd.f32 %v181, %v197
    %v202 = vadd.f32 %v182, %v198
    %s203 = sld [smem:[#allocation6 + $0x13]]
    %v204 = vstv %s203
    %v205 = vmul.f32 %v204, %v155
    %v206 = vmul.f32 %v204, %v156
    %v207 = vmul.f32 %v204, %v157
    %v208 = vmul.f32 %v204, %v158
    %v209 = vadd.f32 %v189, %v205
    %v210 = vadd.f32 %v190, %v206
    %v211 = vadd.f32 %v191, %v207
    %v212 = vadd.f32 %v192, %v208
    %213 = vrot.lane.b32.xlu0 %v155, 127
    %v214 = vpop.permute.xlu0 %213
    %215 = vrot.lane.b32.xlu0 %v156, 127
    %v216 = vpop.permute.xlu0 %215
    %217 = vrot.lane.b32.xlu0 %v157, 127
    %v218 = vpop.permute.xlu0 %217
    %219 = vrot.lane.b32.xlu0 %v158, 127
    %v220 = vpop.permute.xlu0 %219
    %v221 = vsel %vm121, 1, 0
    %vm222 = vcmp.eq.s32.totalorder %v221, 1
    %v223 = vsel %vm222, %v214, 0.0
    %v224 = vsel %vm222, %v216, 0.0
    %v225 = vsel %vm222, %v218, 0.0
    %v226 = vsel %vm222, %v220, 0.0
    %s227 = sld [smem:[#allocation6 + $0x2]]
    %v228 = vstv %s227
    %v229 = vmul.f32 %v228, %v223
    %v230 = vmul.f32 %v228, %v224
    %v231 = vmul.f32 %v228, %v225
    %v232 = vmul.f32 %v228, %v226
    %v233 = vadd.f32 %v199, %v229
    %v234 = vadd.f32 %v200, %v230
    %v235 = vadd.f32 %v201, %v231
    %v236 = vadd.f32 %v202, %v232
    %s237 = sld [smem:[#allocation6 + $0x14]]
    %v238 = vstv %s237
    %v239 = vmul.f32 %v238, %v223
    %v240 = vmul.f32 %v238, %v224
    %v241 = vmul.f32 %v238, %v225
    %v242 = vmul.f32 %v238, %v226
    %v243 = vadd.f32 %v209, %v239
    %v244 = vadd.f32 %v210, %v240
    %v245 = vadd.f32 %v211, %v241
    %v246 = vadd.f32 %v212, %v242
    %247 = vrot.lane.b32.xlu0 %v133, 1
    %v248 = vpop.permute.xlu0 %247
    %249 = vrot.lane.b32.xlu0 %v134, 1
    %v250 = vpop.permute.xlu0 %249
    %251 = vrot.lane.b32.xlu0 %v135, 1
    %v252 = vpop.permute.xlu0 %251
    %253 = vrot.lane.b32.xlu0 %v136, 1
    %v254 = vpop.permute.xlu0 %253
    %v255 = vsel %vm168, %v248, 0.0
    %v256 = vsel %vm168, %v250, 0.0
    %v257 = vsel %vm168, %v252, 0.0
    %v258 = vsel %vm168, %v254, 0.0
    %s259 = sld [smem:[#allocation6 + $0x3]]
    %v260 = vstv %s259
    %v261 = vmul.f32 %v260, %v255
    %v262 = vmul.f32 %v260, %v256
    %v263 = vmul.f32 %v260, %v257
    %v264 = vmul.f32 %v260, %v258
    %v265 = vadd.f32 %v233, %v261
    %v266 = vadd.f32 %v234, %v262
    %v267 = vadd.f32 %v235, %v263
    %v268 = vadd.f32 %v236, %v264
    %s269 = sld [smem:[#allocation6 + $0x15]]
    %v270 = vstv %s269
    %v271 = vmul.f32 %v270, %v255
    %v272 = vmul.f32 %v270, %v256
    %v273 = vmul.f32 %v270, %v257
    %v274 = vmul.f32 %v270, %v258
    %v275 = vadd.f32 %v243, %v271
    %v276 = vadd.f32 %v244, %v272
    %v277 = vadd.f32 %v245, %v273
    %v278 = vadd.f32 %v246, %v274
    %s279 = sld [smem:[#allocation6 + $0x4]]
    %v280 = vstv %s279
    %v281 = vmul.f32 %v280, %v133
    %v282 = vmul.f32 %v280, %v134
    %v283 = vmul.f32 %v280, %v135
    %v284 = vmul.f32 %v280, %v136
    %v285 = vadd.f32 %v265, %v281
    %v286 = vadd.f32 %v266, %v282
    %v287 = vadd.f32 %v267, %v283
    %v288 = vadd.f32 %v268, %v284
    %s289 = sld [smem:[#allocation6 + $0x16]]
    %v290 = vstv %s289
    %v291 = vmul.f32 %v290, %v133
    %v292 = vmul.f32 %v290, %v134
    %v293 = vmul.f32 %v290, %v135
    %v294 = vmul.f32 %v290, %v136
    %v295 = vadd.f32 %v275, %v291
    %v296 = vadd.f32 %v276, %v292
    %v297 = vadd.f32 %v277, %v293
    %v298 = vadd.f32 %v278, %v294
    %299 = vrot.lane.b32.xlu0 %v133, 127
    %v300 = vpop.permute.xlu0 %299
    %301 = vrot.lane.b32.xlu0 %v134, 127
    %v302 = vpop.permute.xlu0 %301
    %303 = vrot.lane.b32.xlu0 %v135, 127
    %v304 = vpop.permute.xlu0 %303
    %305 = vrot.lane.b32.xlu0 %v136, 127
    %v306 = vpop.permute.xlu0 %305
    %v307 = vsel %vm222, %v300, 0.0
    %v308 = vsel %vm222, %v302, 0.0
    %v309 = vsel %vm222, %v304, 0.0
    %v310 = vsel %vm222, %v306, 0.0
    %s311 = sld [smem:[#allocation6 + $0x5]]
    %v312 = vstv %s311
    %v313 = vmul.f32 %v312, %v307
    %v314 = vmul.f32 %v312, %v308
    %v315 = vmul.f32 %v312, %v309
    %v316 = vmul.f32 %v312, %v310
    %v317 = vadd.f32 %v285, %v313
    %v318 = vadd.f32 %v286, %v314
    %v319 = vadd.f32 %v287, %v315
    %v320 = vadd.f32 %v288, %v316
    %s321 = sld [smem:[#allocation6 + $0x17]]
    %v322 = vstv %s321
    %v323 = vmul.f32 %v322, %v307
    %v324 = vmul.f32 %v322, %v308
    %v325 = vmul.f32 %v322, %v309
    %v326 = vmul.f32 %v322, %v310
    %v327 = vadd.f32 %v295, %v323
    %v328 = vadd.f32 %v296, %v324
    %v329 = vadd.f32 %v297, %v325
    %v330 = vadd.f32 %v298, %v326
    %v331 = vrot.slane %v133, 1
    %v332 = vrot.slane %v135, 1
    %v333 = vrot.slane %v134, 1
    %v334 = vrot.slane %v136, 1
    %vm335 = vcmp.lt.s32.totalorder %v113, 7
    %v336 = vsel %vm335, %v331, %v333
    %v337 = vsel %vm335, %v332, %v334
    %v338 = vsel %vm335, %v333, %v331
    %v339 = vsel %vm335, %v334, %v332
    %v340 = vsel %vm117, 1, 0
    %v341 = vsel %vm118, 1, 0
    %vm342 = vcmp.eq.s32.totalorder %v340, 1
    %vm343 = vcmp.eq.s32.totalorder %v341, 1
    %v344 = vsel %vm342, %v336, 0.0
    %v345 = vsel %vm343, %v338, 0.0
    %v346 = vsel %vm342, %v337, 0.0
    %v347 = vsel %vm343, %v339, 0.0
    %348 = vrot.lane.b32.xlu0 %v344, 1
    %v349 = vpop.permute.xlu0 %348
    %350 = vrot.lane.b32.xlu0 %v345, 1
    %v351 = vpop.permute.xlu0 %350
    %352 = vrot.lane.b32.xlu0 %v346, 1
    %v353 = vpop.permute.xlu0 %352
    %354 = vrot.lane.b32.xlu0 %v347, 1
    %v355 = vpop.permute.xlu0 %354
    %v356 = vsel %vm168, %v349, 0.0
    %v357 = vsel %vm168, %v351, 0.0
    %v358 = vsel %vm168, %v353, 0.0
    %v359 = vsel %vm168, %v355, 0.0
    %s360 = sld [smem:[#allocation6 + $0x6]]
    %v361 = vstv %s360
    %v362 = vmul.f32 %v361, %v356
    %v363 = vmul.f32 %v361, %v357
    %v364 = vmul.f32 %v361, %v358
    %v365 = vmul.f32 %v361, %v359
    %v366 = vadd.f32 %v317, %v362
    %v367 = vadd.f32 %v318, %v363
    %v368 = vadd.f32 %v319, %v364
    %v369 = vadd.f32 %v320, %v365
    %s370 = sld [smem:[#allocation6 + $0x18]]
    %v371 = vstv %s370
    %v372 = vmul.f32 %v371, %v356
    %v373 = vmul.f32 %v371, %v357
    %v374 = vmul.f32 %v371, %v358
    %v375 = vmul.f32 %v371, %v359
    %v376 = vadd.f32 %v327, %v372
    %v377 = vadd.f32 %v328, %v373
    %v378 = vadd.f32 %v329, %v374
    %v379 = vadd.f32 %v330, %v375
    %s380 = sld [smem:[#allocation6 + $0x7]]
    %v381 = vstv %s380
    %v382 = vmul.f32 %v381, %v344
    %v383 = vmul.f32 %v381, %v345
    %v384 = vmul.f32 %v381, %v346
    %v385 = vmul.f32 %v381, %v347
    %v386 = vadd.f32 %v366, %v382
    %v387 = vadd.f32 %v367, %v383
    %v388 = vadd.f32 %v368, %v384
    %v389 = vadd.f32 %v369, %v385
    %s390 = sld [smem:[#allocation6 + $0x19]]
    %v391 = vstv %s390
    %v392 = vmul.f32 %v391, %v344
    %v393 = vmul.f32 %v391, %v345
    %v394 = vmul.f32 %v391, %v346
    %v395 = vmul.f32 %v391, %v347
    %v396 = vadd.f32 %v376, %v392
    %v397 = vadd.f32 %v377, %v393
    %v398 = vadd.f32 %v378, %v394
    %v399 = vadd.f32 %v379, %v395
    %400 = vrot.lane.b32.xlu0 %v344, 127
    %v401 = vpop.permute.xlu0 %400
    %402 = vrot.lane.b32.xlu0 %v345, 127
    %v403 = vpop.permute.xlu0 %402
    %404 = vrot.lane.b32.xlu0 %v346, 127
    %v405 = vpop.permute.xlu0 %404
    %406 = vrot.lane.b32.xlu0 %v347, 127
    %v407 = vpop.permute.xlu0 %406
    %v408 = vsel %vm222, %v401, 0.0
    %v409 = vsel %vm222, %v403, 0.0
    %v410 = vsel %vm222, %v405, 0.0
    %v411 = vsel %vm222, %v407, 0.0
    %s412 = sld [smem:[#allocation6 + $0x8]]
    %v413 = vstv %s412
    %v414 = vmul.f32 %v413, %v408
    %v415 = vmul.f32 %v413, %v409
    %v416 = vmul.f32 %v413, %v410
    %v417 = vmul.f32 %v413, %v411
    %v418 = vadd.f32 %v386, %v414
    %v419 = vadd.f32 %v387, %v415
    %v420 = vadd.f32 %v388, %v416
    %v421 = vadd.f32 %v389, %v417
    %s422 = sld [smem:[#allocation6 + $0x1a]]
    %v423 = vstv %s422
    %v424 = vmul.f32 %v423, %v408
    %v425 = vmul.f32 %v423, %v409
    %v426 = vmul.f32 %v423, %v410
    %v427 = vmul.f32 %v423, %v411
    %v428 = vadd.f32 %v396, %v424
    %v429 = vadd.f32 %v397, %v425
    %v430 = vadd.f32 %v398, %v426
    %v431 = vadd.f32 %v399, %v427
    %v432 = vrot.slane %v138, 7
    %v433 = vrot.slane %v140, 7
    %v434 = vrot.slane %v139, 7
    %v435 = vrot.slane %v141, 7
    %v436 = vsel %vm146, %v432, %v434
    %v437 = vsel %vm146, %v433, %v435
    %v438 = vsel %vm146, %v434, %v432
    %v439 = vsel %vm146, %v435, %v433
    %v440 = vsel %vm153, %v438, 0.0
    %v441 = vsel %vm154, %v436, 0.0
    %v442 = vsel %vm153, %v439, 0.0
    %v443 = vsel %vm154, %v437, 0.0
    %444 = vrot.lane.b32.xlu0 %v440, 1
    %v445 = vpop.permute.xlu0 %444
    %446 = vrot.lane.b32.xlu0 %v441, 1
    %v447 = vpop.permute.xlu0 %446
    %448 = vrot.lane.b32.xlu0 %v442, 1
    %v449 = vpop.permute.xlu0 %448
    %450 = vrot.lane.b32.xlu0 %v443, 1
    %v451 = vpop.permute.xlu0 %450
    %v452 = vsel %vm168, %v445, 0.0
    %v453 = vsel %vm168, %v447, 0.0
    %v454 = vsel %vm168, %v449, 0.0
    %v455 = vsel %vm168, %v451, 0.0
    %s456 = sld [smem:[#allocation6 + $0x9]]
    %v457 = vstv %s456
    %v458 = vmul.f32 %v457, %v452
    %v459 = vmul.f32 %v457, %v453
    %v460 = vmul.f32 %v457, %v454
    %v461 = vmul.f32 %v457, %v455
    %v462 = vadd.f32 %v418, %v458
    %v463 = vadd.f32 %v419, %v459
    %v464 = vadd.f32 %v420, %v460
    %v465 = vadd.f32 %v421, %v461
    %s466 = sld [smem:[#allocation6 + $0x1b]]
    %v467 = vstv %s466
    %v468 = vmul.f32 %v467, %v452
    %v469 = vmul.f32 %v467, %v453
    %v470 = vmul.f32 %v467, %v454
    %v471 = vmul.f32 %v467, %v455
    %v472 = vadd.f32 %v428, %v468
    %v473 = vadd.f32 %v429, %v469
    %v474 = vadd.f32 %v430, %v470
    %v475 = vadd.f32 %v431, %v471
    %s476 = sld [smem:[#allocation6 + $0xa]]
    %v477 = vstv %s476
    %v478 = vmul.f32 %v477, %v440
    %v479 = vmul.f32 %v477, %v441
    %v480 = vmul.f32 %v477, %v442
    %v481 = vmul.f32 %v477, %v443
    %v482 = vadd.f32 %v462, %v478
    %v483 = vadd.f32 %v463, %v479
    %v484 = vadd.f32 %v464, %v480
    %v485 = vadd.f32 %v465, %v481
    %s486 = sld [smem:[#allocation6 + $0x1c]]
    %v487 = vstv %s486
    %v488 = vmul.f32 %v487, %v440
    %v489 = vmul.f32 %v487, %v441
    %v490 = vmul.f32 %v487, %v442
    %v491 = vmul.f32 %v487, %v443
    %v492 = vadd.f32 %v472, %v488
    %v493 = vadd.f32 %v473, %v489
    %v494 = vadd.f32 %v474, %v490
    %v495 = vadd.f32 %v475, %v491
    %496 = vrot.lane.b32.xlu0 %v440, 127
    %v497 = vpop.permute.xlu0 %496
    %498 = vrot.lane.b32.xlu0 %v441, 127
    %v499 = vpop.permute.xlu0 %498
    %500 = vrot.lane.b32.xlu0 %v442, 127
    %v501 = vpop.permute.xlu0 %500
    %502 = vrot.lane.b32.xlu0 %v443, 127
    %v503 = vpop.permute.xlu0 %502
    %v504 = vsel %vm222, %v497, 0.0
    %v505 = vsel %vm222, %v499, 0.0
    %v506 = vsel %vm222, %v501, 0.0
    %v507 = vsel %vm222, %v503, 0.0
    %s508 = sld [smem:[#allocation6 + $0xb]]
    %v509 = vstv %s508
    %v510 = vmul.f32 %v509, %v504
    %v511 = vmul.f32 %v509, %v505
    %v512 = vmul.f32 %v509, %v506
    %v513 = vmul.f32 %v509, %v507
    %v514 = vadd.f32 %v482, %v510
    %v515 = vadd.f32 %v483, %v511
    %v516 = vadd.f32 %v484, %v512
    %v517 = vadd.f32 %v485, %v513
    %s518 = sld [smem:[#allocation6 + $0x1d]]
    %v519 = vstv %s518
    %v520 = vmul.f32 %v519, %v504
    %v521 = vmul.f32 %v519, %v505
    %v522 = vmul.f32 %v519, %v506
    %v523 = vmul.f32 %v519, %v507
    %v524 = vadd.f32 %v492, %v520
    %v525 = vadd.f32 %v493, %v521
    %v526 = vadd.f32 %v494, %v522
    %v527 = vadd.f32 %v495, %v523
    %528 = vrot.lane.b32.xlu0 %v138, 1
    %v529 = vpop.permute.xlu0 %528
    %530 = vrot.lane.b32.xlu0 %v139, 1
    %v531 = vpop.permute.xlu0 %530
    %532 = vrot.lane.b32.xlu0 %v140, 1
    %v533 = vpop.permute.xlu0 %532
    %534 = vrot.lane.b32.xlu0 %v141, 1
    %v535 = vpop.permute.xlu0 %534
    %v536 = vsel %vm168, %v529, 0.0
    %v537 = vsel %vm168, %v531, 0.0
    %v538 = vsel %vm168, %v533, 0.0
    %v539 = vsel %vm168, %v535, 0.0
    %s540 = sld [smem:[#allocation6 + $0xc]]
    %v541 = vstv %s540
    %v542 = vmul.f32 %v541, %v536
    %v543 = vmul.f32 %v541, %v537
    %v544 = vmul.f32 %v541, %v538
    %v545 = vmul.f32 %v541, %v539
    %v546 = vadd.f32 %v514, %v542
    %v547 = vadd.f32 %v515, %v543
    %v548 = vadd.f32 %v516, %v544
    %v549 = vadd.f32 %v517, %v545
    %s550 = sld [smem:[#allocation6 + $0x1e]]
    %v551 = vstv %s550
    %v552 = vmul.f32 %v551, %v536
    %v553 = vmul.f32 %v551, %v537
    %v554 = vmul.f32 %v551, %v538
    %v555 = vmul.f32 %v551, %v539
    %v556 = vadd.f32 %v524, %v552
    %v557 = vadd.f32 %v525, %v553
    %v558 = vadd.f32 %v526, %v554
    %v559 = vadd.f32 %v527, %v555
    %s560 = sld [smem:[#allocation6 + $0xd]]
    %v561 = vstv %s560
    %v562 = vmul.f32 %v561, %v138
    %v563 = vmul.f32 %v561, %v139
    %v564 = vmul.f32 %v561, %v140
    %v565 = vmul.f32 %v561, %v141
    %v566 = vadd.f32 %v546, %v562
    %v567 = vadd.f32 %v547, %v563
    %v568 = vadd.f32 %v548, %v564
    %v569 = vadd.f32 %v549, %v565
    %s570 = sld [smem:[#allocation6 + $0x1f]]
    %v571 = vstv %s570
    %v572 = vmul.f32 %v571, %v138
    %v573 = vmul.f32 %v571, %v139
    %v574 = vmul.f32 %v571, %v140
    %v575 = vmul.f32 %v571, %v141
    %v576 = vadd.f32 %v556, %v572
    %v577 = vadd.f32 %v557, %v573
    %v578 = vadd.f32 %v558, %v574
    %v579 = vadd.f32 %v559, %v575
    %580 = vrot.lane.b32.xlu0 %v138, 127
    %v581 = vpop.permute.xlu0 %580
    %582 = vrot.lane.b32.xlu0 %v139, 127
    %v583 = vpop.permute.xlu0 %582
    %584 = vrot.lane.b32.xlu0 %v140, 127
    %v585 = vpop.permute.xlu0 %584
    %586 = vrot.lane.b32.xlu0 %v141, 127
    %v587 = vpop.permute.xlu0 %586
    %v588 = vsel %vm222, %v581, 0.0
    %v589 = vsel %vm222, %v583, 0.0
    %v590 = vsel %vm222, %v585, 0.0
    %v591 = vsel %vm222, %v587, 0.0
    %s592 = sld [smem:[#allocation6 + $0xe]]
    %v593 = vstv %s592
    %v594 = vmul.f32 %v593, %v588
    %v595 = vmul.f32 %v593, %v589
    %v596 = vmul.f32 %v593, %v590
    %v597 = vmul.f32 %v593, %v591
    %v598 = vadd.f32 %v566, %v594
    %v599 = vadd.f32 %v567, %v595
    %v600 = vadd.f32 %v568, %v596
    %v601 = vadd.f32 %v569, %v597
    %s602 = sld [smem:[#allocation6 + $0x20]]
    %v603 = vstv %s602
    %v604 = vmul.f32 %v603, %v588
    %v605 = vmul.f32 %v603, %v589
    %v606 = vmul.f32 %v603, %v590
    %v607 = vmul.f32 %v603, %v591
    %v608 = vadd.f32 %v576, %v604
    %v609 = vadd.f32 %v577, %v605
    %v610 = vadd.f32 %v578, %v606
    %v611 = vadd.f32 %v579, %v607
    %v612 = vrot.slane %v138, 1
    %v613 = vrot.slane %v140, 1
    %v614 = vrot.slane %v139, 1
    %v615 = vrot.slane %v141, 1
    %v616 = vsel %vm335, %v612, %v614
    %v617 = vsel %vm335, %v613, %v615
    %v618 = vsel %vm335, %v614, %v612
    %v619 = vsel %vm335, %v615, %v613
    %v620 = vsel %vm342, %v616, 0.0
    %v621 = vsel %vm343, %v618, 0.0
    %v622 = vsel %vm342, %v617, 0.0
    %v623 = vsel %vm343, %v619, 0.0
    %624 = vrot.lane.b32.xlu0 %v620, 1
    %v625 = vpop.permute.xlu0 %624
    %626 = vrot.lane.b32.xlu0 %v621, 1
    %v627 = vpop.permute.xlu0 %626
    %628 = vrot.lane.b32.xlu0 %v622, 1
    %v629 = vpop.permute.xlu0 %628
    %630 = vrot.lane.b32.xlu0 %v623, 1
    %v631 = vpop.permute.xlu0 %630
    %v632 = vsel %vm168, %v625, 0.0
    %v633 = vsel %vm168, %v627, 0.0
    %v634 = vsel %vm168, %v629, 0.0
    %v635 = vsel %vm168, %v631, 0.0
    %s636 = sld [smem:[#allocation6 + $0xf]]
    %v637 = vstv %s636
    %v638 = vmul.f32 %v637, %v632
    %v639 = vmul.f32 %v637, %v633
    %v640 = vmul.f32 %v637, %v634
    %v641 = vmul.f32 %v637, %v635
    %v642 = vadd.f32 %v598, %v638
    %v643 = vadd.f32 %v599, %v639
    %v644 = vadd.f32 %v600, %v640
    %v645 = vadd.f32 %v601, %v641
    %s646 = sld [smem:[#allocation6 + $0x21]]
    %v647 = vstv %s646
    %v648 = vmul.f32 %v647, %v632
    %v649 = vmul.f32 %v647, %v633
    %v650 = vmul.f32 %v647, %v634
    %v651 = vmul.f32 %v647, %v635
    %v652 = vadd.f32 %v608, %v648
    %v653 = vadd.f32 %v609, %v649
    %v654 = vadd.f32 %v610, %v650
    %v655 = vadd.f32 %v611, %v651
    %s656 = sld [smem:[#allocation6 + $0x10]]
    %v657 = vstv %s656
    %v658 = vmul.f32 %v657, %v620
    %v659 = vmul.f32 %v657, %v621
    %v660 = vmul.f32 %v657, %v622
    %v661 = vmul.f32 %v657, %v623
    %v662 = vadd.f32 %v642, %v658
    %v663 = vadd.f32 %v643, %v659
    %v664 = vadd.f32 %v644, %v660
    %v665 = vadd.f32 %v645, %v661
    %s666 = sld [smem:[#allocation6 + $0x22]]
    %v667 = vstv %s666
    %v668 = vmul.f32 %v667, %v620
    %v669 = vmul.f32 %v667, %v621
    %v670 = vmul.f32 %v667, %v622
    %v671 = vmul.f32 %v667, %v623
    %v672 = vadd.f32 %v652, %v668
    %v673 = vadd.f32 %v653, %v669
    %v674 = vadd.f32 %v654, %v670
    %v675 = vadd.f32 %v655, %v671
    %676 = vrot.lane.b32.xlu0 %v620, 127
    %v677 = vpop.permute.xlu0 %676
    %678 = vrot.lane.b32.xlu0 %v621, 127
    %v679 = vpop.permute.xlu0 %678
    %680 = vrot.lane.b32.xlu0 %v622, 127
    %v681 = vpop.permute.xlu0 %680
    %682 = vrot.lane.b32.xlu0 %v623, 127
    %v683 = vpop.permute.xlu0 %682
    %v684 = vsel %vm222, %v677, 0.0
    %v685 = vsel %vm222, %v679, 0.0
    %v686 = vsel %vm222, %v681, 0.0
    %v687 = vsel %vm222, %v683, 0.0
    %s688 = sld [smem:[#allocation6 + $0x11]]
    %v689 = vstv %s688
    %v690 = vmul.f32 %v689, %v684
    %v691 = vmul.f32 %v689, %v685
    %v692 = vmul.f32 %v689, %v686
    %v693 = vmul.f32 %v689, %v687
    %v694 = vadd.f32 %v662, %v690
    %v695 = vadd.f32 %v663, %v691
    %v696 = vadd.f32 %v664, %v692
    %v697 = vadd.f32 %v665, %v693
    %s698 = sld [smem:[#allocation6 + $0x23]]
    %v699 = vstv %s698
    %v700 = vmul.f32 %v699, %v684
    %v701 = vmul.f32 %v699, %v685
    %v702 = vmul.f32 %v699, %v686
    %v703 = vmul.f32 %v699, %v687
    %v704 = vadd.f32 %v672, %v700
    %v705 = vadd.f32 %v673, %v701
    %v706 = vadd.f32 %v674, %v702
    %v707 = vadd.f32 %v675, %v703
    %v708 = vadd.f32 %v123, %v694
    %v709 = vadd.f32 %v124, %v695
    %v710 = vadd.f32 %v125, %v696
    %v711 = vadd.f32 %v126, %v697
    %v712 = vadd.f32 %v128, %v704
    %v713 = vadd.f32 %v129, %v705
    %v714 = vadd.f32 %v130, %v706
    %v715 = vadd.f32 %v131, %v707
    %v716 = vrot.slane %v708, 7
    %v717 = vrot.slane %v710, 7
    %v718 = vrot.slane %v709, 7
    %v719 = vrot.slane %v711, 7
    %v720 = vsel %vm146, %v716, %v718
    %v721 = vsel %vm146, %v717, %v719
    %v722 = vsel %vm146, %v718, %v716
    %v723 = vsel %vm146, %v719, %v717
    %v724 = vsel %vm153, %v722, 0.0
    %v725 = vsel %vm154, %v720, 0.0
    %v726 = vsel %vm153, %v723, 0.0
    %v727 = vsel %vm154, %v721, 0.0
    %728 = vrot.lane.b32.xlu0 %v724, 1
    %v729 = vpop.permute.xlu0 %728
    %730 = vrot.lane.b32.xlu0 %v725, 1
    %v731 = vpop.permute.xlu0 %730
    %732 = vrot.lane.b32.xlu0 %v726, 1
    %v733 = vpop.permute.xlu0 %732
    %734 = vrot.lane.b32.xlu0 %v727, 1
    %v735 = vpop.permute.xlu0 %734
    %v736 = vsel %vm168, %v729, 0.0
    %v737 = vsel %vm168, %v731, 0.0
    %v738 = vsel %vm168, %v733, 0.0
    %v739 = vsel %vm168, %v735, 0.0
    %s740 = sld [smem:[#allocation9]]
    %v741 = vstv %s740
    %v742 = vmul.f32 %v741, %v736
    %v743 = vmul.f32 %v741, %v737
    %v744 = vmul.f32 %v741, %v738
    %v745 = vmul.f32 %v741, %v739
    %v746 = vadd.f32 %v742, 0.0
    %v747 = vadd.f32 %v743, 0.0
    %v748 = vadd.f32 %v744, 0.0
    %v749 = vadd.f32 %v745, 0.0
    %s750 = sld [smem:[#allocation9 + $0x12]]
    %v751 = vstv %s750
    %v752 = vmul.f32 %v751, %v736
    %v753 = vmul.f32 %v751, %v737
    %v754 = vmul.f32 %v751, %v738
    %v755 = vmul.f32 %v751, %v739
    %v756 = vadd.f32 %v752, 0.0
    %v757 = vadd.f32 %v753, 0.0
    %v758 = vadd.f32 %v754, 0.0
    %v759 = vadd.f32 %v755, 0.0
    %s760 = sld [smem:[#allocation7]]
    %v761 = vstv %s760
    %v762 = vmul.f32 %v761, %v736
    %v763 = vmul.f32 %v761, %v737
    %v764 = vmul.f32 %v761, %v738
    %v765 = vmul.f32 %v761, %v739
    %v766 = vadd.f32 %v762, 0.0
    %v767 = vadd.f32 %v763, 0.0
    %v768 = vadd.f32 %v764, 0.0
    %v769 = vadd.f32 %v765, 0.0
    %s770 = sld [smem:[#allocation7 + $0x12]]
    %v771 = vstv %s770
    %v772 = vmul.f32 %v771, %v736
    %v773 = vmul.f32 %v771, %v737
    %v774 = vmul.f32 %v771, %v738
    %v775 = vmul.f32 %v771, %v739
    %v776 = vadd.f32 %v772, 0.0
    %v777 = vadd.f32 %v773, 0.0
    %v778 = vadd.f32 %v774, 0.0
    %v779 = vadd.f32 %v775, 0.0
    %s780 = sld [smem:[#allocation9 + $0x1]]
    %v781 = vstv %s780
    %v782 = vmul.f32 %v781, %v724
    %v783 = vmul.f32 %v781, %v725
    %v784 = vmul.f32 %v781, %v726
    %v785 = vmul.f32 %v781, %v727
    %v786 = vadd.f32 %v746, %v782
    %v787 = vadd.f32 %v747, %v783
    %v788 = vadd.f32 %v748, %v784
    %v789 = vadd.f32 %v749, %v785
    %s790 = sld [smem:[#allocation9 + $0x13]]
    %v791 = vstv %s790
    %v792 = vmul.f32 %v791, %v724
    %v793 = vmul.f32 %v791, %v725
    %v794 = vmul.f32 %v791, %v726
    %v795 = vmul.f32 %v791, %v727
    %v796 = vadd.f32 %v756, %v792
    %v797 = vadd.f32 %v757, %v793
    %v798 = vadd.f32 %v758, %v794
    %v799 = vadd.f32 %v759, %v795
    %s800 = sld [smem:[#allocation7 + $0x1]]
    %v801 = vstv %s800
    %v802 = vmul.f32 %v801, %v724
    %v803 = vmul.f32 %v801, %v725
    %v804 = vmul.f32 %v801, %v726
    %v805 = vmul.f32 %v801, %v727
    %v806 = vadd.f32 %v766, %v802
    %v807 = vadd.f32 %v767, %v803
    %v808 = vadd.f32 %v768, %v804
    %v809 = vadd.f32 %v769, %v805
    %s810 = sld [smem:[#allocation7 + $0x13]]
    %v811 = vstv %s810
    %v812 = vmul.f32 %v811, %v724
    %v813 = vmul.f32 %v811, %v725
    %v814 = vmul.f32 %v811, %v726
    %v815 = vmul.f32 %v811, %v727
    %v816 = vadd.f32 %v776, %v812
    %v817 = vadd.f32 %v777, %v813
    %v818 = vadd.f32 %v778, %v814
    %v819 = vadd.f32 %v779, %v815
    %820 = vrot.lane.b32.xlu0 %v724, 127
    %v821 = vpop.permute.xlu0 %820
    %822 = vrot.lane.b32.xlu0 %v725, 127
    %v823 = vpop.permute.xlu0 %822
    %824 = vrot.lane.b32.xlu0 %v726, 127
    %v825 = vpop.permute.xlu0 %824
    %826 = vrot.lane.b32.xlu0 %v727, 127
    %v827 = vpop.permute.xlu0 %826
    %v828 = vsel %vm222, %v821, 0.0
    %v829 = vsel %vm222, %v823, 0.0
    %v830 = vsel %vm222, %v825, 0.0
    %v831 = vsel %vm222, %v827, 0.0
    %s832 = sld [smem:[#allocation9 + $0x2]]
    %v833 = vstv %s832
    %v834 = vmul.f32 %v833, %v828
    %v835 = vmul.f32 %v833, %v829
    %v836 = vmul.f32 %v833, %v830
    %v837 = vmul.f32 %v833, %v831
    %v838 = vadd.f32 %v786, %v834
    %v839 = vadd.f32 %v787, %v835
    %v840 = vadd.f32 %v788, %v836
    %v841 = vadd.f32 %v789, %v837
    %s842 = sld [smem:[#allocation9 + $0x14]]
    %v843 = vstv %s842
    %v844 = vmul.f32 %v843, %v828
    %v845 = vmul.f32 %v843, %v829
    %v846 = vmul.f32 %v843, %v830
    %v847 = vmul.f32 %v843, %v831
    %v848 = vadd.f32 %v796, %v844
    %v849 = vadd.f32 %v797, %v845
    %v850 = vadd.f32 %v798, %v846
    %v851 = vadd.f32 %v799, %v847
    %s852 = sld [smem:[#allocation7 + $0x2]]
    %v853 = vstv %s852
    %v854 = vmul.f32 %v853, %v828
    %v855 = vmul.f32 %v853, %v829
    %v856 = vmul.f32 %v853, %v830
    %v857 = vmul.f32 %v853, %v831
    %v858 = vadd.f32 %v806, %v854
    %v859 = vadd.f32 %v807, %v855
    %v860 = vadd.f32 %v808, %v856
    %v861 = vadd.f32 %v809, %v857
    %s862 = sld [smem:[#allocation7 + $0x14]]
    %v863 = vstv %s862
    %v864 = vmul.f32 %v863, %v828
    %v865 = vmul.f32 %v863, %v829
    %v866 = vmul.f32 %v863, %v830
    %v867 = vmul.f32 %v863, %v831
    %v868 = vadd.f32 %v816, %v864
    %v869 = vadd.f32 %v817, %v865
    %v870 = vadd.f32 %v818, %v866
    %v871 = vadd.f32 %v819, %v867
    %872 = vrot.lane.b32.xlu0 %v708, 1
    %v873 = vpop.permute.xlu0 %872
    %874 = vrot.lane.b32.xlu0 %v709, 1
    %v875 = vpop.permute.xlu0 %874
    %876 = vrot.lane.b32.xlu0 %v710, 1
    %v877 = vpop.permute.xlu0 %876
    %878 = vrot.lane.b32.xlu0 %v711, 1
    %v879 = vpop.permute.xlu0 %878
    %v880 = vsel %vm168, %v873, 0.0
    %v881 = vsel %vm168, %v875, 0.0
    %v882 = vsel %vm168, %v877, 0.0
    %v883 = vsel %vm168, %v879, 0.0
    %s884 = sld [smem:[#allocation9 + $0x3]]
    %v885 = vstv %s884
    %v886 = vmul.f32 %v885, %v880
    %v887 = vmul.f32 %v885, %v881
    %v888 = vmul.f32 %v885, %v882
    %v889 = vmul.f32 %v885, %v883
    %v890 = vadd.f32 %v838, %v886
    %v891 = vadd.f32 %v839, %v887
    %v892 = vadd.f32 %v840, %v888
    %v893 = vadd.f32 %v841, %v889
    %s894 = sld [smem:[#allocation9 + $0x15]]
    %v895 = vstv %s894
    %v896 = vmul.f32 %v895, %v880
    %v897 = vmul.f32 %v895, %v881
    %v898 = vmul.f32 %v895, %v882
    %v899 = vmul.f32 %v895, %v883
    %v900 = vadd.f32 %v848, %v896
    %v901 = vadd.f32 %v849, %v897
    %v902 = vadd.f32 %v850, %v898
    %v903 = vadd.f32 %v851, %v899
    %s904 = sld [smem:[#allocation7 + $0x3]]
    %v905 = vstv %s904
    %v906 = vmul.f32 %v905, %v880
    %v907 = vmul.f32 %v905, %v881
    %v908 = vmul.f32 %v905, %v882
    %v909 = vmul.f32 %v905, %v883
    %v910 = vadd.f32 %v858, %v906
    %v911 = vadd.f32 %v859, %v907
    %v912 = vadd.f32 %v860, %v908
    %v913 = vadd.f32 %v861, %v909
    %s914 = sld [smem:[#allocation7 + $0x15]]
    %v915 = vstv %s914
    %v916 = vmul.f32 %v915, %v880
    %v917 = vmul.f32 %v915, %v881
    %v918 = vmul.f32 %v915, %v882
    %v919 = vmul.f32 %v915, %v883
    %v920 = vadd.f32 %v868, %v916
    %v921 = vadd.f32 %v869, %v917
    %v922 = vadd.f32 %v870, %v918
    %v923 = vadd.f32 %v871, %v919
    %s924 = sld [smem:[#allocation9 + $0x4]]
    %v925 = vstv %s924
    %v926 = vmul.f32 %v925, %v708
    %v927 = vmul.f32 %v925, %v709
    %v928 = vmul.f32 %v925, %v710
    %v929 = vmul.f32 %v925, %v711
    %v930 = vadd.f32 %v890, %v926
    %v931 = vadd.f32 %v891, %v927
    %v932 = vadd.f32 %v892, %v928
    %v933 = vadd.f32 %v893, %v929
    %s934 = sld [smem:[#allocation9 + $0x16]]
    %v935 = vstv %s934
    %v936 = vmul.f32 %v935, %v708
    %v937 = vmul.f32 %v935, %v709
    %v938 = vmul.f32 %v935, %v710
    %v939 = vmul.f32 %v935, %v711
    %v940 = vadd.f32 %v900, %v936
    %v941 = vadd.f32 %v901, %v937
    %v942 = vadd.f32 %v902, %v938
    %v943 = vadd.f32 %v903, %v939
    %s944 = sld [smem:[#allocation7 + $0x4]]
    %v945 = vstv %s944
    %v946 = vmul.f32 %v945, %v708
    %v947 = vmul.f32 %v945, %v709
    %v948 = vmul.f32 %v945, %v710
    %v949 = vmul.f32 %v945, %v711
    %v950 = vadd.f32 %v910, %v946
    %v951 = vadd.f32 %v911, %v947
    %v952 = vadd.f32 %v912, %v948
    %v953 = vadd.f32 %v913, %v949
    %s954 = sld [smem:[#allocation7 + $0x16]]
    %v955 = vstv %s954
    %v956 = vmul.f32 %v955, %v708
    %v957 = vmul.f32 %v955, %v709
    %v958 = vmul.f32 %v955, %v710
    %v959 = vmul.f32 %v955, %v711
    %v960 = vadd.f32 %v920, %v956
    %v961 = vadd.f32 %v921, %v957
    %v962 = vadd.f32 %v922, %v958
    %v963 = vadd.f32 %v923, %v959
    %964 = vrot.lane.b32.xlu0 %v708, 127
    %v965 = vpop.permute.xlu0 %964
    %966 = vrot.lane.b32.xlu0 %v709, 127
    %v967 = vpop.permute.xlu0 %966
    %968 = vrot.lane.b32.xlu0 %v710, 127
    %v969 = vpop.permute.xlu0 %968
    %970 = vrot.lane.b32.xlu0 %v711, 127
    %v971 = vpop.permute.xlu0 %970
    %v972 = vsel %vm222, %v965, 0.0
    %v973 = vsel %vm222, %v967, 0.0
    %v974 = vsel %vm222, %v969, 0.0
    %v975 = vsel %vm222, %v971, 0.0
    %s976 = sld [smem:[#allocation9 + $0x5]]
    %v977 = vstv %s976
    %v978 = vmul.f32 %v977, %v972
    %v979 = vmul.f32 %v977, %v973
    %v980 = vmul.f32 %v977, %v974
    %v981 = vmul.f32 %v977, %v975
    %v982 = vadd.f32 %v930, %v978
    %v983 = vadd.f32 %v931, %v979
    %v984 = vadd.f32 %v932, %v980
    %v985 = vadd.f32 %v933, %v981
    %s986 = sld [smem:[#allocation9 + $0x17]]
    %v987 = vstv %s986
    %v988 = vmul.f32 %v987, %v972
    %v989 = vmul.f32 %v987, %v973
    %v990 = vmul.f32 %v987, %v974
    %v991 = vmul.f32 %v987, %v975
    %v992 = vadd.f32 %v940, %v988
    %v993 = vadd.f32 %v941, %v989
    %v994 = vadd.f32 %v942, %v990
    %v995 = vadd.f32 %v943, %v991
    %s996 = sld [smem:[#allocation7 + $0x5]]
    %v997 = vstv %s996
    %v998 = vmul.f32 %v997, %v972
    %v999 = vmul.f32 %v997, %v973
    %v1000 = vmul.f32 %v997, %v974
    %v1001 = vmul.f32 %v997, %v975
    %v1002 = vadd.f32 %v950, %v998
    %v1003 = vadd.f32 %v951, %v999
    %v1004 = vadd.f32 %v952, %v1000
    %v1005 = vadd.f32 %v953, %v1001
    %s1006 = sld [smem:[#allocation7 + $0x17]]
    %v1007 = vstv %s1006
    %v1008 = vmul.f32 %v1007, %v972
    %v1009 = vmul.f32 %v1007, %v973
    %v1010 = vmul.f32 %v1007, %v974
    %v1011 = vmul.f32 %v1007, %v975
    %v1012 = vadd.f32 %v960, %v1008
    %v1013 = vadd.f32 %v961, %v1009
    %v1014 = vadd.f32 %v962, %v1010
    %v1015 = vadd.f32 %v963, %v1011
    %v1016 = vrot.slane %v708, 1
    %v1017 = vrot.slane %v710, 1
    %v1018 = vrot.slane %v709, 1
    %v1019 = vrot.slane %v711, 1
    %v1020 = vsel %vm335, %v1016, %v1018
    %v1021 = vsel %vm335, %v1017, %v1019
    %v1022 = vsel %vm335, %v1018, %v1016
    %v1023 = vsel %vm335, %v1019, %v1017
    %v1024 = vsel %vm342, %v1020, 0.0
    %v1025 = vsel %vm343, %v1022, 0.0
    %v1026 = vsel %vm342, %v1021, 0.0
    %v1027 = vsel %vm343, %v1023, 0.0
    %1028 = vrot.lane.b32.xlu0 %v1024, 1
    %v1029 = vpop.permute.xlu0 %1028
    %1030 = vrot.lane.b32.xlu0 %v1025, 1
    %v1031 = vpop.permute.xlu0 %1030
    %1032 = vrot.lane.b32.xlu0 %v1026, 1
    %v1033 = vpop.permute.xlu0 %1032
    %1034 = vrot.lane.b32.xlu0 %v1027, 1
    %v1035 = vpop.permute.xlu0 %1034
    %v1036 = vsel %vm168, %v1029, 0.0
    %v1037 = vsel %vm168, %v1031, 0.0
    %v1038 = vsel %vm168, %v1033, 0.0
    %v1039 = vsel %vm168, %v1035, 0.0
    %s1040 = sld [smem:[#allocation9 + $0x6]]
    %v1041 = vstv %s1040
    %v1042 = vmul.f32 %v1041, %v1036
    %v1043 = vmul.f32 %v1041, %v1037
    %v1044 = vmul.f32 %v1041, %v1038
    %v1045 = vmul.f32 %v1041, %v1039
    %v1046 = vadd.f32 %v982, %v1042
    %v1047 = vadd.f32 %v983, %v1043
    %v1048 = vadd.f32 %v984, %v1044
    %v1049 = vadd.f32 %v985, %v1045
    %s1050 = sld [smem:[#allocation9 + $0x18]]
    %v1051 = vstv %s1050
    %v1052 = vmul.f32 %v1051, %v1036
    %v1053 = vmul.f32 %v1051, %v1037
    %v1054 = vmul.f32 %v1051, %v1038
    %v1055 = vmul.f32 %v1051, %v1039
    %v1056 = vadd.f32 %v992, %v1052
    %v1057 = vadd.f32 %v993, %v1053
    %v1058 = vadd.f32 %v994, %v1054
    %v1059 = vadd.f32 %v995, %v1055
    %s1060 = sld [smem:[#allocation7 + $0x6]]
    %v1061 = vstv %s1060
    %v1062 = vmul.f32 %v1061, %v1036
    %v1063 = vmul.f32 %v1061, %v1037
    %v1064 = vmul.f32 %v1061, %v1038
    %v1065 = vmul.f32 %v1061, %v1039
    %v1066 = vadd.f32 %v1002, %v1062
    %v1067 = vadd.f32 %v1003, %v1063
    %v1068 = vadd.f32 %v1004, %v1064
    %v1069 = vadd.f32 %v1005, %v1065
    %s1070 = sld [smem:[#allocation7 + $0x18]]
    %v1071 = vstv %s1070
    %v1072 = vmul.f32 %v1071, %v1036
    %v1073 = vmul.f32 %v1071, %v1037
    %v1074 = vmul.f32 %v1071, %v1038
    %v1075 = vmul.f32 %v1071, %v1039
    %v1076 = vadd.f32 %v1012, %v1072
    %v1077 = vadd.f32 %v1013, %v1073
    %v1078 = vadd.f32 %v1014, %v1074
    %v1079 = vadd.f32 %v1015, %v1075
    %s1080 = sld [smem:[#allocation9 + $0x7]]
    %v1081 = vstv %s1080
    %v1082 = vmul.f32 %v1081, %v1024
    %v1083 = vmul.f32 %v1081, %v1025
    %v1084 = vmul.f32 %v1081, %v1026
    %v1085 = vmul.f32 %v1081, %v1027
    %v1086 = vadd.f32 %v1046, %v1082
    %v1087 = vadd.f32 %v1047, %v1083
    %v1088 = vadd.f32 %v1048, %v1084
    %v1089 = vadd.f32 %v1049, %v1085
    %s1090 = sld [smem:[#allocation9 + $0x19]]
    %v1091 = vstv %s1090
    %v1092 = vmul.f32 %v1091, %v1024
    %v1093 = vmul.f32 %v1091, %v1025
    %v1094 = vmul.f32 %v1091, %v1026
    %v1095 = vmul.f32 %v1091, %v1027
    %v1096 = vadd.f32 %v1056, %v1092
    %v1097 = vadd.f32 %v1057, %v1093
    %v1098 = vadd.f32 %v1058, %v1094
    %v1099 = vadd.f32 %v1059, %v1095
    %s1100 = sld [smem:[#allocation7 + $0x7]]
    %v1101 = vstv %s1100
    %v1102 = vmul.f32 %v1101, %v1024
    %v1103 = vmul.f32 %v1101, %v1025
    %v1104 = vmul.f32 %v1101, %v1026
    %v1105 = vmul.f32 %v1101, %v1027
    %v1106 = vadd.f32 %v1066, %v1102
    %v1107 = vadd.f32 %v1067, %v1103
    %v1108 = vadd.f32 %v1068, %v1104
    %v1109 = vadd.f32 %v1069, %v1105
    %s1110 = sld [smem:[#allocation7 + $0x19]]
    %v1111 = vstv %s1110
    %v1112 = vmul.f32 %v1111, %v1024
    %v1113 = vmul.f32 %v1111, %v1025
    %v1114 = vmul.f32 %v1111, %v1026
    %v1115 = vmul.f32 %v1111, %v1027
    %v1116 = vadd.f32 %v1076, %v1112
    %v1117 = vadd.f32 %v1077, %v1113
    %v1118 = vadd.f32 %v1078, %v1114
    %v1119 = vadd.f32 %v1079, %v1115
    %1120 = vrot.lane.b32.xlu0 %v1024, 127
    %v1121 = vpop.permute.xlu0 %1120
    %1122 = vrot.lane.b32.xlu0 %v1025, 127
    %v1123 = vpop.permute.xlu0 %1122
    %1124 = vrot.lane.b32.xlu0 %v1026, 127
    %v1125 = vpop.permute.xlu0 %1124
    %1126 = vrot.lane.b32.xlu0 %v1027, 127
    %v1127 = vpop.permute.xlu0 %1126
    %v1128 = vsel %vm222, %v1121, 0.0
    %v1129 = vsel %vm222, %v1123, 0.0
    %v1130 = vsel %vm222, %v1125, 0.0
    %v1131 = vsel %vm222, %v1127, 0.0
    %s1132 = sld [smem:[#allocation9 + $0x8]]
    %v1133 = vstv %s1132
    %v1134 = vmul.f32 %v1133, %v1128
    %v1135 = vmul.f32 %v1133, %v1129
    %v1136 = vmul.f32 %v1133, %v1130
    %v1137 = vmul.f32 %v1133, %v1131
    %v1138 = vadd.f32 %v1086, %v1134
    %v1139 = vadd.f32 %v1087, %v1135
    %v1140 = vadd.f32 %v1088, %v1136
    %v1141 = vadd.f32 %v1089, %v1137
    %s1142 = sld [smem:[#allocation9 + $0x1a]]
    %v1143 = vstv %s1142
    %v1144 = vmul.f32 %v1143, %v1128
    %v1145 = vmul.f32 %v1143, %v1129
    %v1146 = vmul.f32 %v1143, %v1130
    %v1147 = vmul.f32 %v1143, %v1131
    %v1148 = vadd.f32 %v1096, %v1144
    %v1149 = vadd.f32 %v1097, %v1145
    %v1150 = vadd.f32 %v1098, %v1146
    %v1151 = vadd.f32 %v1099, %v1147
    %s1152 = sld [smem:[#allocation7 + $0x8]]
    %v1153 = vstv %s1152
    %v1154 = vmul.f32 %v1153, %v1128
    %v1155 = vmul.f32 %v1153, %v1129
    %v1156 = vmul.f32 %v1153, %v1130
    %v1157 = vmul.f32 %v1153, %v1131
    %v1158 = vadd.f32 %v1106, %v1154
    %v1159 = vadd.f32 %v1107, %v1155
    %v1160 = vadd.f32 %v1108, %v1156
    %v1161 = vadd.f32 %v1109, %v1157
    %s1162 = sld [smem:[#allocation7 + $0x1a]]
    %v1163 = vstv %s1162
    %v1164 = vmul.f32 %v1163, %v1128
    %v1165 = vmul.f32 %v1163, %v1129
    %v1166 = vmul.f32 %v1163, %v1130
    %v1167 = vmul.f32 %v1163, %v1131
    %v1168 = vadd.f32 %v1116, %v1164
    %v1169 = vadd.f32 %v1117, %v1165
    %v1170 = vadd.f32 %v1118, %v1166
    %v1171 = vadd.f32 %v1119, %v1167
    %v1172 = vrot.slane %v712, 7
    %v1173 = vrot.slane %v714, 7
    %v1174 = vrot.slane %v713, 7
    %v1175 = vrot.slane %v715, 7
    %v1176 = vsel %vm146, %v1172, %v1174
    %v1177 = vsel %vm146, %v1173, %v1175
    %v1178 = vsel %vm146, %v1174, %v1172
    %v1179 = vsel %vm146, %v1175, %v1173
    %v1180 = vsel %vm153, %v1178, 0.0
    %v1181 = vsel %vm154, %v1176, 0.0
    %v1182 = vsel %vm153, %v1179, 0.0
    %v1183 = vsel %vm154, %v1177, 0.0
    %1184 = vrot.lane.b32.xlu0 %v1180, 1
    %v1185 = vpop.permute.xlu0 %1184
    %1186 = vrot.lane.b32.xlu0 %v1181, 1
    %v1187 = vpop.permute.xlu0 %1186
    %1188 = vrot.lane.b32.xlu0 %v1182, 1
    %v1189 = vpop.permute.xlu0 %1188
    %1190 = vrot.lane.b32.xlu0 %v1183, 1
    %v1191 = vpop.permute.xlu0 %1190
    %v1192 = vsel %vm168, %v1185, 0.0
    %v1193 = vsel %vm168, %v1187, 0.0
    %v1194 = vsel %vm168, %v1189, 0.0
    %v1195 = vsel %vm168, %v1191, 0.0
    %s1196 = sld [smem:[#allocation9 + $0x9]]
    %v1197 = vstv %s1196
    %v1198 = vmul.f32 %v1197, %v1192
    %v1199 = vmul.f32 %v1197, %v1193
    %v1200 = vmul.f32 %v1197, %v1194
    %v1201 = vmul.f32 %v1197, %v1195
    %v1202 = vadd.f32 %v1138, %v1198
    %v1203 = vadd.f32 %v1139, %v1199
    %v1204 = vadd.f32 %v1140, %v1200
    %v1205 = vadd.f32 %v1141, %v1201
    %s1206 = sld [smem:[#allocation9 + $0x1b]]
    %v1207 = vstv %s1206
    %v1208 = vmul.f32 %v1207, %v1192
    %v1209 = vmul.f32 %v1207, %v1193
    %v1210 = vmul.f32 %v1207, %v1194
    %v1211 = vmul.f32 %v1207, %v1195
    %v1212 = vadd.f32 %v1148, %v1208
    %v1213 = vadd.f32 %v1149, %v1209
    %v1214 = vadd.f32 %v1150, %v1210
    %v1215 = vadd.f32 %v1151, %v1211
    %s1216 = sld [smem:[#allocation7 + $0x9]]
    %v1217 = vstv %s1216
    %v1218 = vmul.f32 %v1217, %v1192
    %v1219 = vmul.f32 %v1217, %v1193
    %v1220 = vmul.f32 %v1217, %v1194
    %v1221 = vmul.f32 %v1217, %v1195
    %v1222 = vadd.f32 %v1158, %v1218
    %v1223 = vadd.f32 %v1159, %v1219
    %v1224 = vadd.f32 %v1160, %v1220
    %v1225 = vadd.f32 %v1161, %v1221
    %s1226 = sld [smem:[#allocation7 + $0x1b]]
    %v1227 = vstv %s1226
    %v1228 = vmul.f32 %v1227, %v1192
    %v1229 = vmul.f32 %v1227, %v1193
    %v1230 = vmul.f32 %v1227, %v1194
    %v1231 = vmul.f32 %v1227, %v1195
    %v1232 = vadd.f32 %v1168, %v1228
    %v1233 = vadd.f32 %v1169, %v1229
    %v1234 = vadd.f32 %v1170, %v1230
    %v1235 = vadd.f32 %v1171, %v1231
    %s1236 = sld [smem:[#allocation9 + $0xa]]
    %v1237 = vstv %s1236
    %v1238 = vmul.f32 %v1237, %v1180
    %v1239 = vmul.f32 %v1237, %v1181
    %v1240 = vmul.f32 %v1237, %v1182
    %v1241 = vmul.f32 %v1237, %v1183
    %v1242 = vadd.f32 %v1202, %v1238
    %v1243 = vadd.f32 %v1203, %v1239
    %v1244 = vadd.f32 %v1204, %v1240
    %v1245 = vadd.f32 %v1205, %v1241
    %s1246 = sld [smem:[#allocation9 + $0x1c]]
    %v1247 = vstv %s1246
    %v1248 = vmul.f32 %v1247, %v1180
    %v1249 = vmul.f32 %v1247, %v1181
    %v1250 = vmul.f32 %v1247, %v1182
    %v1251 = vmul.f32 %v1247, %v1183
    %v1252 = vadd.f32 %v1212, %v1248
    %v1253 = vadd.f32 %v1213, %v1249
    %v1254 = vadd.f32 %v1214, %v1250
    %v1255 = vadd.f32 %v1215, %v1251
    %s1256 = sld [smem:[#allocation7 + $0xa]]
    %v1257 = vstv %s1256
    %v1258 = vmul.f32 %v1257, %v1180
    %v1259 = vmul.f32 %v1257, %v1181
    %v1260 = vmul.f32 %v1257, %v1182
    %v1261 = vmul.f32 %v1257, %v1183
    %v1262 = vadd.f32 %v1222, %v1258
    %v1263 = vadd.f32 %v1223, %v1259
    %v1264 = vadd.f32 %v1224, %v1260
    %v1265 = vadd.f32 %v1225, %v1261
    %s1266 = sld [smem:[#allocation7 + $0x1c]]
    %v1267 = vstv %s1266
    %v1268 = vmul.f32 %v1267, %v1180
    %v1269 = vmul.f32 %v1267, %v1181
    %v1270 = vmul.f32 %v1267, %v1182
    %v1271 = vmul.f32 %v1267, %v1183
    %v1272 = vadd.f32 %v1232, %v1268
    %v1273 = vadd.f32 %v1233, %v1269
    %v1274 = vadd.f32 %v1234, %v1270
    %v1275 = vadd.f32 %v1235, %v1271
    %1276 = vrot.lane.b32.xlu0 %v1180, 127
    %v1277 = vpop.permute.xlu0 %1276
    %1278 = vrot.lane.b32.xlu0 %v1181, 127
    %v1279 = vpop.permute.xlu0 %1278
    %1280 = vrot.lane.b32.xlu0 %v1182, 127
    %v1281 = vpop.permute.xlu0 %1280
    %1282 = vrot.lane.b32.xlu0 %v1183, 127
    %v1283 = vpop.permute.xlu0 %1282
    %v1284 = vsel %vm222, %v1277, 0.0
    %v1285 = vsel %vm222, %v1279, 0.0
    %v1286 = vsel %vm222, %v1281, 0.0
    %v1287 = vsel %vm222, %v1283, 0.0
    %s1288 = sld [smem:[#allocation9 + $0xb]]
    %v1289 = vstv %s1288
    %v1290 = vmul.f32 %v1289, %v1284
    %v1291 = vmul.f32 %v1289, %v1285
    %v1292 = vmul.f32 %v1289, %v1286
    %v1293 = vmul.f32 %v1289, %v1287
    %v1294 = vadd.f32 %v1242, %v1290
    %v1295 = vadd.f32 %v1243, %v1291
    %v1296 = vadd.f32 %v1244, %v1292
    %v1297 = vadd.f32 %v1245, %v1293
    %s1298 = sld [smem:[#allocation9 + $0x1d]]
    %v1299 = vstv %s1298
    %v1300 = vmul.f32 %v1299, %v1284
    %v1301 = vmul.f32 %v1299, %v1285
    %v1302 = vmul.f32 %v1299, %v1286
    %v1303 = vmul.f32 %v1299, %v1287
    %v1304 = vadd.f32 %v1252, %v1300
    %v1305 = vadd.f32 %v1253, %v1301
    %v1306 = vadd.f32 %v1254, %v1302
    %v1307 = vadd.f32 %v1255, %v1303
    %s1308 = sld [smem:[#allocation7 + $0xb]]
    %v1309 = vstv %s1308
    %v1310 = vmul.f32 %v1309, %v1284
    %v1311 = vmul.f32 %v1309, %v1285
    %v1312 = vmul.f32 %v1309, %v1286
    %v1313 = vmul.f32 %v1309, %v1287
    %v1314 = vadd.f32 %v1262, %v1310
    %v1315 = vadd.f32 %v1263, %v1311
    %v1316 = vadd.f32 %v1264, %v1312
    %v1317 = vadd.f32 %v1265, %v1313
    %s1318 = sld [smem:[#allocation7 + $0x1d]]
    %v1319 = vstv %s1318
    %v1320 = vmul.f32 %v1319, %v1284
    %v1321 = vmul.f32 %v1319, %v1285
    %v1322 = vmul.f32 %v1319, %v1286
    %v1323 = vmul.f32 %v1319, %v1287
    %v1324 = vadd.f32 %v1272, %v1320
    %v1325 = vadd.f32 %v1273, %v1321
    %v1326 = vadd.f32 %v1274, %v1322
    %v1327 = vadd.f32 %v1275, %v1323
    %1328 = vrot.lane.b32.xlu0 %v712, 1
    %v1329 = vpop.permute.xlu0 %1328
    %1330 = vrot.lane.b32.xlu0 %v713, 1
    %v1331 = vpop.permute.xlu0 %1330
    %1332 = vrot.lane.b32.xlu0 %v714, 1
    %v1333 = vpop.permute.xlu0 %1332
    %1334 = vrot.lane.b32.xlu0 %v715, 1
    %v1335 = vpop.permute.xlu0 %1334
    %v1336 = vsel %vm168, %v1329, 0.0
    %v1337 = vsel %vm168, %v1331, 0.0
    %v1338 = vsel %vm168, %v1333, 0.0
    %v1339 = vsel %vm168, %v1335, 0.0
    %s1340 = sld [smem:[#allocation9 + $0xc]]
    %v1341 = vstv %s1340
    %v1342 = vmul.f32 %v1341, %v1336
    %v1343 = vmul.f32 %v1341, %v1337
    %v1344 = vmul.f32 %v1341, %v1338
    %v1345 = vmul.f32 %v1341, %v1339
    %v1346 = vadd.f32 %v1294, %v1342
    %v1347 = vadd.f32 %v1295, %v1343
    %v1348 = vadd.f32 %v1296, %v1344
    %v1349 = vadd.f32 %v1297, %v1345
    %s1350 = sld [smem:[#allocation9 + $0x1e]]
    %v1351 = vstv %s1350
    %v1352 = vmul.f32 %v1351, %v1336
    %v1353 = vmul.f32 %v1351, %v1337
    %v1354 = vmul.f32 %v1351, %v1338
    %v1355 = vmul.f32 %v1351, %v1339
    %v1356 = vadd.f32 %v1304, %v1352
    %v1357 = vadd.f32 %v1305, %v1353
    %v1358 = vadd.f32 %v1306, %v1354
    %v1359 = vadd.f32 %v1307, %v1355
    %s1360 = sld [smem:[#allocation7 + $0xc]]
    %v1361 = vstv %s1360
    %v1362 = vmul.f32 %v1361, %v1336
    %v1363 = vmul.f32 %v1361, %v1337
    %v1364 = vmul.f32 %v1361, %v1338
    %v1365 = vmul.f32 %v1361, %v1339
    %v1366 = vadd.f32 %v1314, %v1362
    %v1367 = vadd.f32 %v1315, %v1363
    %v1368 = vadd.f32 %v1316, %v1364
    %v1369 = vadd.f32 %v1317, %v1365
    %s1370 = sld [smem:[#allocation7 + $0x1e]]
    %v1371 = vstv %s1370
    %v1372 = vmul.f32 %v1371, %v1336
    %v1373 = vmul.f32 %v1371, %v1337
    %v1374 = vmul.f32 %v1371, %v1338
    %v1375 = vmul.f32 %v1371, %v1339
    %v1376 = vadd.f32 %v1324, %v1372
    %v1377 = vadd.f32 %v1325, %v1373
    %v1378 = vadd.f32 %v1326, %v1374
    %v1379 = vadd.f32 %v1327, %v1375
    %s1380 = sld [smem:[#allocation9 + $0xd]]
    %v1381 = vstv %s1380
    %v1382 = vmul.f32 %v1381, %v712
    %v1383 = vmul.f32 %v1381, %v713
    %v1384 = vmul.f32 %v1381, %v714
    %v1385 = vmul.f32 %v1381, %v715
    %v1386 = vadd.f32 %v1346, %v1382
    %v1387 = vadd.f32 %v1347, %v1383
    %v1388 = vadd.f32 %v1348, %v1384
    %v1389 = vadd.f32 %v1349, %v1385
    %s1390 = sld [smem:[#allocation9 + $0x1f]]
    %v1391 = vstv %s1390
    %v1392 = vmul.f32 %v1391, %v712
    %v1393 = vmul.f32 %v1391, %v713
    %v1394 = vmul.f32 %v1391, %v714
    %v1395 = vmul.f32 %v1391, %v715
    %v1396 = vadd.f32 %v1356, %v1392
    %v1397 = vadd.f32 %v1357, %v1393
    %v1398 = vadd.f32 %v1358, %v1394
    %v1399 = vadd.f32 %v1359, %v1395
    %s1400 = sld [smem:[#allocation7 + $0xd]]
    %v1401 = vstv %s1400
    %v1402 = vmul.f32 %v1401, %v712
    %v1403 = vmul.f32 %v1401, %v713
    %v1404 = vmul.f32 %v1401, %v714
    %v1405 = vmul.f32 %v1401, %v715
    %v1406 = vadd.f32 %v1366, %v1402
    %v1407 = vadd.f32 %v1367, %v1403
    %v1408 = vadd.f32 %v1368, %v1404
    %v1409 = vadd.f32 %v1369, %v1405
    %s1410 = sld [smem:[#allocation7 + $0x1f]]
    %v1411 = vstv %s1410
    %v1412 = vmul.f32 %v1411, %v712
    %v1413 = vmul.f32 %v1411, %v713
    %v1414 = vmul.f32 %v1411, %v714
    %v1415 = vmul.f32 %v1411, %v715
    %v1416 = vadd.f32 %v1376, %v1412
    %v1417 = vadd.f32 %v1377, %v1413
    %v1418 = vadd.f32 %v1378, %v1414
    %v1419 = vadd.f32 %v1379, %v1415
    %1420 = vrot.lane.b32.xlu0 %v712, 127
    %v1421 = vpop.permute.xlu0 %1420
    %1422 = vrot.lane.b32.xlu0 %v713, 127
    %v1423 = vpop.permute.xlu0 %1422
    %1424 = vrot.lane.b32.xlu0 %v714, 127
    %v1425 = vpop.permute.xlu0 %1424
    %1426 = vrot.lane.b32.xlu0 %v715, 127
    %v1427 = vpop.permute.xlu0 %1426
    %v1428 = vsel %vm222, %v1421, 0.0
    %v1429 = vsel %vm222, %v1423, 0.0
    %v1430 = vsel %vm222, %v1425, 0.0
    %v1431 = vsel %vm222, %v1427, 0.0
    %s1432 = sld [smem:[#allocation9 + $0xe]]
    %v1433 = vstv %s1432
    %v1434 = vmul.f32 %v1433, %v1428
    %v1435 = vmul.f32 %v1433, %v1429
    %v1436 = vmul.f32 %v1433, %v1430
    %v1437 = vmul.f32 %v1433, %v1431
    %v1438 = vadd.f32 %v1386, %v1434
    %v1439 = vadd.f32 %v1387, %v1435
    %v1440 = vadd.f32 %v1388, %v1436
    %v1441 = vadd.f32 %v1389, %v1437
    %s1442 = sld [smem:[#allocation9 + $0x20]]
    %v1443 = vstv %s1442
    %v1444 = vmul.f32 %v1443, %v1428
    %v1445 = vmul.f32 %v1443, %v1429
    %v1446 = vmul.f32 %v1443, %v1430
    %v1447 = vmul.f32 %v1443, %v1431
    %v1448 = vadd.f32 %v1396, %v1444
    %v1449 = vadd.f32 %v1397, %v1445
    %v1450 = vadd.f32 %v1398, %v1446
    %v1451 = vadd.f32 %v1399, %v1447
    %s1452 = sld [smem:[#allocation7 + $0xe]]
    %v1453 = vstv %s1452
    %v1454 = vmul.f32 %v1453, %v1428
    %v1455 = vmul.f32 %v1453, %v1429
    %v1456 = vmul.f32 %v1453, %v1430
    %v1457 = vmul.f32 %v1453, %v1431
    %v1458 = vadd.f32 %v1406, %v1454
    %v1459 = vadd.f32 %v1407, %v1455
    %v1460 = vadd.f32 %v1408, %v1456
    %v1461 = vadd.f32 %v1409, %v1457
    %s1462 = sld [smem:[#allocation7 + $0x20]]
    %v1463 = vstv %s1462
    %v1464 = vmul.f32 %v1463, %v1428
    %v1465 = vmul.f32 %v1463, %v1429
    %v1466 = vmul.f32 %v1463, %v1430
    %v1467 = vmul.f32 %v1463, %v1431
    %v1468 = vadd.f32 %v1416, %v1464
    %v1469 = vadd.f32 %v1417, %v1465
    %v1470 = vadd.f32 %v1418, %v1466
    %v1471 = vadd.f32 %v1419, %v1467
    %v1472 = vrot.slane %v712, 1
    %v1473 = vrot.slane %v714, 1
    %v1474 = vrot.slane %v713, 1
    %v1475 = vrot.slane %v715, 1
    %v1476 = vsel %vm335, %v1472, %v1474
    %v1477 = vsel %vm335, %v1473, %v1475
    %v1478 = vsel %vm335, %v1474, %v1472
    %v1479 = vsel %vm335, %v1475, %v1473
    %v1480 = vsel %vm342, %v1476, 0.0
    %v1481 = vsel %vm343, %v1478, 0.0
    %v1482 = vsel %vm342, %v1477, 0.0
    %v1483 = vsel %vm343, %v1479, 0.0
    %1484 = vrot.lane.b32.xlu0 %v1480, 1
    %v1485 = vpop.permute.xlu0 %1484
    %1486 = vrot.lane.b32.xlu0 %v1481, 1
    %v1487 = vpop.permute.xlu0 %1486
    %1488 = vrot.lane.b32.xlu0 %v1482, 1
    %v1489 = vpop.permute.xlu0 %1488
    %1490 = vrot.lane.b32.xlu0 %v1483, 1
    %v1491 = vpop.permute.xlu0 %1490
    %v1492 = vsel %vm168, %v1485, 0.0
    %v1493 = vsel %vm168, %v1487, 0.0
    %v1494 = vsel %vm168, %v1489, 0.0
    %v1495 = vsel %vm168, %v1491, 0.0
    %s1496 = sld [smem:[#allocation9 + $0xf]]
    %v1497 = vstv %s1496
    %v1498 = vmul.f32 %v1497, %v1492
    %v1499 = vmul.f32 %v1497, %v1493
    %v1500 = vmul.f32 %v1497, %v1494
    %v1501 = vmul.f32 %v1497, %v1495
    %v1502 = vadd.f32 %v1438, %v1498
    %v1503 = vadd.f32 %v1439, %v1499
    %v1504 = vadd.f32 %v1440, %v1500
    %v1505 = vadd.f32 %v1441, %v1501
    %s1506 = sld [smem:[#allocation9 + $0x21]]
    %v1507 = vstv %s1506
    %v1508 = vmul.f32 %v1507, %v1492
    %v1509 = vmul.f32 %v1507, %v1493
    %v1510 = vmul.f32 %v1507, %v1494
    %v1511 = vmul.f32 %v1507, %v1495
    %v1512 = vadd.f32 %v1448, %v1508
    %v1513 = vadd.f32 %v1449, %v1509
    %v1514 = vadd.f32 %v1450, %v1510
    %v1515 = vadd.f32 %v1451, %v1511
    %s1516 = sld [smem:[#allocation7 + $0xf]]
    %v1517 = vstv %s1516
    %v1518 = vmul.f32 %v1517, %v1492
    %v1519 = vmul.f32 %v1517, %v1493
    %v1520 = vmul.f32 %v1517, %v1494
    %v1521 = vmul.f32 %v1517, %v1495
    %v1522 = vadd.f32 %v1458, %v1518
    %v1523 = vadd.f32 %v1459, %v1519
    %v1524 = vadd.f32 %v1460, %v1520
    %v1525 = vadd.f32 %v1461, %v1521
    %s1526 = sld [smem:[#allocation7 + $0x21]]
    %v1527 = vstv %s1526
    %v1528 = vmul.f32 %v1527, %v1492
    %v1529 = vmul.f32 %v1527, %v1493
    %v1530 = vmul.f32 %v1527, %v1494
    %v1531 = vmul.f32 %v1527, %v1495
    %v1532 = vadd.f32 %v1468, %v1528
    %v1533 = vadd.f32 %v1469, %v1529
    %v1534 = vadd.f32 %v1470, %v1530
    %v1535 = vadd.f32 %v1471, %v1531
    %s1536 = sld [smem:[#allocation9 + $0x10]]
    %v1537 = vstv %s1536
    %v1538 = vmul.f32 %v1537, %v1480
    %v1539 = vmul.f32 %v1537, %v1481
    %v1540 = vmul.f32 %v1537, %v1482
    %v1541 = vmul.f32 %v1537, %v1483
    %v1542 = vadd.f32 %v1502, %v1538
    %v1543 = vadd.f32 %v1503, %v1539
    %v1544 = vadd.f32 %v1504, %v1540
    %v1545 = vadd.f32 %v1505, %v1541
    %s1546 = sld [smem:[#allocation9 + $0x22]]
    %v1547 = vstv %s1546
    %v1548 = vmul.f32 %v1547, %v1480
    %v1549 = vmul.f32 %v1547, %v1481
    %v1550 = vmul.f32 %v1547, %v1482
    %v1551 = vmul.f32 %v1547, %v1483
    %v1552 = vadd.f32 %v1512, %v1548
    %v1553 = vadd.f32 %v1513, %v1549
    %v1554 = vadd.f32 %v1514, %v1550
    %v1555 = vadd.f32 %v1515, %v1551
    %s1556 = sld [smem:[#allocation7 + $0x10]]
    %v1557 = vstv %s1556
    %v1558 = vmul.f32 %v1557, %v1480
    %v1559 = vmul.f32 %v1557, %v1481
    %v1560 = vmul.f32 %v1557, %v1482
    %v1561 = vmul.f32 %v1557, %v1483
    %v1562 = vadd.f32 %v1522, %v1558
    %v1563 = vadd.f32 %v1523, %v1559
    %v1564 = vadd.f32 %v1524, %v1560
    %v1565 = vadd.f32 %v1525, %v1561
    %s1566 = sld [smem:[#allocation7 + $0x22]]
    %v1567 = vstv %s1566
    %v1568 = vmul.f32 %v1567, %v1480
    %v1569 = vmul.f32 %v1567, %v1481
    %v1570 = vmul.f32 %v1567, %v1482
    %v1571 = vmul.f32 %v1567, %v1483
    %v1572 = vadd.f32 %v1532, %v1568
    %v1573 = vadd.f32 %v1533, %v1569
    %v1574 = vadd.f32 %v1534, %v1570
    %v1575 = vadd.f32 %v1535, %v1571
    %1576 = vrot.lane.b32.xlu0 %v1480, 127
    %v1577 = vpop.permute.xlu0 %1576
    %1578 = vrot.lane.b32.xlu0 %v1481, 127
    %v1579 = vpop.permute.xlu0 %1578
    %1580 = vrot.lane.b32.xlu0 %v1482, 127
    %v1581 = vpop.permute.xlu0 %1580
    %1582 = vrot.lane.b32.xlu0 %v1483, 127
    %v1583 = vpop.permute.xlu0 %1582
    %v1584 = vsel %vm222, %v1577, 0.0
    %v1585 = vsel %vm222, %v1579, 0.0
    %v1586 = vsel %vm222, %v1581, 0.0
    %v1587 = vsel %vm222, %v1583, 0.0
    %s1588 = sld [smem:[#allocation9 + $0x11]]
    %v1589 = vstv %s1588
    %v1590 = vmul.f32 %v1589, %v1584
    %v1591 = vmul.f32 %v1589, %v1585
    %v1592 = vmul.f32 %v1589, %v1586
    %v1593 = vmul.f32 %v1589, %v1587
    %v1594 = vadd.f32 %v1542, %v1590
    %v1595 = vadd.f32 %v1543, %v1591
    %v1596 = vadd.f32 %v1544, %v1592
    %v1597 = vadd.f32 %v1545, %v1593
    %s1598 = sld [smem:[#allocation9 + $0x23]]
    %v1599 = vstv %s1598
    %v1600 = vmul.f32 %v1599, %v1584
    %v1601 = vmul.f32 %v1599, %v1585
    %v1602 = vmul.f32 %v1599, %v1586
    %v1603 = vmul.f32 %v1599, %v1587
    %v1604 = vadd.f32 %v1552, %v1600
    %v1605 = vadd.f32 %v1553, %v1601
    %v1606 = vadd.f32 %v1554, %v1602
    %v1607 = vadd.f32 %v1555, %v1603
    %s1608 = sld [smem:[#allocation7 + $0x11]]
    %v1609 = vstv %s1608
    %v1610 = vmul.f32 %v1609, %v1584
    %v1611 = vmul.f32 %v1609, %v1585
    %v1612 = vmul.f32 %v1609, %v1586
    %v1613 = vmul.f32 %v1609, %v1587
    %v1614 = vadd.f32 %v1562, %v1610
    %v1615 = vadd.f32 %v1563, %v1611
    %v1616 = vadd.f32 %v1564, %v1612
    %v1617 = vadd.f32 %v1565, %v1613
    %s1618 = sld [smem:[#allocation7 + $0x23]]
    %v1619 = vstv %s1618
    %v1620 = vmul.f32 %v1619, %v1584
    %v1621 = vmul.f32 %v1619, %v1585
    %v1622 = vmul.f32 %v1619, %v1586
    %v1623 = vmul.f32 %v1619, %v1587
    %v1624 = vadd.f32 %v1572, %v1620
    %v1625 = vadd.f32 %v1573, %v1621
    %v1626 = vadd.f32 %v1574, %v1622
    %v1627 = vadd.f32 %v1575, %v1623
    %s1628 = sld [smem:[#allocation10]]
    %v1629 = vstv %s1628
    %v1630 = vadd.f32 %v1594, %v1629
    %v1631 = vadd.f32 %v1595, %v1629
    %v1632 = vadd.f32 %v1596, %v1629
    %v1633 = vadd.f32 %v1597, %v1629
    %s1634 = sld [smem:[#allocation10 + $0x1]]
    %v1635 = vstv %s1634
    %v1636 = vadd.f32 %v1604, %v1635
    %v1637 = vadd.f32 %v1605, %v1635
    %v1638 = vadd.f32 %v1606, %v1635
    %v1639 = vadd.f32 %v1607, %v1635
    %v1640 = vmul.f32 %v1630, 0.1
    %v1641 = vmul.f32 %v1631, 0.1
    %v1642 = vmul.f32 %v1632, 0.1
    %v1643 = vmul.f32 %v1633, 0.1
    %v1644 = vmax.f32 %v1630, %v1640
    %v1645 = vmax.f32 %v1631, %v1641
    %v1646 = vmax.f32 %v1632, %v1642
    %v1647 = vmax.f32 %v1633, %v1643
    %v1648 = vmul.f32 %v1636, 0.1
    %v1649 = vmul.f32 %v1637, 0.1
    %v1650 = vmul.f32 %v1638, 0.1
    %v1651 = vmul.f32 %v1639, 0.1
    %v1652 = vmax.f32 %v1636, %v1648
    %v1653 = vmax.f32 %v1637, %v1649
    %v1654 = vmax.f32 %v1638, %v1650
    %v1655 = vmax.f32 %v1639, %v1651
    %v1656 = vrot.slane %v1644, 7
    %v1657 = vrot.slane %v1646, 7
    %v1658 = vrot.slane %v1645, 7
    %v1659 = vrot.slane %v1647, 7
    %v1660 = vsel %vm146, %v1656, %v1658
    %v1661 = vsel %vm146, %v1657, %v1659
    %v1662 = vsel %vm146, %v1658, %v1656
    %v1663 = vsel %vm146, %v1659, %v1657
    %v1664 = vsel %vm153, %v1662, 0.0
    %v1665 = vsel %vm154, %v1660, 0.0
    %v1666 = vsel %vm153, %v1663, 0.0
    %v1667 = vsel %vm154, %v1661, 0.0
    %1668 = vrot.lane.b32.xlu0 %v1664, 1
    %v1669 = vpop.permute.xlu0 %1668
    %1670 = vrot.lane.b32.xlu0 %v1665, 1
    %v1671 = vpop.permute.xlu0 %1670
    %1672 = vrot.lane.b32.xlu0 %v1666, 1
    %v1673 = vpop.permute.xlu0 %1672
    %1674 = vrot.lane.b32.xlu0 %v1667, 1
    %v1675 = vpop.permute.xlu0 %1674
    %v1676 = vsel %vm168, %v1669, 0.0
    %v1677 = vsel %vm168, %v1671, 0.0
    %v1678 = vsel %vm168, %v1673, 0.0
    %v1679 = vsel %vm168, %v1675, 0.0
    %s1680 = sld [smem:[#allocation12]]
    %v1681 = vstv %s1680
    %v1682 = vmul.f32 %v1681, %v1676
    %v1683 = vmul.f32 %v1681, %v1677
    %v1684 = vmul.f32 %v1681, %v1678
    %v1685 = vmul.f32 %v1681, %v1679
    %v1686 = vadd.f32 %v1682, 0.0
    %v1687 = vadd.f32 %v1683, 0.0
    %v1688 = vadd.f32 %v1684, 0.0
    %v1689 = vadd.f32 %v1685, 0.0
    %s1690 = sld [smem:[#allocation12 + $0x12]]
    %v1691 = vstv %s1690
    %v1692 = vmul.f32 %v1691, %v1676
    %v1693 = vmul.f32 %v1691, %v1677
    %v1694 = vmul.f32 %v1691, %v1678
    %v1695 = vmul.f32 %v1691, %v1679
    %v1696 = vadd.f32 %v1692, 0.0
    %v1697 = vadd.f32 %v1693, 0.0
    %v1698 = vadd.f32 %v1694, 0.0
    %v1699 = vadd.f32 %v1695, 0.0
    %s1700 = sld [smem:[#allocation12 + $0x1]]
    %v1701 = vstv %s1700
    %v1702 = vmul.f32 %v1701, %v1664
    %v1703 = vmul.f32 %v1701, %v1665
    %v1704 = vmul.f32 %v1701, %v1666
    %v1705 = vmul.f32 %v1701, %v1667
    %v1706 = vadd.f32 %v1686, %v1702
    %v1707 = vadd.f32 %v1687, %v1703
    %v1708 = vadd.f32 %v1688, %v1704
    %v1709 = vadd.f32 %v1689, %v1705
    %s1710 = sld [smem:[#allocation12 + $0x13]]
    %v1711 = vstv %s1710
    %v1712 = vmul.f32 %v1711, %v1664
    %v1713 = vmul.f32 %v1711, %v1665
    %v1714 = vmul.f32 %v1711, %v1666
    %v1715 = vmul.f32 %v1711, %v1667
    %v1716 = vadd.f32 %v1696, %v1712
    %v1717 = vadd.f32 %v1697, %v1713
    %v1718 = vadd.f32 %v1698, %v1714
    %v1719 = vadd.f32 %v1699, %v1715
    %1720 = vrot.lane.b32.xlu0 %v1664, 127
    %v1721 = vpop.permute.xlu0 %1720
    %1722 = vrot.lane.b32.xlu0 %v1665, 127
    %v1723 = vpop.permute.xlu0 %1722
    %1724 = vrot.lane.b32.xlu0 %v1666, 127
    %v1725 = vpop.permute.xlu0 %1724
    %1726 = vrot.lane.b32.xlu0 %v1667, 127
    %v1727 = vpop.permute.xlu0 %1726
    %v1728 = vsel %vm222, %v1721, 0.0
    %v1729 = vsel %vm222, %v1723, 0.0
    %v1730 = vsel %vm222, %v1725, 0.0
    %v1731 = vsel %vm222, %v1727, 0.0
    %s1732 = sld [smem:[#allocation12 + $0x2]]
    %v1733 = vstv %s1732
    %v1734 = vmul.f32 %v1733, %v1728
    %v1735 = vmul.f32 %v1733, %v1729
    %v1736 = vmul.f32 %v1733, %v1730
    %v1737 = vmul.f32 %v1733, %v1731
    %v1738 = vadd.f32 %v1706, %v1734
    %v1739 = vadd.f32 %v1707, %v1735
    %v1740 = vadd.f32 %v1708, %v1736
    %v1741 = vadd.f32 %v1709, %v1737
    %s1742 = sld [smem:[#allocation12 + $0x14]]
    %v1743 = vstv %s1742
    %v1744 = vmul.f32 %v1743, %v1728
    %v1745 = vmul.f32 %v1743, %v1729
    %v1746 = vmul.f32 %v1743, %v1730
    %v1747 = vmul.f32 %v1743, %v1731
    %v1748 = vadd.f32 %v1716, %v1744
    %v1749 = vadd.f32 %v1717, %v1745
    %v1750 = vadd.f32 %v1718, %v1746
    %v1751 = vadd.f32 %v1719, %v1747
    %1752 = vrot.lane.b32.xlu0 %v1644, 1
    %v1753 = vpop.permute.xlu0 %1752
    %1754 = vrot.lane.b32.xlu0 %v1645, 1
    %v1755 = vpop.permute.xlu0 %1754
    %1756 = vrot.lane.b32.xlu0 %v1646, 1
    %v1757 = vpop.permute.xlu0 %1756
    %1758 = vrot.lane.b32.xlu0 %v1647, 1
    %v1759 = vpop.permute.xlu0 %1758
    %v1760 = vsel %vm168, %v1753, 0.0
    %v1761 = vsel %vm168, %v1755, 0.0
    %v1762 = vsel %vm168, %v1757, 0.0
    %v1763 = vsel %vm168, %v1759, 0.0
    %s1764 = sld [smem:[#allocation12 + $0x3]]
    %v1765 = vstv %s1764
    %v1766 = vmul.f32 %v1765, %v1760
    %v1767 = vmul.f32 %v1765, %v1761
    %v1768 = vmul.f32 %v1765, %v1762
    %v1769 = vmul.f32 %v1765, %v1763
    %v1770 = vadd.f32 %v1738, %v1766
    %v1771 = vadd.f32 %v1739, %v1767
    %v1772 = vadd.f32 %v1740, %v1768
    %v1773 = vadd.f32 %v1741, %v1769
    %s1774 = sld [smem:[#allocation12 + $0x15]]
    %v1775 = vstv %s1774
    %v1776 = vmul.f32 %v1775, %v1760
    %v1777 = vmul.f32 %v1775, %v1761
    %v1778 = vmul.f32 %v1775, %v1762
    %v1779 = vmul.f32 %v1775, %v1763
    %v1780 = vadd.f32 %v1748, %v1776
    %v1781 = vadd.f32 %v1749, %v1777
    %v1782 = vadd.f32 %v1750, %v1778
    %v1783 = vadd.f32 %v1751, %v1779
    %s1784 = sld [smem:[#allocation12 + $0x4]]
    %v1785 = vstv %s1784
    %v1786 = vmul.f32 %v1785, %v1644
    %v1787 = vmul.f32 %v1785, %v1645
    %v1788 = vmul.f32 %v1785, %v1646
    %v1789 = vmul.f32 %v1785, %v1647
    %v1790 = vadd.f32 %v1770, %v1786
    %v1791 = vadd.f32 %v1771, %v1787
    %v1792 = vadd.f32 %v1772, %v1788
    %v1793 = vadd.f32 %v1773, %v1789
    %s1794 = sld [smem:[#allocation12 + $0x16]]
    %v1795 = vstv %s1794
    %v1796 = vmul.f32 %v1795, %v1644
    %v1797 = vmul.f32 %v1795, %v1645
    %v1798 = vmul.f32 %v1795, %v1646
    %v1799 = vmul.f32 %v1795, %v1647
    %v1800 = vadd.f32 %v1780, %v1796
    %v1801 = vadd.f32 %v1781, %v1797
    %v1802 = vadd.f32 %v1782, %v1798
    %v1803 = vadd.f32 %v1783, %v1799
    %1804 = vrot.lane.b32.xlu0 %v1644, 127
    %v1805 = vpop.permute.xlu0 %1804
    %1806 = vrot.lane.b32.xlu0 %v1645, 127
    %v1807 = vpop.permute.xlu0 %1806
    %1808 = vrot.lane.b32.xlu0 %v1646, 127
    %v1809 = vpop.permute.xlu0 %1808
    %1810 = vrot.lane.b32.xlu0 %v1647, 127
    %v1811 = vpop.permute.xlu0 %1810
    %v1812 = vsel %vm222, %v1805, 0.0
    %v1813 = vsel %vm222, %v1807, 0.0
    %v1814 = vsel %vm222, %v1809, 0.0
    %v1815 = vsel %vm222, %v1811, 0.0
    %s1816 = sld [smem:[#allocation12 + $0x5]]
    %v1817 = vstv %s1816
    %v1818 = vmul.f32 %v1817, %v1812
    %v1819 = vmul.f32 %v1817, %v1813
    %v1820 = vmul.f32 %v1817, %v1814
    %v1821 = vmul.f32 %v1817, %v1815
    %v1822 = vadd.f32 %v1790, %v1818
    %v1823 = vadd.f32 %v1791, %v1819
    %v1824 = vadd.f32 %v1792, %v1820
    %v1825 = vadd.f32 %v1793, %v1821
    %s1826 = sld [smem:[#allocation12 + $0x17]]
    %v1827 = vstv %s1826
    %v1828 = vmul.f32 %v1827, %v1812
    %v1829 = vmul.f32 %v1827, %v1813
    %v1830 = vmul.f32 %v1827, %v1814
    %v1831 = vmul.f32 %v1827, %v1815
    %v1832 = vadd.f32 %v1800, %v1828
    %v1833 = vadd.f32 %v1801, %v1829
    %v1834 = vadd.f32 %v1802, %v1830
    %v1835 = vadd.f32 %v1803, %v1831
    %v1836 = vrot.slane %v1644, 1
    %v1837 = vrot.slane %v1646, 1
    %v1838 = vrot.slane %v1645, 1
    %v1839 = vrot.slane %v1647, 1
    %v1840 = vsel %vm335, %v1836, %v1838
    %v1841 = vsel %vm335, %v1837, %v1839
    %v1842 = vsel %vm335, %v1838, %v1836
    %v1843 = vsel %vm335, %v1839, %v1837
    %v1844 = vsel %vm342, %v1840, 0.0
    %v1845 = vsel %vm343, %v1842, 0.0
    %v1846 = vsel %vm342, %v1841, 0.0
    %v1847 = vsel %vm343, %v1843, 0.0
    %1848 = vrot.lane.b32.xlu0 %v1844, 1
    %v1849 = vpop.permute.xlu0 %1848
    %1850 = vrot.lane.b32.xlu0 %v1845, 1
    %v1851 = vpop.permute.xlu0 %1850
    %1852 = vrot.lane.b32.xlu0 %v1846, 1
    %v1853 = vpop.permute.xlu0 %1852
    %1854 = vrot.lane.b32.xlu0 %v1847, 1
    %v1855 = vpop.permute.xlu0 %1854
    %v1856 = vsel %vm168, %v1849, 0.0
    %v1857 = vsel %vm168, %v1851, 0.0
    %v1858 = vsel %vm168, %v1853, 0.0
    %v1859 = vsel %vm168, %v1855, 0.0
    %s1860 = sld [smem:[#allocation12 + $0x6]]
    %v1861 = vstv %s1860
    %v1862 = vmul.f32 %v1861, %v1856
    %v1863 = vmul.f32 %v1861, %v1857
    %v1864 = vmul.f32 %v1861, %v1858
    %v1865 = vmul.f32 %v1861, %v1859
    %v1866 = vadd.f32 %v1822, %v1862
    %v1867 = vadd.f32 %v1823, %v1863
    %v1868 = vadd.f32 %v1824, %v1864
    %v1869 = vadd.f32 %v1825, %v1865
    %s1870 = sld [smem:[#allocation12 + $0x18]]
    %v1871 = vstv %s1870
    %v1872 = vmul.f32 %v1871, %v1856
    %v1873 = vmul.f32 %v1871, %v1857
    %v1874 = vmul.f32 %v1871, %v1858
    %v1875 = vmul.f32 %v1871, %v1859
    %v1876 = vadd.f32 %v1832, %v1872
    %v1877 = vadd.f32 %v1833, %v1873
    %v1878 = vadd.f32 %v1834, %v1874
    %v1879 = vadd.f32 %v1835, %v1875
    %s1880 = sld [smem:[#allocation12 + $0x7]]
    %v1881 = vstv %s1880
    %v1882 = vmul.f32 %v1881, %v1844
    %v1883 = vmul.f32 %v1881, %v1845
    %v1884 = vmul.f32 %v1881, %v1846
    %v1885 = vmul.f32 %v1881, %v1847
    %v1886 = vadd.f32 %v1866, %v1882
    %v1887 = vadd.f32 %v1867, %v1883
    %v1888 = vadd.f32 %v1868, %v1884
    %v1889 = vadd.f32 %v1869, %v1885
    %s1890 = sld [smem:[#allocation12 + $0x19]]
    %v1891 = vstv %s1890
    %v1892 = vmul.f32 %v1891, %v1844
    %v1893 = vmul.f32 %v1891, %v1845
    %v1894 = vmul.f32 %v1891, %v1846
    %v1895 = vmul.f32 %v1891, %v1847
    %v1896 = vadd.f32 %v1876, %v1892
    %v1897 = vadd.f32 %v1877, %v1893
    %v1898 = vadd.f32 %v1878, %v1894
    %v1899 = vadd.f32 %v1879, %v1895
    %1900 = vrot.lane.b32.xlu0 %v1844, 127
    %v1901 = vpop.permute.xlu0 %1900
    %1902 = vrot.lane.b32.xlu0 %v1845, 127
    %v1903 = vpop.permute.xlu0 %1902
    %1904 = vrot.lane.b32.xlu0 %v1846, 127
    %v1905 = vpop.permute.xlu0 %1904
    %1906 = vrot.lane.b32.xlu0 %v1847, 127
    %v1907 = vpop.permute.xlu0 %1906
    %v1908 = vsel %vm222, %v1901, 0.0
    %v1909 = vsel %vm222, %v1903, 0.0
    %v1910 = vsel %vm222, %v1905, 0.0
    %v1911 = vsel %vm222, %v1907, 0.0
    %s1912 = sld [smem:[#allocation12 + $0x8]]
    %v1913 = vstv %s1912
    %v1914 = vmul.f32 %v1913, %v1908
    %v1915 = vmul.f32 %v1913, %v1909
    %v1916 = vmul.f32 %v1913, %v1910
    %v1917 = vmul.f32 %v1913, %v1911
    %v1918 = vadd.f32 %v1886, %v1914
    %v1919 = vadd.f32 %v1887, %v1915
    %v1920 = vadd.f32 %v1888, %v1916
    %v1921 = vadd.f32 %v1889, %v1917
    %s1922 = sld [smem:[#allocation12 + $0x1a]]
    %v1923 = vstv %s1922
    %v1924 = vmul.f32 %v1923, %v1908
    %v1925 = vmul.f32 %v1923, %v1909
    %v1926 = vmul.f32 %v1923, %v1910
    %v1927 = vmul.f32 %v1923, %v1911
    %v1928 = vadd.f32 %v1896, %v1924
    %v1929 = vadd.f32 %v1897, %v1925
    %v1930 = vadd.f32 %v1898, %v1926
    %v1931 = vadd.f32 %v1899, %v1927
    %v1932 = vrot.slane %v1652, 7
    %v1933 = vrot.slane %v1654, 7
    %v1934 = vrot.slane %v1653, 7
    %v1935 = vrot.slane %v1655, 7
    %v1936 = vsel %vm146, %v1932, %v1934
    %v1937 = vsel %vm146, %v1933, %v1935
    %v1938 = vsel %vm146, %v1934, %v1932
    %v1939 = vsel %vm146, %v1935, %v1933
    %v1940 = vsel %vm153, %v1938, 0.0
    %v1941 = vsel %vm154, %v1936, 0.0
    %v1942 = vsel %vm153, %v1939, 0.0
    %v1943 = vsel %vm154, %v1937, 0.0
    %1944 = vrot.lane.b32.xlu0 %v1940, 1
    %v1945 = vpop.permute.xlu0 %1944
    %1946 = vrot.lane.b32.xlu0 %v1941, 1
    %v1947 = vpop.permute.xlu0 %1946
    %1948 = vrot.lane.b32.xlu0 %v1942, 1
    %v1949 = vpop.permute.xlu0 %1948
    %1950 = vrot.lane.b32.xlu0 %v1943, 1
    %v1951 = vpop.permute.xlu0 %1950
    %v1952 = vsel %vm168, %v1945, 0.0
    %v1953 = vsel %vm168, %v1947, 0.0
    %v1954 = vsel %vm168, %v1949, 0.0
    %v1955 = vsel %vm168, %v1951, 0.0
    %s1956 = sld [smem:[#allocation12 + $0x9]]
    %v1957 = vstv %s1956
    %v1958 = vmul.f32 %v1957, %v1952
    %v1959 = vmul.f32 %v1957, %v1953
    %v1960 = vmul.f32 %v1957, %v1954
    %v1961 = vmul.f32 %v1957, %v1955
    %v1962 = vadd.f32 %v1918, %v1958
    %v1963 = vadd.f32 %v1919, %v1959
    %v1964 = vadd.f32 %v1920, %v1960
    %v1965 = vadd.f32 %v1921, %v1961
    %s1966 = sld [smem:[#allocation12 + $0x1b]]
    %v1967 = vstv %s1966
    %v1968 = vmul.f32 %v1967, %v1952
    %v1969 = vmul.f32 %v1967, %v1953
    %v1970 = vmul.f32 %v1967, %v1954
    %v1971 = vmul.f32 %v1967, %v1955
    %v1972 = vadd.f32 %v1928, %v1968
    %v1973 = vadd.f32 %v1929, %v1969
    %v1974 = vadd.f32 %v1930, %v1970
    %v1975 = vadd.f32 %v1931, %v1971
    %s1976 = sld [smem:[#allocation12 + $0xa]]
    %v1977 = vstv %s1976
    %v1978 = vmul.f32 %v1977, %v1940
    %v1979 = vmul.f32 %v1977, %v1941
    %v1980 = vmul.f32 %v1977, %v1942
    %v1981 = vmul.f32 %v1977, %v1943
    %v1982 = vadd.f32 %v1962, %v1978
    %v1983 = vadd.f32 %v1963, %v1979
    %v1984 = vadd.f32 %v1964, %v1980
    %v1985 = vadd.f32 %v1965, %v1981
    %s1986 = sld [smem:[#allocation12 + $0x1c]]
    %v1987 = vstv %s1986
    %v1988 = vmul.f32 %v1987, %v1940
    %v1989 = vmul.f32 %v1987, %v1941
    %v1990 = vmul.f32 %v1987, %v1942
    %v1991 = vmul.f32 %v1987, %v1943
    %v1992 = vadd.f32 %v1972, %v1988
    %v1993 = vadd.f32 %v1973, %v1989
    %v1994 = vadd.f32 %v1974, %v1990
    %v1995 = vadd.f32 %v1975, %v1991
    %1996 = vrot.lane.b32.xlu0 %v1940, 127
    %v1997 = vpop.permute.xlu0 %1996
    %1998 = vrot.lane.b32.xlu0 %v1941, 127
    %v1999 = vpop.permute.xlu0 %1998
    %2000 = vrot.lane.b32.xlu0 %v1942, 127
    %v2001 = vpop.permute.xlu0 %2000
    %2002 = vrot.lane.b32.xlu0 %v1943, 127
    %v2003 = vpop.permute.xlu0 %2002
    %v2004 = vsel %vm222, %v1997, 0.0
    %v2005 = vsel %vm222, %v1999, 0.0
    %v2006 = vsel %vm222, %v2001, 0.0
    %v2007 = vsel %vm222, %v2003, 0.0
    %s2008 = sld [smem:[#allocation12 + $0xb]]
    %v2009 = vstv %s2008
    %v2010 = vmul.f32 %v2009, %v2004
    %v2011 = vmul.f32 %v2009, %v2005
    %v2012 = vmul.f32 %v2009, %v2006
    %v2013 = vmul.f32 %v2009, %v2007
    %v2014 = vadd.f32 %v1982, %v2010
    %v2015 = vadd.f32 %v1983, %v2011
    %v2016 = vadd.f32 %v1984, %v2012
    %v2017 = vadd.f32 %v1985, %v2013
    %s2018 = sld [smem:[#allocation12 + $0x1d]]
    %v2019 = vstv %s2018
    %v2020 = vmul.f32 %v2019, %v2004
    %v2021 = vmul.f32 %v2019, %v2005
    %v2022 = vmul.f32 %v2019, %v2006
    %v2023 = vmul.f32 %v2019, %v2007
    %v2024 = vadd.f32 %v1992, %v2020
    %v2025 = vadd.f32 %v1993, %v2021
    %v2026 = vadd.f32 %v1994, %v2022
    %v2027 = vadd.f32 %v1995, %v2023
    %2028 = vrot.lane.b32.xlu0 %v1652, 1
    %v2029 = vpop.permute.xlu0 %2028
    %2030 = vrot.lane.b32.xlu0 %v1653, 1
    %v2031 = vpop.permute.xlu0 %2030
    %2032 = vrot.lane.b32.xlu0 %v1654, 1
    %v2033 = vpop.permute.xlu0 %2032
    %2034 = vrot.lane.b32.xlu0 %v1655, 1
    %v2035 = vpop.permute.xlu0 %2034
    %v2036 = vsel %vm168, %v2029, 0.0
    %v2037 = vsel %vm168, %v2031, 0.0
    %v2038 = vsel %vm168, %v2033, 0.0
    %v2039 = vsel %vm168, %v2035, 0.0
    %s2040 = sld [smem:[#allocation12 + $0xc]]
    %v2041 = vstv %s2040
    %v2042 = vmul.f32 %v2041, %v2036
    %v2043 = vmul.f32 %v2041, %v2037
    %v2044 = vmul.f32 %v2041, %v2038
    %v2045 = vmul.f32 %v2041, %v2039
    %v2046 = vadd.f32 %v2014, %v2042
    %v2047 = vadd.f32 %v2015, %v2043
    %v2048 = vadd.f32 %v2016, %v2044
    %v2049 = vadd.f32 %v2017, %v2045
    %s2050 = sld [smem:[#allocation12 + $0x1e]]
    %v2051 = vstv %s2050
    %v2052 = vmul.f32 %v2051, %v2036
    %v2053 = vmul.f32 %v2051, %v2037
    %v2054 = vmul.f32 %v2051, %v2038
    %v2055 = vmul.f32 %v2051, %v2039
    %v2056 = vadd.f32 %v2024, %v2052
    %v2057 = vadd.f32 %v2025, %v2053
    %v2058 = vadd.f32 %v2026, %v2054
    %v2059 = vadd.f32 %v2027, %v2055
    %s2060 = sld [smem:[#allocation12 + $0xd]]
    %v2061 = vstv %s2060
    %v2062 = vmul.f32 %v2061, %v1652
    %v2063 = vmul.f32 %v2061, %v1653
    %v2064 = vmul.f32 %v2061, %v1654
    %v2065 = vmul.f32 %v2061, %v1655
    %v2066 = vadd.f32 %v2046, %v2062
    %v2067 = vadd.f32 %v2047, %v2063
    %v2068 = vadd.f32 %v2048, %v2064
    %v2069 = vadd.f32 %v2049, %v2065
    %s2070 = sld [smem:[#allocation12 + $0x1f]]
    %v2071 = vstv %s2070
    %v2072 = vmul.f32 %v2071, %v1652
    %v2073 = vmul.f32 %v2071, %v1653
    %v2074 = vmul.f32 %v2071, %v1654
    %v2075 = vmul.f32 %v2071, %v1655
    %v2076 = vadd.f32 %v2056, %v2072
    %v2077 = vadd.f32 %v2057, %v2073
    %v2078 = vadd.f32 %v2058, %v2074
    %v2079 = vadd.f32 %v2059, %v2075
    %2080 = vrot.lane.b32.xlu0 %v1652, 127
    %v2081 = vpop.permute.xlu0 %2080
    %2082 = vrot.lane.b32.xlu0 %v1653, 127
    %v2083 = vpop.permute.xlu0 %2082
    %2084 = vrot.lane.b32.xlu0 %v1654, 127
    %v2085 = vpop.permute.xlu0 %2084
    %2086 = vrot.lane.b32.xlu0 %v1655, 127
    %v2087 = vpop.permute.xlu0 %2086
    %v2088 = vsel %vm222, %v2081, 0.0
    %v2089 = vsel %vm222, %v2083, 0.0
    %v2090 = vsel %vm222, %v2085, 0.0
    %v2091 = vsel %vm222, %v2087, 0.0
    %s2092 = sld [smem:[#allocation12 + $0xe]]
    %v2093 = vstv %s2092
    %v2094 = vmul.f32 %v2093, %v2088
    %v2095 = vmul.f32 %v2093, %v2089
    %v2096 = vmul.f32 %v2093, %v2090
    %v2097 = vmul.f32 %v2093, %v2091
    %v2098 = vadd.f32 %v2066, %v2094
    %v2099 = vadd.f32 %v2067, %v2095
    %v2100 = vadd.f32 %v2068, %v2096
    %v2101 = vadd.f32 %v2069, %v2097
    %s2102 = sld [smem:[#allocation12 + $0x20]]
    %v2103 = vstv %s2102
    %v2104 = vmul.f32 %v2103, %v2088
    %v2105 = vmul.f32 %v2103, %v2089
    %v2106 = vmul.f32 %v2103, %v2090
    %v2107 = vmul.f32 %v2103, %v2091
    %v2108 = vadd.f32 %v2076, %v2104
    %v2109 = vadd.f32 %v2077, %v2105
    %v2110 = vadd.f32 %v2078, %v2106
    %v2111 = vadd.f32 %v2079, %v2107
    %v2112 = vrot.slane %v1652, 1
    %v2113 = vrot.slane %v1654, 1
    %v2114 = vrot.slane %v1653, 1
    %v2115 = vrot.slane %v1655, 1
    %v2116 = vsel %vm335, %v2112, %v2114
    %v2117 = vsel %vm335, %v2113, %v2115
    %v2118 = vsel %vm335, %v2114, %v2112
    %v2119 = vsel %vm335, %v2115, %v2113
    %v2120 = vsel %vm342, %v2116, 0.0
    %v2121 = vsel %vm343, %v2118, 0.0
    %v2122 = vsel %vm342, %v2117, 0.0
    %v2123 = vsel %vm343, %v2119, 0.0
    %2124 = vrot.lane.b32.xlu0 %v2120, 1
    %v2125 = vpop.permute.xlu0 %2124
    %2126 = vrot.lane.b32.xlu0 %v2121, 1
    %v2127 = vpop.permute.xlu0 %2126
    %2128 = vrot.lane.b32.xlu0 %v2122, 1
    %v2129 = vpop.permute.xlu0 %2128
    %2130 = vrot.lane.b32.xlu0 %v2123, 1
    %v2131 = vpop.permute.xlu0 %2130
    %v2132 = vsel %vm168, %v2125, 0.0
    %v2133 = vsel %vm168, %v2127, 0.0
    %v2134 = vsel %vm168, %v2129, 0.0
    %v2135 = vsel %vm168, %v2131, 0.0
    %s2136 = sld [smem:[#allocation12 + $0xf]]
    %v2137 = vstv %s2136
    %v2138 = vmul.f32 %v2137, %v2132
    %v2139 = vmul.f32 %v2137, %v2133
    %v2140 = vmul.f32 %v2137, %v2134
    %v2141 = vmul.f32 %v2137, %v2135
    %v2142 = vadd.f32 %v2098, %v2138
    %v2143 = vadd.f32 %v2099, %v2139
    %v2144 = vadd.f32 %v2100, %v2140
    %v2145 = vadd.f32 %v2101, %v2141
    %s2146 = sld [smem:[#allocation12 + $0x21]]
    %v2147 = vstv %s2146
    %v2148 = vmul.f32 %v2147, %v2132
    %v2149 = vmul.f32 %v2147, %v2133
    %v2150 = vmul.f32 %v2147, %v2134
    %v2151 = vmul.f32 %v2147, %v2135
    %v2152 = vadd.f32 %v2108, %v2148
    %v2153 = vadd.f32 %v2109, %v2149
    %v2154 = vadd.f32 %v2110, %v2150
    %v2155 = vadd.f32 %v2111, %v2151
    %s2156 = sld [smem:[#allocation12 + $0x10]]
    %v2157 = vstv %s2156
    %v2158 = vmul.f32 %v2157, %v2120
    %v2159 = vmul.f32 %v2157, %v2121
    %v2160 = vmul.f32 %v2157, %v2122
    %v2161 = vmul.f32 %v2157, %v2123
    %v2162 = vadd.f32 %v2142, %v2158
    %v2163 = vadd.f32 %v2143, %v2159
    %v2164 = vadd.f32 %v2144, %v2160
    %v2165 = vadd.f32 %v2145, %v2161
    %s2166 = sld [smem:[#allocation12 + $0x22]]
    %v2167 = vstv %s2166
    %v2168 = vmul.f32 %v2167, %v2120
    %v2169 = vmul.f32 %v2167, %v2121
    %v2170 = vmul.f32 %v2167, %v2122
    %v2171 = vmul.f32 %v2167, %v2123
    %v2172 = vadd.f32 %v2152, %v2168
    %v2173 = vadd.f32 %v2153, %v2169
    %v2174 = vadd.f32 %v2154, %v2170
    %v2175 = vadd.f32 %v2155, %v2171
    %2176 = vrot.lane.b32.xlu0 %v2120, 127
    %v2177 = vpop.permute.xlu0 %2176
    %2178 = vrot.lane.b32.xlu0 %v2121, 127
    %v2179 = vpop.permute.xlu0 %2178
    %2180 = vrot.lane.b32.xlu0 %v2122, 127
    %v2181 = vpop.permute.xlu0 %2180
    %2182 = vrot.lane.b32.xlu0 %v2123, 127
    %v2183 = vpop.permute.xlu0 %2182
    %v2184 = vsel %vm222, %v2177, 0.0
    %v2185 = vsel %vm222, %v2179, 0.0
    %v2186 = vsel %vm222, %v2181, 0.0
    %v2187 = vsel %vm222, %v2183, 0.0
    %s2188 = sld [smem:[#allocation12 + $0x11]]
    %v2189 = vstv %s2188
    %v2190 = vmul.f32 %v2189, %v2184
    %v2191 = vmul.f32 %v2189, %v2185
    %v2192 = vmul.f32 %v2189, %v2186
    %v2193 = vmul.f32 %v2189, %v2187
    %v2194 = vadd.f32 %v2162, %v2190
    %v2195 = vadd.f32 %v2163, %v2191
    %v2196 = vadd.f32 %v2164, %v2192
    %v2197 = vadd.f32 %v2165, %v2193
    %s2198 = sld [smem:[#allocation12 + $0x23]]
    %v2199 = vstv %s2198
    %v2200 = vmul.f32 %v2199, %v2184
    %v2201 = vmul.f32 %v2199, %v2185
    %v2202 = vmul.f32 %v2199, %v2186
    %v2203 = vmul.f32 %v2199, %v2187
    %v2204 = vadd.f32 %v2172, %v2200
    %v2205 = vadd.f32 %v2173, %v2201
    %v2206 = vadd.f32 %v2174, %v2202
    %v2207 = vadd.f32 %v2175, %v2203
    %s2208 = sld [smem:[#allocation13]]
    %v2209 = vstv %s2208
    %v2210 = vadd.f32 %v2194, %v2209
    %v2211 = vadd.f32 %v2195, %v2209
    %v2212 = vadd.f32 %v2196, %v2209
    %v2213 = vadd.f32 %v2197, %v2209
    %s2214 = sld [smem:[#allocation13 + $0x1]]
    %v2215 = vstv %s2214
    %v2216 = vadd.f32 %v2204, %v2215
    %v2217 = vadd.f32 %v2205, %v2215
    %v2218 = vadd.f32 %v2206, %v2215
    %v2219 = vadd.f32 %v2207, %v2215
    %v2220 = vmul.f32 %v2210, 0.1
    %v2221 = vmul.f32 %v2211, 0.1
    %v2222 = vmul.f32 %v2212, 0.1
    %v2223 = vmul.f32 %v2213, 0.1
    %v2224 = vmax.f32 %v2210, %v2220
    %v2225 = vmax.f32 %v2211, %v2221
    %v2226 = vmax.f32 %v2212, %v2222
    %v2227 = vmax.f32 %v2213, %v2223
    %v2228 = vadd.f32 %v2224, %v708
    %v2229 = vadd.f32 %v2225, %v709
    %v2230 = vadd.f32 %v2226, %v710
    %v2231 = vadd.f32 %v2227, %v711
    %v2232 = vmul.f32 %v2216, 0.1
    %v2233 = vmul.f32 %v2217, 0.1
    %v2234 = vmul.f32 %v2218, 0.1
    %v2235 = vmul.f32 %v2219, 0.1
    %v2236 = vmax.f32 %v2216, %v2232
    %v2237 = vmax.f32 %v2217, %v2233
    %v2238 = vmax.f32 %v2218, %v2234
    %v2239 = vmax.f32 %v2219, %v2235
    %v2240 = vadd.f32 %v2236, %v712
    %v2241 = vadd.f32 %v2237, %v713
    %v2242 = vadd.f32 %v2238, %v714
    %v2243 = vadd.f32 %v2239, %v715
    %2244 = vst [vmem:[#allocation15] sm:$0xff] %v708
    %2245 = vst [vmem:[#allocation15 + $0x8] sm:$0xff] %v709
    %2246 = vst [vmem:[#allocation15 + $0x40] sm:$0xff] %v710
    %2247 = vst [vmem:[#allocation15 + $0x48] sm:$0xff] %v711
    %s2248 = scalar_lea.vmem [#allocation15], 16
    %2249 = vst [vmem:[%s2248] sm:$0xff] %v712
    %2250 = vst [vmem:[%s2248 + $0x8] sm:$0xff] %v713
    %2251 = vst [vmem:[%s2248 + $0x40] sm:$0xff] %v714
    %2252 = vst [vmem:[%s2248 + $0x48] sm:$0xff] %v715
    %v2253 = vmul.f32 %v2228, 0.5
    %v2254 = vmul.f32 %v2229, 0.5
    %v2255 = vmul.f32 %v2230, 0.5
    %v2256 = vmul.f32 %v2231, 0.5
    %v2257 = vtanh.pop %v2253
    %v2258 = vtanh.pop %v2254
    %v2259 = vtanh.pop %v2255
    %v2260 = vtanh.pop %v2256
    %v2261 = vmul.f32 %v2257, 0.8
    %v2262 = vmul.f32 %v2258, 0.8
    %v2263 = vmul.f32 %v2259, 0.8
    %v2264 = vmul.f32 %v2260, 0.8
    %v2265 = vmul.f32 %v2261, 1.442695
    %v2266 = vpow.pop %v2265
    %v2267 = vmul.f32 %v2262, 1.442695
    %v2268 = vpow.pop %v2267
    %v2269 = vmul.f32 %v2263, 1.442695
    %v2270 = vpow.pop %v2269
    %v2271 = vmul.f32 %v2264, 1.442695
    %v2272 = vpow.pop %v2271
    %v2273 = vmul.f32 %v133, %v2266
    %v2274 = vmul.f32 %v134, %v2268
    %v2275 = vmul.f32 %v135, %v2270
    %v2276 = vmul.f32 %v136, %v2272
    %v2277 = vadd.f32 %v2273, %v1614
    %v2278 = vadd.f32 %v2274, %v1615
    %v2279 = vadd.f32 %v2275, %v1616
    %v2280 = vadd.f32 %v2276, %v1617
    %s2281 = scalar_lea.vmem [#allocation15], 32
    %2282 = vst [vmem:[%s2281] sm:$0xff] %v2277
    %2283 = vst [vmem:[%s2281 + $0x8] sm:$0xff] %v2278
    %2284 = vst [vmem:[%s2281 + $0x40] sm:$0xff] %v2279
    %2285 = vst [vmem:[%s2281 + $0x48] sm:$0xff] %v2280
    %v2286 = vmul.f32 %v2240, 0.5
    %v2287 = vmul.f32 %v2241, 0.5
    %v2288 = vmul.f32 %v2242, 0.5
    %v2289 = vmul.f32 %v2243, 0.5
    %v2290 = vtanh.pop %v2286
    %v2291 = vtanh.pop %v2287
    %v2292 = vtanh.pop %v2288
    %v2293 = vtanh.pop %v2289
    %v2294 = vmul.f32 %v2290, 0.8
    %v2295 = vmul.f32 %v2291, 0.8
    %v2296 = vmul.f32 %v2292, 0.8
    %v2297 = vmul.f32 %v2293, 0.8
    %v2298 = vmul.f32 %v2294, 1.442695
    %v2299 = vpow.pop %v2298
    %v2300 = vmul.f32 %v2295, 1.442695
    %v2301 = vpow.pop %v2300
    %v2302 = vmul.f32 %v2296, 1.442695
    %v2303 = vpow.pop %v2302
    %v2304 = vmul.f32 %v2297, 1.442695
    %v2305 = vpow.pop %v2304
    %v2306 = vmul.f32 %v138, %v2299
    %v2307 = vmul.f32 %v139, %v2301
    %v2308 = vmul.f32 %v140, %v2303
    %v2309 = vmul.f32 %v141, %v2305
    %v2310 = vadd.f32 %v2306, %v1624
    %v2311 = vadd.f32 %v2307, %v1625
    %v2312 = vadd.f32 %v2308, %v1626
    %v2313 = vadd.f32 %v2309, %v1627
    %s2314 = scalar_lea.vmem [#allocation15], 48
    %2315 = vst [vmem:[%s2314] sm:$0xff] %v2310
    %2316 = vst [vmem:[%s2314 + $0x8] sm:$0xff] %v2311
    %2317 = vst [vmem:[%s2314 + $0x40] sm:$0xff] %v2312
    %2318 = vst [vmem:[%s2314 + $0x48] sm:$0xff] %v2313
    // Predicated region
    $region58: #{tpu_custom_call.1} parent=1 // pred_check
      _
    $region59: #{tpu_custom_call.1} parent=1 // pred_check_branch
      %2320 = sbr.rel (0) target = $region61
    $region60: #{tpu_custom_call.1} parent=1 // pred_region
      %s2322 = ssub.s32 2048, 2048
      %2323 = vsyncadd [#allocation4], %s2322
      %s2324 = sshll.u32 [#allocation15], 4
      %s2325 = int_to_ptr.vmem [resolvable:$true] %s2324
      %2330 = dma.vmem_to_hbm [thread:$0]  %s2325, 2048, %s7, [#allocation4], 128, 128, 8
    $region61: #{tpu_custom_call.1} parent=1 // pred_fallthru
      _
    // Predicated region
    $region62: #{tpu_custom_call.1} parent=1 // pred_check
      _
    $region63: #{tpu_custom_call.1} parent=1 // pred_check_branch
      %2332 = sbr.rel (0) target = $region65
    $region64: #{tpu_custom_call.1} parent=1 // pred_region
      %2333 = dma.done [#allocation4], 2048
    $region65: #{tpu_custom_call.1} parent=1 // pred_fallthru
      _
    %2334 = vsyncpa [#allocation3], 1
    %2335 = vsyncpa [#allocation4], 1
    %2336 = vsyncpa [#allocation5], 1
    %2337 = vsyncpa [#allocation8], 1
    %2338 = vsyncpa [#allocation11], 1
    %2339 = vsyncpa [#allocation14], 1

</llo_original>
